<compile_context>
chip_gen: v5e
topology: v5e:2x2
jax: 0.10.0
libtpu: 0.0.40
codegen_flags: <defaults>
</compile_context>

<pallas_src>
import functools

import jax
import jax.numpy as jnp
from jax import lax
from jax.experimental import pallas as pl
from jax.experimental.pallas import tpu as pltpu

LANE = 128


def _rup(n, m=LANE):
    return ((n + m - 1) // m) * m


def _choose_bb(batch, seq_len, target_rows=512, max_rows=2048):
    """Batch-fold factor: largest divisor of `batch` with Bb*T <= max_rows,
    stopping once the MXU M dimension reaches target_rows."""
    # TODO(synk): on v7x prefer Bb such that batch // Bb stays a multiple of
    # the 2 TensorCores once the batch is large enough to matter.
    best = 1
    for bb in range(1, batch + 1):
        if batch % bb:
            continue
        rows = bb * seq_len
        if rows > max_rows:
            break
        best = bb
        if rows >= target_rows:
            break
    return best


def _choose_tc(seq_len):
    """LSTM-head time chunk: a divisor of T, <= 128, >1 chunk when possible."""
    cap = max(min(seq_len // 2, 128), 8)
    for cand in (128, 64, 32, 16, 8):
        if cand <= cap and seq_len % cand == 0:
            return cand
    return seq_len


def _clamp_vmem(nbytes):
    # Explicit scoped-VMEM budget (instead of the 16/32 MiB defaults), with
    # headroom, capped so the same number is legal on v5e/v6e/v7x.
    return int(min(max(nbytes + (8 << 20), 32 << 20), 64 << 20))


# ----------------------------- Pallas kernels ------------------------------

def _stack_kernel(x_ref, win0_ref, win1_ref, bin_ref,
                  wfg0_ref, wfg1_ref, bfg_ref,
                  wr_ref, br_ref, ws_ref, bs_ref,
                  wih_ref, blstm_ref,
                  gates_ref, *, dilations, seq_len):
    """Fused: input causal conv -> all residual layers -> skip sum -> x@W_ih.

    The block is a folded (Bb*T, C) slab; rows are batch-major, time-minor.
    """
    M = x_ref.shape[0]
    Rp = win0_ref.shape[1]
    Sp = ws_ref.shape[2]
    T = seq_len
    Bb = M // T

    # Time index (within each folded batch element) for every row of the slab.
    tmod = lax.broadcasted_iota(jnp.int32, (Bb, T, Rp), 1).reshape(M, Rp)

    # ---- input causal conv (k=2, d=1): linear, so roll the projected tap ----
    x16 = x_ref[...].astype(jnp.bfloat16)
    p0 = jnp.dot(x16, win0_ref[...], preferred_element_type=jnp.float32)
    p0_prev = jnp.where(tmod < 1, 0.0, pltpu.roll(p0, shift=1, axis=0))
    h = (p0_prev
         + jnp.dot(x16, win1_ref[...], preferred_element_type=jnp.float32)
         + bin_ref[...])                                        # (M, Rp) f32

    skip_sum = jnp.zeros((M, Sp), jnp.float32)
    # TODO(synk): for deep stacks (L >= ~20, v7x 64 MiB VMEM) roll this loop
    # into lax.fori_loop with an SMEM dilation table (scalar prefetch) and
    # stream per-layer weights from HBM with make_async_copy double-buffering.
    for l, d in enumerate(dilations):
        h16 = h.astype(jnp.bfloat16)
        # dilated causal tap h[t-d] via XLU roll + zero mask (no pad scratch).
        h_prev = jnp.where(tmod < d, 0.0,
                           pltpu.roll(h, shift=d, axis=0)).astype(jnp.bfloat16)
        # fused filter|gate conv: two K=Rp dots instead of four.
        fg = (jnp.dot(h_prev, wfg0_ref[l], preferred_element_type=jnp.float32)
              + jnp.dot(h16, wfg1_ref[l], preferred_element_type=jnp.float32)
              + bfg_ref[l])                                     # (M, 2*Rp)
        gated = jnp.tanh(fg[:, :Rp]) * jax.nn.sigmoid(fg[:, Rp:2 * Rp])
        fx = (jnp.dot(gated.astype(jnp.bfloat16), wr_ref[l],
                      preferred_element_type=jnp.float32) + br_ref[l])
        skip_sum = (skip_sum
                    + jnp.dot(fx.astype(jnp.bfloat16), ws_ref[l],
                              preferred_element_type=jnp.float32)
                    + bs_ref[l])
        h = fx + h

    # hoisted LSTM input projection: gates_x = skip_sum @ W_ih + (b_ih + b_hh)
    gates_ref[...] = (jnp.dot(skip_sum.astype(jnp.bfloat16), wih_ref[...],
                              preferred_element_type=jnp.float32)
                      + blstm_ref[...])


def _lstm_head_kernel(seq_ref, whh_ref, wout_ref, bout_ref, o_ref, h_sc, c_sc):
    """Serial LSTM recurrence over one streamed T-chunk + final linear.

    h/c are carried across grid steps in VMEM scratch; gate chunks of shape
    (B, Tc, 4*Hp) are streamed by BlockSpec so the full gates tensor never has
    to be VMEM-resident.
    """
    B, Tc, G = seq_ref.shape
    Hp = G // 4

    @pl.when(pl.program_id(0) == 0)
    def _():
        h_sc[...] = jnp.zeros_like(h_sc)
        c_sc[...] = jnp.zeros_like(c_sc)

    h = h_sc[...]
    c = c_sc[...]
    whh = whh_ref[...]
    # Fully unrolled chunk recurrence (static indices; v5e review item).
    # TODO(synk): on v5e, stage W_hh in the MXU across steps via
    # pltpu.matmul_push_rhs / matmul_acc_lhs / matmul_pop.
    for t in range(Tc):
        gates = seq_ref[:, t, :] + jnp.dot(h.astype(jnp.bfloat16), whh,
                                           preferred_element_type=jnp.float32)
        i = jax.nn.sigmoid(gates[:, 0:Hp])          # gate blocks sit on
        f = jax.nn.sigmoid(gates[:, Hp:2 * Hp])     # padded 128-lane
        g = jnp.tanh(gates[:, 2 * Hp:3 * Hp])       # boundaries
        o = jax.nn.sigmoid(gates[:, 3 * Hp:4 * Hp])
        c = f * c + i * g
        h = o * jnp.tanh(c)
    h_sc[...] = h
    c_sc[...] = c

    @pl.when(pl.program_id(0) == pl.num_programs(0) - 1)
    def _():
        o_ref[...] = (jnp.dot(h.astype(jnp.bfloat16), wout_ref[...],
                              preferred_element_type=jnp.float32)
                      + bout_ref[...])


# ------------------------------ JAX wrappers --------------------------------

def wavenet_lstm_forward(x, prep):
    """x: (B, T, input_size) -> (B, predict_step); matches torch forward."""
    B, T, Cin = x.shape
    dims = prep['dims']
    Rp, Sp, Hp, P, L = dims['Rp'], dims['Sp'], dims['Hp'], dims['P'], dims['L']
    dils = prep['dilations']
    assert T % 8 == 0, "time length must be a multiple of 8 (sublane tile)"
    G = 4 * Hp

    Bb = _choose_bb(B, T)
    M = Bb * T
    x2d = x.reshape(B * T, Cin).astype(jnp.float32)

    def _nbytes(a):
        return a.size * jnp.dtype(a.dtype).itemsize

    weight_keys = ('win0', 'win1', 'bin', 'wfg0', 'wfg1', 'bfg',
                   'wr', 'br', 'ws', 'bs', 'wih', 'blstm')
    weight_bytes = sum(_nbytes(prep[k]) for k in weight_keys)
    block_bytes = M * Cin * 4 + M * G * 4
    temp_bytes = M * (6 * Rp + 4 * Rp + 2 * Sp + G) * 4   # rough in-kernel temps
    stack_vmem = _clamp_vmem(2 * weight_bytes + 2 * block_bytes + temp_bytes)

    flops = 2 * B * T * (2 * Cin * Rp
                         + L * (2 * Rp * 2 * Rp + Rp * Rp + Rp * Sp)
                         + Sp * G)
    cost = pl.CostEstimate(
        flops=int(flops),
        transcendentals=int(B * T * L * 2 * Rp),
        bytes_accessed=int(B * T * Cin * 4 + B * T * G * 4 + weight_bytes))

    gates2d = pl.pallas_call(
        functools.partial(_stack_kernel, dilations=dils, seq_len=T),
        out_shape=jax.ShapeDtypeStruct((B * T, G), jnp.float32),
        grid=(B // Bb,),
        in_specs=[
            pl.BlockSpec((M, Cin), lambda i: (i, 0)),            # folded x slab
            pl.BlockSpec((Cin, Rp), lambda i: (0, 0)),           # input conv tap0
            pl.BlockSpec((Cin, Rp), lambda i: (0, 0)),           # input conv tap1
            pl.BlockSpec((1, Rp), lambda i: (0, 0)),             # input conv bias
            pl.BlockSpec((L, Rp, 2 * Rp), lambda i: (0, 0, 0)),  # fused f|g tap0
            pl.BlockSpec((L, Rp, 2 * Rp), lambda i: (0, 0, 0)),  # fused f|g tap1
            pl.BlockSpec((L, 1, 2 * Rp), lambda i: (0, 0, 0)),   # fused f|g bias
            pl.BlockSpec((L, Rp, Rp), lambda i: (0, 0, 0)),      # res 1x1
            pl.BlockSpec((L, 1, Rp), lambda i: (0, 0, 0)),
            pl.BlockSpec((L, Rp, Sp), lambda i: (0, 0, 0)),      # skip 1x1
            pl.BlockSpec((L, 1, Sp), lambda i: (0, 0, 0)),
            pl.BlockSpec((Sp, G), lambda i: (0, 0)),             # LSTM W_ih
            pl.BlockSpec((1, G), lambda i: (0, 0)),              # LSTM bias
        ],
        out_specs=pl.BlockSpec((M, G), lambda i: (i, 0)),        # lane-dense
        compiler_params=pltpu.CompilerParams(
            dimension_semantics=("parallel",),
            vmem_limit_bytes=stack_vmem),
        cost_estimate=cost,
    )(x2d, prep['win0'], prep['win1'], prep['bin'],
      prep['wfg0'], prep['wfg1'], prep['bfg'],
      prep['wr'], prep['br'], prep['ws'], prep['bs'],
      prep['wih'], prep['blstm'])

    # Free metadata reshape: (B*T, G) -> (B, T, G); rows are batch-major.
    gates_btg = gates2d.reshape(B, T, G)

    Tc = _choose_tc(T)
    head_vmem = _clamp_vmem(
        2 * (B * Tc * G * 4)
        + 2 * (_nbytes(prep['whh']) + _nbytes(prep['wout']) + _nbytes(prep['bout']))
        + 2 * B * Hp * 4)

    out = pl.pallas_call(
        _lstm_head_kernel,
        out_shape=jax.ShapeDtypeStruct((B, P), jnp.float32),
        grid=(T // Tc,),
        in_specs=[
            pl.BlockSpec((B, Tc, G), lambda t: (0, t, 0)),   # streamed gate chunk
            pl.BlockSpec((Hp, G), lambda t: (0, 0)),         # LSTM W_hh
            pl.BlockSpec((Hp, P), lambda t: (0, 0)),         # output linear
            pl.BlockSpec((1, P), lambda t: (0, 0)),
        ],
        out_specs=pl.BlockSpec((B, P), lambda t: (0, 0)),
        scratch_shapes=[pltpu.VMEM((B, Hp), jnp.float32),    # carried h
                        pltpu.VMEM((B, Hp), jnp.float32)],   # carried c
        compiler_params=pltpu.CompilerParams(
            dimension_semantics=("arbitrary",),
            vmem_limit_bytes=head_vmem),
    )(gates_btg, prep['whh'], prep['wout'], prep['bout'])
    return out


# ------------------- one-time weight prep (transpose/fuse/pad/bf16) ---------

def prepare_params(params, input_size, residual_size, skip_size, hidden_size,
                   predict_step, dilation_depth, dilation_cycles):
    R, S, H = residual_size, skip_size, hidden_size
    Rp, Sp, Hp = _rup(R), _rup(S), _rup(H)
    Cin, P = input_size, predict_step
    L = dilation_depth * dilation_cycles

    def pad2(w, rows, cols):
        out = jnp.zeros((rows, cols), jnp.float32)
        return out.at[:w.shape[0], :w.shape[1]].set(w)

    win0 = pad2(params['input_conv_w'][:, :, 0].T, Cin, Rp)
    win1 = pad2(params['input_conv_w'][:, :, 1].T, Cin, Rp)
    bin_ = pad2(params['input_conv_b'][None, :], 1, Rp)

    wfg0, wfg1, bfg, wr, br, ws, bs = [], [], [], [], [], [], []
    for c in range(dilation_cycles):
        for l in range(dilation_depth):
            p = params['stack'][c][l]
            w0 = jnp.zeros((Rp, 2 * Rp), jnp.float32)
            w0 = (w0.at[:R, :R].set(p['wf'][:, :, 0].T)
                    .at[:R, Rp:Rp + R].set(p['wg'][:, :, 0].T))
            w1 = jnp.zeros((Rp, 2 * Rp), jnp.float32)
            w1 = (w1.at[:R, :R].set(p['wf'][:, :, 1].T)
                    .at[:R, Rp:Rp + R].set(p['wg'][:, :, 1].T))
            b01 = jnp.zeros((1, 2 * Rp), jnp.float32)
            b01 = b01.at[0, :R].set(p['bf']).at[0, Rp:Rp + R].set(p['bg'])
            wfg0.append(w0); wfg1.append(w1); bfg.append(b01)
            wr.append(pad2(p['wr'].T, Rp, Rp))
            br.append(pad2(p['br'][None, :], 1, Rp))
            ws.append(pad2(p['ws'].T, Rp, Sp))
            bs.append(pad2(p['bs'][None, :], 1, Sp))

    lp = params['lstm']
    wih = jnp.zeros((Sp, 4 * Hp), jnp.float32)
    whh = jnp.zeros((Hp, 4 * Hp), jnp.float32)
    blstm = jnp.zeros((1, 4 * Hp), jnp.float32)
    bsum = lp['b_ih'] + lp['b_hh']
    for k in range(4):
        wih = wih.at[:S, k * Hp:k * Hp + H].set(lp['w_ih'][k * H:(k + 1) * H, :].T)
        whh = whh.at[:H, k * Hp:k * Hp + H].set(lp['w_hh'][k * H:(k + 1) * H, :].T)
        blstm = blstm.at[0, k * Hp:k * Hp + H].set(bsum[k * H:(k + 1) * H])

    wout = pad2(params['out']['w'].T, Hp, P)
    bout = params['out']['b'][None, :].astype(jnp.float32)

    bf16 = jnp.bfloat16
    return {
        # matmul weights in bf16 (MXU-native); biases stay f32 (post-dot add).
        'win0': win0.astype(bf16), 'win1': win1.astype(bf16), 'bin': bin_,
        'wfg0': jnp.stack(wfg0).astype(bf16),
        'wfg1': jnp.stack(wfg1).astype(bf16),
        'bfg': jnp.stack(bfg),
        'wr': jnp.stack(wr).astype(bf16), 'br': jnp.stack(br),
        'ws': jnp.stack(ws).astype(bf16), 'bs': jnp.stack(bs),
        'wih': wih.astype(bf16), 'blstm': blstm,
        'whh': whh.astype(bf16), 'wout': wout.astype(bf16), 'bout': bout,
        'dims': dict(Rp=Rp, Sp=Sp, Hp=Hp, Cin=Cin, P=P, L=L),
        'dilations': tuple(2 ** l
                           for _ in range(dilation_cycles)
                           for l in range(dilation_depth)),
    }


# ---------------------------- parameter init --------------------------------

def init_params(key, input_size, residual_size, skip_size, dilation_depth,
                hidden_size, predict_step, dilation_cycles):
    keys = iter(jax.random.split(key, 128))

    def u(shape, fan_in):
        k = 1.0 / float(fan_in) ** 0.5
        return jax.random.uniform(next(keys), shape, jnp.float32, -k, k)

    R, S, H = residual_size, skip_size, hidden_size
    params = {
        'input_conv_w': u((R, input_size, 2), input_size * 2),
        'input_conv_b': u((R,), input_size * 2),
        'stack': [],
    }
    for _ in range(dilation_cycles):
        layers = []
        for _ in range(dilation_depth):
            layers.append({
                'wf': u((R, R, 2), R * 2), 'bf': u((R,), R * 2),
                'wg': u((R, R, 2), R * 2), 'bg': u((R,), R * 2),
                'wr': u((R, R), R), 'br': u((R,), R),
                'ws': u((S, R), R), 'bs': u((S,), R),
            })
        params['stack'].append(layers)
    params['lstm'] = {
        'w_ih': u((4 * H, S), H), 'w_hh': u((4 * H, H), H),
        'b_ih': u((4 * H,), H), 'b_hh': u((4 * H,), H),
    }
    params['out'] = {'w': u((predict_step, H), H), 'b': u((predict_step,), H)}
    return params


# ----------------------- pure-JAX reference (check) --------------------------

def _ref_forward(x, params, dilation_depth, dilation_cycles, hidden_size):
    def cconv(h, w, b, d):
        _, T, _ = h.shape
        hp = jnp.pad(h, ((0, 0), (d, 0), (0, 0)))[:, :T, :]
        return (jnp.einsum('btc,oc->bto', hp, w[:, :, 0])
                + jnp.einsum('btc,oc->bto', h, w[:, :, 1]) + b)

    h = cconv(x, params['input_conv_w'], params['input_conv_b'], 1)
    skip_sum = 0.0
    for c in range(dilation_cycles):
        for l in range(dilation_depth):
            p = params['stack'][c][l]
            d = 2 ** l
            f = cconv(h, p['wf'], p['bf'], d)
            g = cconv(h, p['wg'], p['bg'], d)
            fx = jnp.tanh(f) * jax.nn.sigmoid(g)
            fx = jnp.einsum('btc,oc->bto', fx, p['wr']) + p['br']
            skip = jnp.einsum('btc,oc->bto', fx, p['ws']) + p['bs']
            h = fx + h
            skip_sum = skip_sum + skip

    B, T, _ = skip_sum.shape
    H = hidden_size
    lp = params['lstm']
    hh = jnp.zeros((B, H), jnp.float32)
    cc = jnp.zeros((B, H), jnp.float32)
    for t in range(T):
        xt = skip_sum[:, t, :]
        gates = xt @ lp['w_ih'].T + hh @ lp['w_hh'].T + lp['b_ih'] + lp['b_hh']
        i = jax.nn.sigmoid(gates[:, :H])
        f = jax.nn.sigmoid(gates[:, H:2 * H])
        g = jnp.tanh(gates[:, 2 * H:3 * H])
        o = jax.nn.sigmoid(gates[:, 3 * H:])
        cc = f * cc + i * g
        hh = o * jnp.tanh(cc)
    return hh @ params['out']['w'].T + params['out']['b']


# ---------------------------------- main -------------------------------------

if __name__ == "__main__":
    key = jax.random.PRNGKey(0)
    kx, kp = jax.random.split(key)

    B, T = 2, 16
    input_size, residual_size, skip_size = 4, 8, 8
    dilation_depth, hidden_size = 3, 16
    predict_step, dilation_cycles = 1, 1

    x = jax.random.normal(kx, (B, T, input_size), jnp.float32)
    params = init_params(kp, input_size, residual_size, skip_size,
                         dilation_depth, hidden_size, predict_step,
                         dilation_cycles)
    # weight transpose / filter+gate fusion / 128-lane padding / bf16 cast ONCE.
    prep = prepare_params(params, input_size, residual_size, skip_size,
                          hidden_size, predict_step, dilation_depth,
                          dilation_cycles)

    fwd = jax.jit(lambda xx: wavenet_lstm_forward(xx, prep))
    out = jax.block_until_ready(fwd(x))

    ref = _ref_forward(x, params, dilation_depth, dilation_cycles, hidden_size)
    assert out.shape == (B, predict_step), out.shape
    # bf16 MXU operands with f32 accumulation -> loosened tolerance vs f32 ref.
    if not jnp.allclose(out, ref, atol=2e-2, rtol=2e-2):
        raise AssertionError(
            f"mismatch: pallas={out}, ref={ref}, "
            f"maxdiff={jnp.max(jnp.abs(out - ref))}")
    print("KERNEL_OK")
</pallas_src>

<mosaic_0001>
module attributes {stable_mosaic.version = 11 : i64} {
  func.func @_stack_kernel(%arg0: i32, %arg1: memref<32x4xf32, #tpu.memory_space<vmem>>, %arg2: memref<4x128xbf16, #tpu.memory_space<vmem>>, %arg3: memref<4x128xbf16, #tpu.memory_space<vmem>>, %arg4: memref<1x128xf32, #tpu.memory_space<vmem>>, %arg5: memref<3x128x256xbf16, #tpu.memory_space<vmem>>, %arg6: memref<3x128x256xbf16, #tpu.memory_space<vmem>>, %arg7: memref<3x1x256xf32, #tpu.memory_space<vmem>>, %arg8: memref<3x128x128xbf16, #tpu.memory_space<vmem>>, %arg9: memref<3x1x128xf32, #tpu.memory_space<vmem>>, %arg10: memref<3x128x128xbf16, #tpu.memory_space<vmem>>, %arg11: memref<3x1x128xf32, #tpu.memory_space<vmem>>, %arg12: memref<128x512xbf16, #tpu.memory_space<vmem>>, %arg13: memref<1x512xf32, #tpu.memory_space<vmem>>, %arg14: memref<32x512xf32, #tpu.memory_space<vmem>>) attributes {dimension_semantics = [#tpu.dimension_semantics<parallel>], iteration_bounds = array<i64: 1>, scalar_prefetch = 0 : i64, scratch_operands = 0 : i64, tpu.core_type = #tpu.core_type<tc>, window_params = [{transform_indices = @transform_0, window_bounds = array<i64: 32, 4>}, {pipeline_mode = #tpu.pipeline_mode<synchronous>, transform_indices = @transform_1, window_bounds = array<i64: 4, 128>}, {pipeline_mode = #tpu.pipeline_mode<synchronous>, transform_indices = @transform_2, window_bounds = array<i64: 4, 128>}, {pipeline_mode = #tpu.pipeline_mode<synchronous>, transform_indices = @transform_3, window_bounds = array<i64: 1, 128>}, {pipeline_mode = #tpu.pipeline_mode<synchronous>, transform_indices = @transform_4, window_bounds = array<i64: 3, 128, 256>}, {pipeline_mode = #tpu.pipeline_mode<synchronous>, transform_indices = @transform_5, window_bounds = array<i64: 3, 128, 256>}, {pipeline_mode = #tpu.pipeline_mode<synchronous>, transform_indices = @transform_6, window_bounds = array<i64: 3, 1, 256>}, {pipeline_mode = #tpu.pipeline_mode<synchronous>, transform_indices = @transform_7, window_bounds = array<i64: 3, 128, 128>}, {pipeline_mode = #tpu.pipeline_mode<synchronous>, transform_indices = @transform_8, window_bounds = array<i64: 3, 1, 128>}, {pipeline_mode = #tpu.pipeline_mode<synchronous>, transform_indices = @transform_9, window_bounds = array<i64: 3, 128, 128>}, {pipeline_mode = #tpu.pipeline_mode<synchronous>, transform_indices = @transform_10, window_bounds = array<i64: 3, 1, 128>}, {pipeline_mode = #tpu.pipeline_mode<synchronous>, transform_indices = @transform_11, window_bounds = array<i64: 128, 512>}, {pipeline_mode = #tpu.pipeline_mode<synchronous>, transform_indices = @transform_12, window_bounds = array<i64: 1, 512>}, {transform_indices = @transform_13, window_bounds = array<i64: 32, 512>}]} {
    %0 = tpu.iota {dimensions = array<i32: 1>} : vector<2x16x128xi32>
    %1 = vector.shape_cast %0 : vector<2x16x128xi32> to vector<32x128xi32>
    %c0 = arith.constant 0 : index
    %c0_0 = arith.constant 0 : index
    %2 = vector.load %arg1[%c0, %c0_0] : memref<32x4xf32, #tpu.memory_space<vmem>>, vector<32x4xf32>
    %3 = arith.truncf %2 : vector<32x4xf32> to vector<32x4xbf16>
    %c0_1 = arith.constant 0 : index
    %c0_2 = arith.constant 0 : index
    %4 = vector.load %arg2[%c0_1, %c0_2] : memref<4x128xbf16, #tpu.memory_space<vmem>>, vector<4x128xbf16>
    %cst = arith.constant dense<0.000000e+00> : vector<32x128xf32>
    %5 = tpu.matmul %3, %4, %cst {dimension_numbers = #tpu.dot_dimension_numbers<[1], [0], [0], [1], [0, 0, 1, 1], [], []>} : vector<32x4xbf16>, vector<4x128xbf16>, vector<32x128xf32> -> vector<32x128xf32>
    %c1_i32 = arith.constant 1 : i32
    %6 = vector.broadcast %c1_i32 : i32 to vector<32x128xi32>
    %7 = arith.cmpi slt, %1, %6 : vector<32x128xi32>
    %c1_i32_3 = arith.constant 1 : i32
    %8 = tpu.dynamic_rotate %5 by %c1_i32_3 dim 0 : vector<32x128xf32>, i32 -> vector<32x128xf32>
    %cst_4 = arith.constant 0.000000e+00 : f32
    %9 = vector.broadcast %cst_4 : f32 to vector<32x128xf32>
    %10 = arith.select %7, %9, %8 : vector<32x128xi1>, vector<32x128xf32>
    %c0_5 = arith.constant 0 : index
    %c0_6 = arith.constant 0 : index
    %11 = vector.load %arg3[%c0_5, %c0_6] : memref<4x128xbf16, #tpu.memory_space<vmem>>, vector<4x128xbf16>
    %cst_7 = arith.constant dense<0.000000e+00> : vector<32x128xf32>
    %12 = tpu.matmul %3, %11, %cst_7 {dimension_numbers = #tpu.dot_dimension_numbers<[1], [0], [0], [1], [0, 0, 1, 1], [], []>} : vector<32x4xbf16>, vector<4x128xbf16>, vector<32x128xf32> -> vector<32x128xf32>
    %13 = arith.addf %10, %12 : vector<32x128xf32>
    %c0_8 = arith.constant 0 : index
    %c0_9 = arith.constant 0 : index
    %14 = vector.load %arg4[%c0_8, %c0_9] : memref<1x128xf32, #tpu.memory_space<vmem>>, vector<1x128xf32>
    %15 = vector.broadcast %14 : vector<1x128xf32> to vector<32x128xf32>
    %16 = arith.addf %13, %15 : vector<32x128xf32>
    %cst_10 = arith.constant 0.000000e+00 : f32
    %17 = vector.broadcast %cst_10 : f32 to vector<32x128xf32>
    %18 = arith.truncf %16 : vector<32x128xf32> to vector<32x128xbf16>
    %c1_i32_11 = arith.constant 1 : i32
    %19 = vector.broadcast %c1_i32_11 : i32 to vector<32x128xi32>
    %20 = arith.cmpi slt, %1, %19 : vector<32x128xi32>
    %c1_i32_12 = arith.constant 1 : i32
    %21 = tpu.dynamic_rotate %16 by %c1_i32_12 dim 0 : vector<32x128xf32>, i32 -> vector<32x128xf32>
    %cst_13 = arith.constant 0.000000e+00 : f32
    %22 = vector.broadcast %cst_13 : f32 to vector<32x128xf32>
    %23 = arith.select %20, %22, %21 : vector<32x128xi1>, vector<32x128xf32>
    %24 = arith.truncf %23 : vector<32x128xf32> to vector<32x128xbf16>
    %c0_14 = arith.constant 0 : index
    %c0_15 = arith.constant 0 : index
    %c0_16 = arith.constant 0 : index
    %25 = vector.load %arg5[%c0_14, %c0_15, %c0_16] : memref<3x128x256xbf16, #tpu.memory_space<vmem>>, vector<1x128x256xbf16>
    %26 = vector.shape_cast %25 : vector<1x128x256xbf16> to vector<128x256xbf16>
    %cst_17 = arith.constant dense<0.000000e+00> : vector<32x256xf32>
    %27 = tpu.matmul %24, %26, %cst_17 {dimension_numbers = #tpu.dot_dimension_numbers<[1], [0], [0], [1], [0, 0, 1, 1], [], []>} : vector<32x128xbf16>, vector<128x256xbf16>, vector<32x256xf32> -> vector<32x256xf32>
    %c0_18 = arith.constant 0 : index
    %c0_19 = arith.constant 0 : index
    %c0_20 = arith.constant 0 : index
    %28 = vector.load %arg6[%c0_18, %c0_19, %c0_20] : memref<3x128x256xbf16, #tpu.memory_space<vmem>>, vector<1x128x256xbf16>
    %29 = vector.shape_cast %28 : vector<1x128x256xbf16> to vector<128x256xbf16>
    %cst_21 = arith.constant dense<0.000000e+00> : vector<32x256xf32>
    %30 = tpu.matmul %18, %29, %cst_21 {dimension_numbers = #tpu.dot_dimension_numbers<[1], [0], [0], [1], [0, 0, 1, 1], [], []>} : vector<32x128xbf16>, vector<128x256xbf16>, vector<32x256xf32> -> vector<32x256xf32>
    %31 = arith.addf %27, %30 : vector<32x256xf32>
    %c0_22 = arith.constant 0 : index
    %c0_23 = arith.constant 0 : index
    %c0_24 = arith.constant 0 : index
    %32 = vector.load %arg7[%c0_22, %c0_23, %c0_24] : memref<3x1x256xf32, #tpu.memory_space<vmem>>, vector<1x1x256xf32>
    %33 = vector.shape_cast %32 : vector<1x1x256xf32> to vector<1x256xf32>
    %34 = vector.broadcast %33 : vector<1x256xf32> to vector<32x256xf32>
    %35 = arith.addf %31, %34 : vector<32x256xf32>
    %36 = vector.extract_strided_slice %35 {offsets = [0, 0], sizes = [32, 128], strides = [1, 1]} : vector<32x256xf32> to vector<32x128xf32>
    %37 = math.tanh %36 : vector<32x128xf32>
    %38 = vector.extract_strided_slice %35 {offsets = [0, 128], sizes = [32, 128], strides = [1, 1]} : vector<32x256xf32> to vector<32x128xf32>
    %39 = arith.negf %38 : vector<32x128xf32>
    %40 = math.exp %39 : vector<32x128xf32>
    %cst_25 = arith.constant 1.000000e+00 : f32
    %41 = vector.broadcast %cst_25 : f32 to vector<32x128xf32>
    %42 = arith.addf %41, %40 : vector<32x128xf32>
    %43 = arith.divf %41, %42 : vector<32x128xf32>
    %44 = arith.mulf %37, %43 : vector<32x128xf32>
    %45 = arith.truncf %44 : vector<32x128xf32> to vector<32x128xbf16>
    %c0_26 = arith.constant 0 : index
    %c0_27 = arith.constant 0 : index
    %c0_28 = arith.constant 0 : index
    %46 = vector.load %arg8[%c0_26, %c0_27, %c0_28] : memref<3x128x128xbf16, #tpu.memory_space<vmem>>, vector<1x128x128xbf16>
    %47 = vector.shape_cast %46 : vector<1x128x128xbf16> to vector<128x128xbf16>
    %cst_29 = arith.constant dense<0.000000e+00> : vector<32x128xf32>
    %48 = tpu.matmul %45, %47, %cst_29 {dimension_numbers = #tpu.dot_dimension_numbers<[1], [0], [0], [1], [0, 0, 1, 1], [], []>} : vector<32x128xbf16>, vector<128x128xbf16>, vector<32x128xf32> -> vector<32x128xf32>
    %c0_30 = arith.constant 0 : index
    %c0_31 = arith.constant 0 : index
    %c0_32 = arith.constant 0 : index
    %49 = vector.load %arg9[%c0_30, %c0_31, %c0_32] : memref<3x1x128xf32, #tpu.memory_space<vmem>>, vector<1x1x128xf32>
    %50 = vector.shape_cast %49 : vector<1x1x128xf32> to vector<1x128xf32>
    %51 = vector.broadcast %50 : vector<1x128xf32> to vector<32x128xf32>
    %52 = arith.addf %48, %51 : vector<32x128xf32>
    %53 = arith.truncf %52 : vector<32x128xf32> to vector<32x128xbf16>
    %c0_33 = arith.constant 0 : index
    %c0_34 = arith.constant 0 : index
    %c0_35 = arith.constant 0 : index
    %54 = vector.load %arg10[%c0_33, %c0_34, %c0_35] : memref<3x128x128xbf16, #tpu.memory_space<vmem>>, vector<1x128x128xbf16>
    %55 = vector.shape_cast %54 : vector<1x128x128xbf16> to vector<128x128xbf16>
    %cst_36 = arith.constant dense<0.000000e+00> : vector<32x128xf32>
    %56 = tpu.matmul %53, %55, %cst_36 {dimension_numbers = #tpu.dot_dimension_numbers<[1], [0], [0], [1], [0, 0, 1, 1], [], []>} : vector<32x128xbf16>, vector<128x128xbf16>, vector<32x128xf32> -> vector<32x128xf32>
    %57 = arith.addf %17, %56 : vector<32x128xf32>
    %c0_37 = arith.constant 0 : index
    %c0_38 = arith.constant 0 : index
    %c0_39 = arith.constant 0 : index
    %58 = vector.load %arg11[%c0_37, %c0_38, %c0_39] : memref<3x1x128xf32, #tpu.memory_space<vmem>>, vector<1x1x128xf32>
    %59 = vector.shape_cast %58 : vector<1x1x128xf32> to vector<1x128xf32>
    %60 = vector.broadcast %59 : vector<1x128xf32> to vector<32x128xf32>
    %61 = arith.addf %57, %60 : vector<32x128xf32>
    %62 = arith.addf %52, %16 : vector<32x128xf32>
    %63 = arith.truncf %62 : vector<32x128xf32> to vector<32x128xbf16>
    %c2_i32 = arith.constant 2 : i32
    %64 = vector.broadcast %c2_i32 : i32 to vector<32x128xi32>
    %65 = arith.cmpi slt, %1, %64 : vector<32x128xi32>
    %c2_i32_40 = arith.constant 2 : i32
    %66 = tpu.dynamic_rotate %62 by %c2_i32_40 dim 0 : vector<32x128xf32>, i32 -> vector<32x128xf32>
    %cst_41 = arith.constant 0.000000e+00 : f32
    %67 = vector.broadcast %cst_41 : f32 to vector<32x128xf32>
    %68 = arith.select %65, %67, %66 : vector<32x128xi1>, vector<32x128xf32>
    %69 = arith.truncf %68 : vector<32x128xf32> to vector<32x128xbf16>
    %c1 = arith.constant 1 : index
    %c0_42 = arith.constant 0 : index
    %c0_43 = arith.constant 0 : index
    %70 = vector.load %arg5[%c1, %c0_42, %c0_43] : memref<3x128x256xbf16, #tpu.memory_space<vmem>>, vector<1x128x256xbf16>
    %71 = vector.shape_cast %70 : vector<1x128x256xbf16> to vector<128x256xbf16>
    %cst_44 = arith.constant dense<0.000000e+00> : vector<32x256xf32>
    %72 = tpu.matmul %69, %71, %cst_44 {dimension_numbers = #tpu.dot_dimension_numbers<[1], [0], [0], [1], [0, 0, 1, 1], [], []>} : vector<32x128xbf16>, vector<128x256xbf16>, vector<32x256xf32> -> vector<32x256xf32>
    %c1_45 = arith.constant 1 : index
    %c0_46 = arith.constant 0 : index
    %c0_47 = arith.constant 0 : index
    %73 = vector.load %arg6[%c1_45, %c0_46, %c0_47] : memref<3x128x256xbf16, #tpu.memory_space<vmem>>, vector<1x128x256xbf16>
    %74 = vector.shape_cast %73 : vector<1x128x256xbf16> to vector<128x256xbf16>
    %cst_48 = arith.constant dense<0.000000e+00> : vector<32x256xf32>
    %75 = tpu.matmul %63, %74, %cst_48 {dimension_numbers = #tpu.dot_dimension_numbers<[1], [0], [0], [1], [0, 0, 1, 1], [], []>} : vector<32x128xbf16>, vector<128x256xbf16>, vector<32x256xf32> -> vector<32x256xf32>
    %76 = arith.addf %72, %75 : vector<32x256xf32>
    %c1_49 = arith.constant 1 : index
    %c0_50 = arith.constant 0 : index
    %c0_51 = arith.constant 0 : index
    %77 = vector.load %arg7[%c1_49, %c0_50, %c0_51] : memref<3x1x256xf32, #tpu.memory_space<vmem>>, vector<1x1x256xf32>
    %78 = vector.shape_cast %77 : vector<1x1x256xf32> to vector<1x256xf32>
    %79 = vector.broadcast %78 : vector<1x256xf32> to vector<32x256xf32>
    %80 = arith.addf %76, %79 : vector<32x256xf32>
    %81 = vector.extract_strided_slice %80 {offsets = [0, 0], sizes = [32, 128], strides = [1, 1]} : vector<32x256xf32> to vector<32x128xf32>
    %82 = math.tanh %81 : vector<32x128xf32>
    %83 = vector.extract_strided_slice %80 {offsets = [0, 128], sizes = [32, 128], strides = [1, 1]} : vector<32x256xf32> to vector<32x128xf32>
    %84 = arith.negf %83 : vector<32x128xf32>
    %85 = math.exp %84 : vector<32x128xf32>
    %cst_52 = arith.constant 1.000000e+00 : f32
    %86 = vector.broadcast %cst_52 : f32 to vector<32x128xf32>
    %87 = arith.addf %86, %85 : vector<32x128xf32>
    %88 = arith.divf %86, %87 : vector<32x128xf32>
    %89 = arith.mulf %82, %88 : vector<32x128xf32>
    %90 = arith.truncf %89 : vector<32x128xf32> to vector<32x128xbf16>
    %c1_53 = arith.constant 1 : index
    %c0_54 = arith.constant 0 : index
    %c0_55 = arith.constant 0 : index
    %91 = vector.load %arg8[%c1_53, %c0_54, %c0_55] : memref<3x128x128xbf16, #tpu.memory_space<vmem>>, vector<1x128x128xbf16>
    %92 = vector.shape_cast %91 : vector<1x128x128xbf16> to vector<128x128xbf16>
    %cst_56 = arith.constant dense<0.000000e+00> : vector<32x128xf32>
    %93 = tpu.matmul %90, %92, %cst_56 {dimension_numbers = #tpu.dot_dimension_numbers<[1], [0], [0], [1], [0, 0, 1, 1], [], []>} : vector<32x128xbf16>, vector<128x128xbf16>, vector<32x128xf32> -> vector<32x128xf32>
    %c1_57 = arith.constant 1 : index
    %c0_58 = arith.constant 0 : index
    %c0_59 = arith.constant 0 : index
    %94 = vector.load %arg9[%c1_57, %c0_58, %c0_59] : memref<3x1x128xf32, #tpu.memory_space<vmem>>, vector<1x1x128xf32>
    %95 = vector.shape_cast %94 : vector<1x1x128xf32> to vector<1x128xf32>
    %96 = vector.broadcast %95 : vector<1x128xf32> to vector<32x128xf32>
    %97 = arith.addf %93, %96 : vector<32x128xf32>
    %98 = arith.truncf %97 : vector<32x128xf32> to vector<32x128xbf16>
    %c1_60 = arith.constant 1 : index
    %c0_61 = arith.constant 0 : index
    %c0_62 = arith.constant 0 : index
    %99 = vector.load %arg10[%c1_60, %c0_61, %c0_62] : memref<3x128x128xbf16, #tpu.memory_space<vmem>>, vector<1x128x128xbf16>
    %100 = vector.shape_cast %99 : vector<1x128x128xbf16> to vector<128x128xbf16>
    %cst_63 = arith.constant dense<0.000000e+00> : vector<32x128xf32>
    %101 = tpu.matmul %98, %100, %cst_63 {dimension_numbers = #tpu.dot_dimension_numbers<[1], [0], [0], [1], [0, 0, 1, 1], [], []>} : vector<32x128xbf16>, vector<128x128xbf16>, vector<32x128xf32> -> vector<32x128xf32>
    %102 = arith.addf %61, %101 : vector<32x128xf32>
    %c1_64 = arith.constant 1 : index
    %c0_65 = arith.constant 0 : index
    %c0_66 = arith.constant 0 : index
    %103 = vector.load %arg11[%c1_64, %c0_65, %c0_66] : memref<3x1x128xf32, #tpu.memory_space<vmem>>, vector<1x1x128xf32>
    %104 = vector.shape_cast %103 : vector<1x1x128xf32> to vector<1x128xf32>
    %105 = vector.broadcast %104 : vector<1x128xf32> to vector<32x128xf32>
    %106 = arith.addf %102, %105 : vector<32x128xf32>
    %107 = arith.addf %97, %62 : vector<32x128xf32>
    %108 = arith.truncf %107 : vector<32x128xf32> to vector<32x128xbf16>
    %c4_i32 = arith.constant 4 : i32
    %109 = vector.broadcast %c4_i32 : i32 to vector<32x128xi32>
    %110 = arith.cmpi slt, %1, %109 : vector<32x128xi32>
    %c4_i32_67 = arith.constant 4 : i32
    %111 = tpu.dynamic_rotate %107 by %c4_i32_67 dim 0 : vector<32x128xf32>, i32 -> vector<32x128xf32>
    %cst_68 = arith.constant 0.000000e+00 : f32
    %112 = vector.broadcast %cst_68 : f32 to vector<32x128xf32>
    %113 = arith.select %110, %112, %111 : vector<32x128xi1>, vector<32x128xf32>
    %114 = arith.truncf %113 : vector<32x128xf32> to vector<32x128xbf16>
    %c2 = arith.constant 2 : index
    %c0_69 = arith.constant 0 : index
    %c0_70 = arith.constant 0 : index
    %115 = vector.load %arg5[%c2, %c0_69, %c0_70] : memref<3x128x256xbf16, #tpu.memory_space<vmem>>, vector<1x128x256xbf16>
    %116 = vector.shape_cast %115 : vector<1x128x256xbf16> to vector<128x256xbf16>
    %cst_71 = arith.constant dense<0.000000e+00> : vector<32x256xf32>
    %117 = tpu.matmul %114, %116, %cst_71 {dimension_numbers = #tpu.dot_dimension_numbers<[1], [0], [0], [1], [0, 0, 1, 1], [], []>} : vector<32x128xbf16>, vector<128x256xbf16>, vector<32x256xf32> -> vector<32x256xf32>
    %c2_72 = arith.constant 2 : index
    %c0_73 = arith.constant 0 : index
    %c0_74 = arith.constant 0 : index
    %118 = vector.load %arg6[%c2_72, %c0_73, %c0_74] : memref<3x128x256xbf16, #tpu.memory_space<vmem>>, vector<1x128x256xbf16>
    %119 = vector.shape_cast %118 : vector<1x128x256xbf16> to vector<128x256xbf16>
    %cst_75 = arith.constant dense<0.000000e+00> : vector<32x256xf32>
    %120 = tpu.matmul %108, %119, %cst_75 {dimension_numbers = #tpu.dot_dimension_numbers<[1], [0], [0], [1], [0, 0, 1, 1], [], []>} : vector<32x128xbf16>, vector<128x256xbf16>, vector<32x256xf32> -> vector<32x256xf32>
    %121 = arith.addf %117, %120 : vector<32x256xf32>
    %c2_76 = arith.constant 2 : index
    %c0_77 = arith.constant 0 : index
    %c0_78 = arith.constant 0 : index
    %122 = vector.load %arg7[%c2_76, %c0_77, %c0_78] : memref<3x1x256xf32, #tpu.memory_space<vmem>>, vector<1x1x256xf32>
    %123 = vector.shape_cast %122 : vector<1x1x256xf32> to vector<1x256xf32>
    %124 = vector.broadcast %123 : vector<1x256xf32> to vector<32x256xf32>
    %125 = arith.addf %121, %124 : vector<32x256xf32>
    %126 = vector.extract_strided_slice %125 {offsets = [0, 0], sizes = [32, 128], strides = [1, 1]} : vector<32x256xf32> to vector<32x128xf32>
    %127 = math.tanh %126 : vector<32x128xf32>
    %128 = vector.extract_strided_slice %125 {offsets = [0, 128], sizes = [32, 128], strides = [1, 1]} : vector<32x256xf32> to vector<32x128xf32>
    %129 = arith.negf %128 : vector<32x128xf32>
    %130 = math.exp %129 : vector<32x128xf32>
    %cst_79 = arith.constant 1.000000e+00 : f32
    %131 = vector.broadcast %cst_79 : f32 to vector<32x128xf32>
    %132 = arith.addf %131, %130 : vector<32x128xf32>
    %133 = arith.divf %131, %132 : vector<32x128xf32>
    %134 = arith.mulf %127, %133 : vector<32x128xf32>
    %135 = arith.truncf %134 : vector<32x128xf32> to vector<32x128xbf16>
    %c2_80 = arith.constant 2 : index
    %c0_81 = arith.constant 0 : index
    %c0_82 = arith.constant 0 : index
    %136 = vector.load %arg8[%c2_80, %c0_81, %c0_82] : memref<3x128x128xbf16, #tpu.memory_space<vmem>>, vector<1x128x128xbf16>
    %137 = vector.shape_cast %136 : vector<1x128x128xbf16> to vector<128x128xbf16>
    %cst_83 = arith.constant dense<0.000000e+00> : vector<32x128xf32>
    %138 = tpu.matmul %135, %137, %cst_83 {dimension_numbers = #tpu.dot_dimension_numbers<[1], [0], [0], [1], [0, 0, 1, 1], [], []>} : vector<32x128xbf16>, vector<128x128xbf16>, vector<32x128xf32> -> vector<32x128xf32>
    %c2_84 = arith.constant 2 : index
    %c0_85 = arith.constant 0 : index
    %c0_86 = arith.constant 0 : index
    %139 = vector.load %arg9[%c2_84, %c0_85, %c0_86] : memref<3x1x128xf32, #tpu.memory_space<vmem>>, vector<1x1x128xf32>
    %140 = vector.shape_cast %139 : vector<1x1x128xf32> to vector<1x128xf32>
    %141 = vector.broadcast %140 : vector<1x128xf32> to vector<32x128xf32>
    %142 = arith.addf %138, %141 : vector<32x128xf32>
    %143 = arith.truncf %142 : vector<32x128xf32> to vector<32x128xbf16>
    %c2_87 = arith.constant 2 : index
    %c0_88 = arith.constant 0 : index
    %c0_89 = arith.constant 0 : index
    %144 = vector.load %arg10[%c2_87, %c0_88, %c0_89] : memref<3x128x128xbf16, #tpu.memory_space<vmem>>, vector<1x128x128xbf16>
    %145 = vector.shape_cast %144 : vector<1x128x128xbf16> to vector<128x128xbf16>
    %cst_90 = arith.constant dense<0.000000e+00> : vector<32x128xf32>
    %146 = tpu.matmul %143, %145, %cst_90 {dimension_numbers = #tpu.dot_dimension_numbers<[1], [0], [0], [1], [0, 0, 1, 1], [], []>} : vector<32x128xbf16>, vector<128x128xbf16>, vector<32x128xf32> -> vector<32x128xf32>
    %147 = arith.addf %106, %146 : vector<32x128xf32>
    %c2_91 = arith.constant 2 : index
    %c0_92 = arith.constant 0 : index
    %c0_93 = arith.constant 0 : index
    %148 = vector.load %arg11[%c2_91, %c0_92, %c0_93] : memref<3x1x128xf32, #tpu.memory_space<vmem>>, vector<1x1x128xf32>
    %149 = vector.shape_cast %148 : vector<1x1x128xf32> to vector<1x128xf32>
    %150 = vector.broadcast %149 : vector<1x128xf32> to vector<32x128xf32>
    %151 = arith.addf %147, %150 : vector<32x128xf32>
    %152 = arith.truncf %151 : vector<32x128xf32> to vector<32x128xbf16>
    %c0_94 = arith.constant 0 : index
    %c0_95 = arith.constant 0 : index
    %153 = vector.load %arg12[%c0_94, %c0_95] : memref<128x512xbf16, #tpu.memory_space<vmem>>, vector<128x512xbf16>
    %cst_96 = arith.constant dense<0.000000e+00> : vector<32x512xf32>
    %154 = tpu.matmul %152, %153, %cst_96 {dimension_numbers = #tpu.dot_dimension_numbers<[1], [0], [0], [1], [0, 0, 1, 1], [], []>} : vector<32x128xbf16>, vector<128x512xbf16>, vector<32x512xf32> -> vector<32x512xf32>
    %c0_97 = arith.constant 0 : index
    %c0_98 = arith.constant 0 : index
    %155 = vector.load %arg13[%c0_97, %c0_98] : memref<1x512xf32, #tpu.memory_space<vmem>>, vector<1x512xf32>
    %156 = vector.broadcast %155 : vector<1x512xf32> to vector<32x512xf32>
    %157 = arith.addf %154, %156 : vector<32x512xf32>
    %c0_99 = arith.constant 0 : index
    %c0_100 = arith.constant 0 : index
    %158 = vector.load %arg14[%c0_99, %c0_100] : memref<32x512xf32, #tpu.memory_space<vmem>>, vector<32x512xf32>
    tpu.vector_store %arg14[%c0_99, %c0_100], %157 {strides = array<i32>} : memref<32x512xf32, #tpu.memory_space<vmem>>, vector<32x512xf32>,
    return
  }
  func.func @transform_0(%arg0: i32) -> (i32, i32) {
    %c0_i32 = arith.constant 0 : i32
    %c0_i32_0 = arith.constant 0 : i32
    return %arg0, %c0_i32 : i32, i32
  }
  func.func @transform_1(%arg0: i32) -> (i32, i32) {
    %c0_i32 = arith.constant 0 : i32
    %c0_i32_0 = arith.constant 0 : i32
    %c0_i32_1 = arith.constant 0 : i32
    return %c0_i32, %c0_i32_0 : i32, i32
  }
  func.func @transform_2(%arg0: i32) -> (i32, i32) {
    %c0_i32 = arith.constant 0 : i32
    %c0_i32_0 = arith.constant 0 : i32
    %c0_i32_1 = arith.constant 0 : i32
    return %c0_i32, %c0_i32_0 : i32, i32
  }
  func.func @transform_3(%arg0: i32) -> (i32, i32) {
    %c0_i32 = arith.constant 0 : i32
    %c0_i32_0 = arith.constant 0 : i32
    %c0_i32_1 = arith.constant 0 : i32
    return %c0_i32, %c0_i32_0 : i32, i32
  }
  func.func @transform_4(%arg0: i32) -> (i32, i32, i32) {
    %c0_i32 = arith.constant 0 : i32
    %c0_i32_0 = arith.constant 0 : i32
    %c0_i32_1 = arith.constant 0 : i32
    %c0_i32_2 = arith.constant 0 : i32
    return %c0_i32, %c0_i32_0, %c0_i32_1 : i32, i32, i32
  }
  func.func @transform_5(%arg0: i32) -> (i32, i32, i32) {
    %c0_i32 = arith.constant 0 : i32
    %c0_i32_0 = arith.constant 0 : i32
    %c0_i32_1 = arith.constant 0 : i32
    %c0_i32_2 = arith.constant 0 : i32
    return %c0_i32, %c0_i32_0, %c0_i32_1 : i32, i32, i32
  }
  func.func @transform_6(%arg0: i32) -> (i32, i32, i32) {
    %c0_i32 = arith.constant 0 : i32
    %c0_i32_0 = arith.constant 0 : i32
    %c0_i32_1 = arith.constant 0 : i32
    %c0_i32_2 = arith.constant 0 : i32
    return %c0_i32, %c0_i32_0, %c0_i32_1 : i32, i32, i32
  }
  func.func @transform_7(%arg0: i32) -> (i32, i32, i32) {
    %c0_i32 = arith.constant 0 : i32
    %c0_i32_0 = arith.constant 0 : i32
    %c0_i32_1 = arith.constant 0 : i32
    %c0_i32_2 = arith.constant 0 : i32
    return %c0_i32, %c0_i32_0, %c0_i32_1 : i32, i32, i32
  }
  func.func @transform_8(%arg0: i32) -> (i32, i32, i32) {
    %c0_i32 = arith.constant 0 : i32
    %c0_i32_0 = arith.constant 0 : i32
    %c0_i32_1 = arith.constant 0 : i32
    %c0_i32_2 = arith.constant 0 : i32
    return %c0_i32, %c0_i32_0, %c0_i32_1 : i32, i32, i32
  }
  func.func @transform_9(%arg0: i32) -> (i32, i32, i32) {
    %c0_i32 = arith.constant 0 : i32
    %c0_i32_0 = arith.constant 0 : i32
    %c0_i32_1 = arith.constant 0 : i32
    %c0_i32_2 = arith.constant 0 : i32
    return %c0_i32, %c0_i32_0, %c0_i32_1 : i32, i32, i32
  }
  func.func @transform_10(%arg0: i32) -> (i32, i32, i32) {
    %c0_i32 = arith.constant 0 : i32
    %c0_i32_0 = arith.constant 0 : i32
    %c0_i32_1 = arith.constant 0 : i32
    %c0_i32_2 = arith.constant 0 : i32
    return %c0_i32, %c0_i32_0, %c0_i32_1 : i32, i32, i32
  }
  func.func @transform_11(%arg0: i32) -> (i32, i32) {
    %c0_i32 = arith.constant 0 : i32
    %c0_i32_0 = arith.constant 0 : i32
    %c0_i32_1 = arith.constant 0 : i32
    return %c0_i32, %c0_i32_0 : i32, i32
  }
  func.func @transform_12(%arg0: i32) -> (i32, i32) {
    %c0_i32 = arith.constant 0 : i32
    %c0_i32_0 = arith.constant 0 : i32
    %c0_i32_1 = arith.constant 0 : i32
    return %c0_i32, %c0_i32_0 : i32, i32
  }
  func.func @transform_13(%arg0: i32) -> (i32, i32) {
    %c0_i32 = arith.constant 0 : i32
    %c0_i32_0 = arith.constant 0 : i32
    return %arg0, %c0_i32 : i32, i32
  }
}

module attributes {stable_mosaic.version = 11 : i64} {
  func.func @_lstm_head_kernel(%arg0: i32, %arg1: memref<2x8x512xf32, #tpu.memory_space<vmem>>, %arg2: memref<128x512xbf16, #tpu.memory_space<vmem>>, %arg3: memref<128x1xbf16, #tpu.memory_space<vmem>>, %arg4: memref<1x1xf32, #tpu.memory_space<vmem>>, %arg5: memref<2x1xf32, #tpu.memory_space<vmem>>, %arg6: memref<2x128xf32, #tpu.memory_space<vmem>>, %arg7: memref<2x128xf32, #tpu.memory_space<vmem>>) attributes {dimension_semantics = [#tpu.dimension_semantics<arbitrary>], iteration_bounds = array<i64: 2>, scalar_prefetch = 0 : i64, scratch_operands = 2 : i64, tpu.core_type = #tpu.core_type<tc>, window_params = [{transform_indices = @transform_0, window_bounds = array<i64: 2, 8, 512>}, {pipeline_mode = #tpu.pipeline_mode<synchronous>, transform_indices = @transform_1, window_bounds = array<i64: 128, 512>}, {pipeline_mode = #tpu.pipeline_mode<synchronous>, transform_indices = @transform_2, window_bounds = array<i64: 128, 1>}, {pipeline_mode = #tpu.pipeline_mode<synchronous>, transform_indices = @transform_3, window_bounds = array<i64: 1, 1>}, {pipeline_mode = #tpu.pipeline_mode<synchronous>, transform_indices = @transform_4, window_bounds = array<i64: 2, 1>}]} {
    %c0_i32 = arith.constant 0 : i32
    %0 = arith.cmpi eq, %arg0, %c0_i32 : i32
    %1 = arith.extui %0 : i1 to i32
    %c0_i32_0 = arith.constant 0 : i32
    %2 = arith.cmpi ne, %1, %c0_i32_0 : i32
    scf.if %2 {
      %cst_59 = arith.constant 0.000000e+00 : f32
      %251 = vector.broadcast %cst_59 : f32 to vector<2x128xf32>
      %c0_60 = arith.constant 0 : index
      %c0_61 = arith.constant 0 : index
      %252 = vector.load %arg6[%c0_60, %c0_61] : memref<2x128xf32, #tpu.memory_space<vmem>>, vector<2x128xf32>
      tpu.vector_store %arg6[%c0_60, %c0_61], %251 {strides = array<i32>} : memref<2x128xf32, #tpu.memory_space<vmem>>, vector<2x128xf32>,
      %cst_62 = arith.constant 0.000000e+00 : f32
      %253 = vector.broadcast %cst_62 : f32 to vector<2x128xf32>
      %c0_63 = arith.constant 0 : index
      %c0_64 = arith.constant 0 : index
      %254 = vector.load %arg7[%c0_63, %c0_64] : memref<2x128xf32, #tpu.memory_space<vmem>>, vector<2x128xf32>
      tpu.vector_store %arg7[%c0_63, %c0_64], %253 {strides = array<i32>} : memref<2x128xf32, #tpu.memory_space<vmem>>, vector<2x128xf32>,
    } else {
    }
    %c0 = arith.constant 0 : index
    %c0_1 = arith.constant 0 : index
    %3 = vector.load %arg6[%c0, %c0_1] : memref<2x128xf32, #tpu.memory_space<vmem>>, vector<2x128xf32>
    %c0_2 = arith.constant 0 : index
    %c0_3 = arith.constant 0 : index
    %4 = vector.load %arg7[%c0_2, %c0_3] : memref<2x128xf32, #tpu.memory_space<vmem>>, vector<2x128xf32>
    %c0_4 = arith.constant 0 : index
    %c0_5 = arith.constant 0 : index
    %5 = vector.load %arg2[%c0_4, %c0_5] : memref<128x512xbf16, #tpu.memory_space<vmem>>, vector<128x512xbf16>
    %c0_6 = arith.constant 0 : index
    %c0_7 = arith.constant 0 : index
    %c0_8 = arith.constant 0 : index
    %6 = vector.load %arg1[%c0_6, %c0_7, %c0_8] : memref<2x8x512xf32, #tpu.memory_space<vmem>>, vector<2x1x512xf32>
    %7 = vector.shape_cast %6 : vector<2x1x512xf32> to vector<2x512xf32>
    %8 = arith.truncf %3 : vector<2x128xf32> to vector<2x128xbf16>
    %cst = arith.constant dense<0.000000e+00> : vector<2x512xf32>
    %9 = tpu.matmul %8, %5, %cst {dimension_numbers = #tpu.dot_dimension_numbers<[1], [0], [0], [1], [0, 0, 1, 1], [], []>} : vector<2x128xbf16>, vector<128x512xbf16>, vector<2x512xf32> -> vector<2x512xf32>
    %10 = arith.addf %7, %9 : vector<2x512xf32>
    %11 = vector.extract_strided_slice %10 {offsets = [0, 0], sizes = [2, 128], strides = [1, 1]} : vector<2x512xf32> to vector<2x128xf32>
    %12 = arith.negf %11 : vector<2x128xf32>
    %13 = math.exp %12 : vector<2x128xf32>
    %cst_9 = arith.constant 1.000000e+00 : f32
    %14 = vector.broadcast %cst_9 : f32 to vector<2x128xf32>
    %15 = arith.addf %14, %13 : vector<2x128xf32>
    %16 = arith.divf %14, %15 : vector<2x128xf32>
    %17 = vector.extract_strided_slice %10 {offsets = [0, 128], sizes = [2, 128], strides = [1, 1]} : vector<2x512xf32> to vector<2x128xf32>
    %18 = arith.negf %17 : vector<2x128xf32>
    %19 = math.exp %18 : vector<2x128xf32>
    %cst_10 = arith.constant 1.000000e+00 : f32
    %20 = vector.broadcast %cst_10 : f32 to vector<2x128xf32>
    %21 = arith.addf %20, %19 : vector<2x128xf32>
    %22 = arith.divf %20, %21 : vector<2x128xf32>
    %23 = vector.extract_strided_slice %10 {offsets = [0, 256], sizes = [2, 128], strides = [1, 1]} : vector<2x512xf32> to vector<2x128xf32>
    %24 = math.tanh %23 : vector<2x128xf32>
    %25 = vector.extract_strided_slice %10 {offsets = [0, 384], sizes = [2, 128], strides = [1, 1]} : vector<2x512xf32> to vector<2x128xf32>
    %26 = arith.negf %25 : vector<2x128xf32>
    %27 = math.exp %26 : vector<2x128xf32>
    %cst_11 = arith.constant 1.000000e+00 : f32
    %28 = vector.broadcast %cst_11 : f32 to vector<2x128xf32>
    %29 = arith.addf %28, %27 : vector<2x128xf32>
    %30 = arith.divf %28, %29 : vector<2x128xf32>
    %31 = arith.mulf %22, %4 : vector<2x128xf32>
    %32 = arith.mulf %16, %24 : vector<2x128xf32>
    %33 = arith.addf %31, %32 : vector<2x128xf32>
    %34 = math.tanh %33 : vector<2x128xf32>
    %35 = arith.mulf %30, %34 : vector<2x128xf32>
    %c0_12 = arith.constant 0 : index
    %c1 = arith.constant 1 : index
    %c0_13 = arith.constant 0 : index
    %36 = vector.load %arg1[%c0_12, %c1, %c0_13] : memref<2x8x512xf32, #tpu.memory_space<vmem>>, vector<2x1x512xf32>
    %37 = vector.shape_cast %36 : vector<2x1x512xf32> to vector<2x512xf32>
    %38 = arith.truncf %35 : vector<2x128xf32> to vector<2x128xbf16>
    %cst_14 = arith.constant dense<0.000000e+00> : vector<2x512xf32>
    %39 = tpu.matmul %38, %5, %cst_14 {dimension_numbers = #tpu.dot_dimension_numbers<[1], [0], [0], [1], [0, 0, 1, 1], [], []>} : vector<2x128xbf16>, vector<128x512xbf16>, vector<2x512xf32> -> vector<2x512xf32>
    %40 = arith.addf %37, %39 : vector<2x512xf32>
    %41 = vector.extract_strided_slice %40 {offsets = [0, 0], sizes = [2, 128], strides = [1, 1]} : vector<2x512xf32> to vector<2x128xf32>
    %42 = arith.negf %41 : vector<2x128xf32>
    %43 = math.exp %42 : vector<2x128xf32>
    %cst_15 = arith.constant 1.000000e+00 : f32
    %44 = vector.broadcast %cst_15 : f32 to vector<2x128xf32>
    %45 = arith.addf %44, %43 : vector<2x128xf32>
    %46 = arith.divf %44, %45 : vector<2x128xf32>
    %47 = vector.extract_strided_slice %40 {offsets = [0, 128], sizes = [2, 128], strides = [1, 1]} : vector<2x512xf32> to vector<2x128xf32>
    %48 = arith.negf %47 : vector<2x128xf32>
    %49 = math.exp %48 : vector<2x128xf32>
    %cst_16 = arith.constant 1.000000e+00 : f32
    %50 = vector.broadcast %cst_16 : f32 to vector<2x128xf32>
    %51 = arith.addf %50, %49 : vector<2x128xf32>
    %52 = arith.divf %50, %51 : vector<2x128xf32>
    %53 = vector.extract_strided_slice %40 {offsets = [0, 256], sizes = [2, 128], strides = [1, 1]} : vector<2x512xf32> to vector<2x128xf32>
    %54 = math.tanh %53 : vector<2x128xf32>
    %55 = vector.extract_strided_slice %40 {offsets = [0, 384], sizes = [2, 128], strides = [1, 1]} : vector<2x512xf32> to vector<2x128xf32>
    %56 = arith.negf %55 : vector<2x128xf32>
    %57 = math.exp %56 : vector<2x128xf32>
    %cst_17 = arith.constant 1.000000e+00 : f32
    %58 = vector.broadcast %cst_17 : f32 to vector<2x128xf32>
    %59 = arith.addf %58, %57 : vector<2x128xf32>
    %60 = arith.divf %58, %59 : vector<2x128xf32>
    %61 = arith.mulf %52, %33 : vector<2x128xf32>
    %62 = arith.mulf %46, %54 : vector<2x128xf32>
    %63 = arith.addf %61, %62 : vector<2x128xf32>
    %64 = math.tanh %63 : vector<2x128xf32>
    %65 = arith.mulf %60, %64 : vector<2x128xf32>
    %c0_18 = arith.constant 0 : index
    %c2 = arith.constant 2 : index
    %c0_19 = arith.constant 0 : index
    %66 = vector.load %arg1[%c0_18, %c2, %c0_19] : memref<2x8x512xf32, #tpu.memory_space<vmem>>, vector<2x1x512xf32>
    %67 = vector.shape_cast %66 : vector<2x1x512xf32> to vector<2x512xf32>
    %68 = arith.truncf %65 : vector<2x128xf32> to vector<2x128xbf16>
    %cst_20 = arith.constant dense<0.000000e+00> : vector<2x512xf32>
    %69 = tpu.matmul %68, %5, %cst_20 {dimension_numbers = #tpu.dot_dimension_numbers<[1], [0], [0], [1], [0, 0, 1, 1], [], []>} : vector<2x128xbf16>, vector<128x512xbf16>, vector<2x512xf32> -> vector<2x512xf32>
    %70 = arith.addf %67, %69 : vector<2x512xf32>
    %71 = vector.extract_strided_slice %70 {offsets = [0, 0], sizes = [2, 128], strides = [1, 1]} : vector<2x512xf32> to vector<2x128xf32>
    %72 = arith.negf %71 : vector<2x128xf32>
    %73 = math.exp %72 : vector<2x128xf32>
    %cst_21 = arith.constant 1.000000e+00 : f32
    %74 = vector.broadcast %cst_21 : f32 to vector<2x128xf32>
    %75 = arith.addf %74, %73 : vector<2x128xf32>
    %76 = arith.divf %74, %75 : vector<2x128xf32>
    %77 = vector.extract_strided_slice %70 {offsets = [0, 128], sizes = [2, 128], strides = [1, 1]} : vector<2x512xf32> to vector<2x128xf32>
    %78 = arith.negf %77 : vector<2x128xf32>
    %79 = math.exp %78 : vector<2x128xf32>
    %cst_22 = arith.constant 1.000000e+00 : f32
    %80 = vector.broadcast %cst_22 : f32 to vector<2x128xf32>
    %81 = arith.addf %80, %79 : vector<2x128xf32>
    %82 = arith.divf %80, %81 : vector<2x128xf32>
    %83 = vector.extract_strided_slice %70 {offsets = [0, 256], sizes = [2, 128], strides = [1, 1]} : vector<2x512xf32> to vector<2x128xf32>
    %84 = math.tanh %83 : vector<2x128xf32>
    %85 = vector.extract_strided_slice %70 {offsets = [0, 384], sizes = [2, 128], strides = [1, 1]} : vector<2x512xf32> to vector<2x128xf32>
    %86 = arith.negf %85 : vector<2x128xf32>
    %87 = math.exp %86 : vector<2x128xf32>
    %cst_23 = arith.constant 1.000000e+00 : f32
    %88 = vector.broadcast %cst_23 : f32 to vector<2x128xf32>
    %89 = arith.addf %88, %87 : vector<2x128xf32>
    %90 = arith.divf %88, %89 : vector<2x128xf32>
    %91 = arith.mulf %82, %63 : vector<2x128xf32>
    %92 = arith.mulf %76, %84 : vector<2x128xf32>
    %93 = arith.addf %91, %92 : vector<2x128xf32>
    %94 = math.tanh %93 : vector<2x128xf32>
    %95 = arith.mulf %90, %94 : vector<2x128xf32>
    %c0_24 = arith.constant 0 : index
    %c3 = arith.constant 3 : index
    %c0_25 = arith.constant 0 : index
    %96 = vector.load %arg1[%c0_24, %c3, %c0_25] : memref<2x8x512xf32, #tpu.memory_space<vmem>>, vector<2x1x512xf32>
    %97 = vector.shape_cast %96 : vector<2x1x512xf32> to vector<2x512xf32>
    %98 = arith.truncf %95 : vector<2x128xf32> to vector<2x128xbf16>
    %cst_26 = arith.constant dense<0.000000e+00> : vector<2x512xf32>
    %99 = tpu.matmul %98, %5, %cst_26 {dimension_numbers = #tpu.dot_dimension_numbers<[1], [0], [0], [1], [0, 0, 1, 1], [], []>} : vector<2x128xbf16>, vector<128x512xbf16>, vector<2x512xf32> -> vector<2x512xf32>
    %100 = arith.addf %97, %99 : vector<2x512xf32>
    %101 = vector.extract_strided_slice %100 {offsets = [0, 0], sizes = [2, 128], strides = [1, 1]} : vector<2x512xf32> to vector<2x128xf32>
    %102 = arith.negf %101 : vector<2x128xf32>
    %103 = math.exp %102 : vector<2x128xf32>
    %cst_27 = arith.constant 1.000000e+00 : f32
    %104 = vector.broadcast %cst_27 : f32 to vector<2x128xf32>
    %105 = arith.addf %104, %103 : vector<2x128xf32>
    %106 = arith.divf %104, %105 : vector<2x128xf32>
    %107 = vector.extract_strided_slice %100 {offsets = [0, 128], sizes = [2, 128], strides = [1, 1]} : vector<2x512xf32> to vector<2x128xf32>
    %108 = arith.negf %107 : vector<2x128xf32>
    %109 = math.exp %108 : vector<2x128xf32>
    %cst_28 = arith.constant 1.000000e+00 : f32
    %110 = vector.broadcast %cst_28 : f32 to vector<2x128xf32>
    %111 = arith.addf %110, %109 : vector<2x128xf32>
    %112 = arith.divf %110, %111 : vector<2x128xf32>
    %113 = vector.extract_strided_slice %100 {offsets = [0, 256], sizes = [2, 128], strides = [1, 1]} : vector<2x512xf32> to vector<2x128xf32>
    %114 = math.tanh %113 : vector<2x128xf32>
    %115 = vector.extract_strided_slice %100 {offsets = [0, 384], sizes = [2, 128], strides = [1, 1]} : vector<2x512xf32> to vector<2x128xf32>
    %116 = arith.negf %115 : vector<2x128xf32>
    %117 = math.exp %116 : vector<2x128xf32>
    %cst_29 = arith.constant 1.000000e+00 : f32
    %118 = vector.broadcast %cst_29 : f32 to vector<2x128xf32>
    %119 = arith.addf %118, %117 : vector<2x128xf32>
    %120 = arith.divf %118, %119 : vector<2x128xf32>
    %121 = arith.mulf %112, %93 : vector<2x128xf32>
    %122 = arith.mulf %106, %114 : vector<2x128xf32>
    %123 = arith.addf %121, %122 : vector<2x128xf32>
    %124 = math.tanh %123 : vector<2x128xf32>
    %125 = arith.mulf %120, %124 : vector<2x128xf32>
    %c0_30 = arith.constant 0 : index
    %c4 = arith.constant 4 : index
    %c0_31 = arith.constant 0 : index
    %126 = vector.load %arg1[%c0_30, %c4, %c0_31] : memref<2x8x512xf32, #tpu.memory_space<vmem>>, vector<2x1x512xf32>
    %127 = vector.shape_cast %126 : vector<2x1x512xf32> to vector<2x512xf32>
    %128 = arith.truncf %125 : vector<2x128xf32> to vector<2x128xbf16>
    %cst_32 = arith.constant dense<0.000000e+00> : vector<2x512xf32>
    %129 = tpu.matmul %128, %5, %cst_32 {dimension_numbers = #tpu.dot_dimension_numbers<[1], [0], [0], [1], [0, 0, 1, 1], [], []>} : vector<2x128xbf16>, vector<128x512xbf16>, vector<2x512xf32> -> vector<2x512xf32>
    %130 = arith.addf %127, %129 : vector<2x512xf32>
    %131 = vector.extract_strided_slice %130 {offsets = [0, 0], sizes = [2, 128], strides = [1, 1]} : vector<2x512xf32> to vector<2x128xf32>
    %132 = arith.negf %131 : vector<2x128xf32>
    %133 = math.exp %132 : vector<2x128xf32>
    %cst_33 = arith.constant 1.000000e+00 : f32
    %134 = vector.broadcast %cst_33 : f32 to vector<2x128xf32>
    %135 = arith.addf %134, %133 : vector<2x128xf32>
    %136 = arith.divf %134, %135 : vector<2x128xf32>
    %137 = vector.extract_strided_slice %130 {offsets = [0, 128], sizes = [2, 128], strides = [1, 1]} : vector<2x512xf32> to vector<2x128xf32>
    %138 = arith.negf %137 : vector<2x128xf32>
    %139 = math.exp %138 : vector<2x128xf32>
    %cst_34 = arith.constant 1.000000e+00 : f32
    %140 = vector.broadcast %cst_34 : f32 to vector<2x128xf32>
    %141 = arith.addf %140, %139 : vector<2x128xf32>
    %142 = arith.divf %140, %141 : vector<2x128xf32>
    %143 = vector.extract_strided_slice %130 {offsets = [0, 256], sizes = [2, 128], strides = [1, 1]} : vector<2x512xf32> to vector<2x128xf32>
    %144 = math.tanh %143 : vector<2x128xf32>
    %145 = vector.extract_strided_slice %130 {offsets = [0, 384], sizes = [2, 128], strides = [1, 1]} : vector<2x512xf32> to vector<2x128xf32>
    %146 = arith.negf %145 : vector<2x128xf32>
    %147 = math.exp %146 : vector<2x128xf32>
    %cst_35 = arith.constant 1.000000e+00 : f32
    %148 = vector.broadcast %cst_35 : f32 to vector<2x128xf32>
    %149 = arith.addf %148, %147 : vector<2x128xf32>
    %150 = arith.divf %148, %149 : vector<2x128xf32>
    %151 = arith.mulf %142, %123 : vector<2x128xf32>
    %152 = arith.mulf %136, %144 : vector<2x128xf32>
    %153 = arith.addf %151, %152 : vector<2x128xf32>
    %154 = math.tanh %153 : vector<2x128xf32>
    %155 = arith.mulf %150, %154 : vector<2x128xf32>
    %c0_36 = arith.constant 0 : index
    %c5 = arith.constant 5 : index
    %c0_37 = arith.constant 0 : index
    %156 = vector.load %arg1[%c0_36, %c5, %c0_37] : memref<2x8x512xf32, #tpu.memory_space<vmem>>, vector<2x1x512xf32>
    %157 = vector.shape_cast %156 : vector<2x1x512xf32> to vector<2x512xf32>
    %158 = arith.truncf %155 : vector<2x128xf32> to vector<2x128xbf16>
    %cst_38 = arith.constant dense<0.000000e+00> : vector<2x512xf32>
    %159 = tpu.matmul %158, %5, %cst_38 {dimension_numbers = #tpu.dot_dimension_numbers<[1], [0], [0], [1], [0, 0, 1, 1], [], []>} : vector<2x128xbf16>, vector<128x512xbf16>, vector<2x512xf32> -> vector<2x512xf32>
    %160 = arith.addf %157, %159 : vector<2x512xf32>
    %161 = vector.extract_strided_slice %160 {offsets = [0, 0], sizes = [2, 128], strides = [1, 1]} : vector<2x512xf32> to vector<2x128xf32>
    %162 = arith.negf %161 : vector<2x128xf32>
    %163 = math.exp %162 : vector<2x128xf32>
    %cst_39 = arith.constant 1.000000e+00 : f32
    %164 = vector.broadcast %cst_39 : f32 to vector<2x128xf32>
    %165 = arith.addf %164, %163 : vector<2x128xf32>
    %166 = arith.divf %164, %165 : vector<2x128xf32>
    %167 = vector.extract_strided_slice %160 {offsets = [0, 128], sizes = [2, 128], strides = [1, 1]} : vector<2x512xf32> to vector<2x128xf32>
    %168 = arith.negf %167 : vector<2x128xf32>
    %169 = math.exp %168 : vector<2x128xf32>
    %cst_40 = arith.constant 1.000000e+00 : f32
    %170 = vector.broadcast %cst_40 : f32 to vector<2x128xf32>
    %171 = arith.addf %170, %169 : vector<2x128xf32>
    %172 = arith.divf %170, %171 : vector<2x128xf32>
    %173 = vector.extract_strided_slice %160 {offsets = [0, 256], sizes = [2, 128], strides = [1, 1]} : vector<2x512xf32> to vector<2x128xf32>
    %174 = math.tanh %173 : vector<2x128xf32>
    %175 = vector.extract_strided_slice %160 {offsets = [0, 384], sizes = [2, 128], strides = [1, 1]} : vector<2x512xf32> to vector<2x128xf32>
    %176 = arith.negf %175 : vector<2x128xf32>
    %177 = math.exp %176 : vector<2x128xf32>
    %cst_41 = arith.constant 1.000000e+00 : f32
    %178 = vector.broadcast %cst_41 : f32 to vector<2x128xf32>
    %179 = arith.addf %178, %177 : vector<2x128xf32>
    %180 = arith.divf %178, %179 : vector<2x128xf32>
    %181 = arith.mulf %172, %153 : vector<2x128xf32>
    %182 = arith.mulf %166, %174 : vector<2x128xf32>
    %183 = arith.addf %181, %182 : vector<2x128xf32>
    %184 = math.tanh %183 : vector<2x128xf32>
    %185 = arith.mulf %180, %184 : vector<2x128xf32>
    %c0_42 = arith.constant 0 : index
    %c6 = arith.constant 6 : index
    %c0_43 = arith.constant 0 : index
    %186 = vector.load %arg1[%c0_42, %c6, %c0_43] : memref<2x8x512xf32, #tpu.memory_space<vmem>>, vector<2x1x512xf32>
    %187 = vector.shape_cast %186 : vector<2x1x512xf32> to vector<2x512xf32>
    %188 = arith.truncf %185 : vector<2x128xf32> to vector<2x128xbf16>
    %cst_44 = arith.constant dense<0.000000e+00> : vector<2x512xf32>
    %189 = tpu.matmul %188, %5, %cst_44 {dimension_numbers = #tpu.dot_dimension_numbers<[1], [0], [0], [1], [0, 0, 1, 1], [], []>} : vector<2x128xbf16>, vector<128x512xbf16>, vector<2x512xf32> -> vector<2x512xf32>
    %190 = arith.addf %187, %189 : vector<2x512xf32>
    %191 = vector.extract_strided_slice %190 {offsets = [0, 0], sizes = [2, 128], strides = [1, 1]} : vector<2x512xf32> to vector<2x128xf32>
    %192 = arith.negf %191 : vector<2x128xf32>
    %193 = math.exp %192 : vector<2x128xf32>
    %cst_45 = arith.constant 1.000000e+00 : f32
    %194 = vector.broadcast %cst_45 : f32 to vector<2x128xf32>
    %195 = arith.addf %194, %193 : vector<2x128xf32>
    %196 = arith.divf %194, %195 : vector<2x128xf32>
    %197 = vector.extract_strided_slice %190 {offsets = [0, 128], sizes = [2, 128], strides = [1, 1]} : vector<2x512xf32> to vector<2x128xf32>
    %198 = arith.negf %197 : vector<2x128xf32>
    %199 = math.exp %198 : vector<2x128xf32>
    %cst_46 = arith.constant 1.000000e+00 : f32
    %200 = vector.broadcast %cst_46 : f32 to vector<2x128xf32>
    %201 = arith.addf %200, %199 : vector<2x128xf32>
    %202 = arith.divf %200, %201 : vector<2x128xf32>
    %203 = vector.extract_strided_slice %190 {offsets = [0, 256], sizes = [2, 128], strides = [1, 1]} : vector<2x512xf32> to vector<2x128xf32>
    %204 = math.tanh %203 : vector<2x128xf32>
    %205 = vector.extract_strided_slice %190 {offsets = [0, 384], sizes = [2, 128], strides = [1, 1]} : vector<2x512xf32> to vector<2x128xf32>
    %206 = arith.negf %205 : vector<2x128xf32>
    %207 = math.exp %206 : vector<2x128xf32>
    %cst_47 = arith.constant 1.000000e+00 : f32
    %208 = vector.broadcast %cst_47 : f32 to vector<2x128xf32>
    %209 = arith.addf %208, %207 : vector<2x128xf32>
    %210 = arith.divf %208, %209 : vector<2x128xf32>
    %211 = arith.mulf %202, %183 : vector<2x128xf32>
    %212 = arith.mulf %196, %204 : vector<2x128xf32>
    %213 = arith.addf %211, %212 : vector<2x128xf32>
    %214 = math.tanh %213 : vector<2x128xf32>
    %215 = arith.mulf %210, %214 : vector<2x128xf32>
    %c0_48 = arith.constant 0 : index
    %c7 = arith.constant 7 : index
    %c0_49 = arith.constant 0 : index
    %216 = vector.load %arg1[%c0_48, %c7, %c0_49] : memref<2x8x512xf32, #tpu.memory_space<vmem>>, vector<2x1x512xf32>
    %217 = vector.shape_cast %216 : vector<2x1x512xf32> to vector<2x512xf32>
    %218 = arith.truncf %215 : vector<2x128xf32> to vector<2x128xbf16>
    %cst_50 = arith.constant dense<0.000000e+00> : vector<2x512xf32>
    %219 = tpu.matmul %218, %5, %cst_50 {dimension_numbers = #tpu.dot_dimension_numbers<[1], [0], [0], [1], [0, 0, 1, 1], [], []>} : vector<2x128xbf16>, vector<128x512xbf16>, vector<2x512xf32> -> vector<2x512xf32>
    %220 = arith.addf %217, %219 : vector<2x512xf32>
    %221 = vector.extract_strided_slice %220 {offsets = [0, 0], sizes = [2, 128], strides = [1, 1]} : vector<2x512xf32> to vector<2x128xf32>
    %222 = arith.negf %221 : vector<2x128xf32>
    %223 = math.exp %222 : vector<2x128xf32>
    %cst_51 = arith.constant 1.000000e+00 : f32
    %224 = vector.broadcast %cst_51 : f32 to vector<2x128xf32>
    %225 = arith.addf %224, %223 : vector<2x128xf32>
    %226 = arith.divf %224, %225 : vector<2x128xf32>
    %227 = vector.extract_strided_slice %220 {offsets = [0, 128], sizes = [2, 128], strides = [1, 1]} : vector<2x512xf32> to vector<2x128xf32>
    %228 = arith.negf %227 : vector<2x128xf32>
    %229 = math.exp %228 : vector<2x128xf32>
    %cst_52 = arith.constant 1.000000e+00 : f32
    %230 = vector.broadcast %cst_52 : f32 to vector<2x128xf32>
    %231 = arith.addf %230, %229 : vector<2x128xf32>
    %232 = arith.divf %230, %231 : vector<2x128xf32>
    %233 = vector.extract_strided_slice %220 {offsets = [0, 256], sizes = [2, 128], strides = [1, 1]} : vector<2x512xf32> to vector<2x128xf32>
    %234 = math.tanh %233 : vector<2x128xf32>
    %235 = vector.extract_strided_slice %220 {offsets = [0, 384], sizes = [2, 128], strides = [1, 1]} : vector<2x512xf32> to vector<2x128xf32>
    %236 = arith.negf %235 : vector<2x128xf32>
    %237 = math.exp %236 : vector<2x128xf32>
    %cst_53 = arith.constant 1.000000e+00 : f32
    %238 = vector.broadcast %cst_53 : f32 to vector<2x128xf32>
    %239 = arith.addf %238, %237 : vector<2x128xf32>
    %240 = arith.divf %238, %239 : vector<2x128xf32>
    %241 = arith.mulf %232, %213 : vector<2x128xf32>
    %242 = arith.mulf %226, %234 : vector<2x128xf32>
    %243 = arith.addf %241, %242 : vector<2x128xf32>
    %244 = math.tanh %243 : vector<2x128xf32>
    %245 = arith.mulf %240, %244 : vector<2x128xf32>
    %c0_54 = arith.constant 0 : index
    %c0_55 = arith.constant 0 : index
    %246 = vector.load %arg6[%c0_54, %c0_55] : memref<2x128xf32, #tpu.memory_space<vmem>>, vector<2x128xf32>
    tpu.vector_store %arg6[%c0_54, %c0_55], %245 {strides = array<i32>} : memref<2x128xf32, #tpu.memory_space<vmem>>, vector<2x128xf32>,
    %c0_56 = arith.constant 0 : index
    %c0_57 = arith.constant 0 : index
    %247 = vector.load %arg7[%c0_56, %c0_57] : memref<2x128xf32, #tpu.memory_space<vmem>>, vector<2x128xf32>
    tpu.vector_store %arg7[%c0_56, %c0_57], %243 {strides = array<i32>} : memref<2x128xf32, #tpu.memory_space<vmem>>, vector<2x128xf32>,
    %c1_i32 = arith.constant 1 : i32
    %248 = arith.cmpi eq, %arg0, %c1_i32 : i32
    %249 = arith.extui %248 : i1 to i32
    %c0_i32_58 = arith.constant 0 : i32
    %250 = arith.cmpi ne, %249, %c0_i32_58 : i32
    scf.if %250 {
      %251 = arith.truncf %245 : vector<2x128xf32> to vector<2x128xbf16>
      %c0_59 = arith.constant 0 : index
      %c0_60 = arith.constant 0 : index
      %252 = vector.load %arg3[%c0_59, %c0_60] : memref<128x1xbf16, #tpu.memory_space<vmem>>, vector<128x1xbf16>
      %cst_61 = arith.constant dense<0.000000e+00> : vector<2x1xf32>
      %253 = tpu.matmul %251, %252, %cst_61 {dimension_numbers = #tpu.dot_dimension_numbers<[1], [0], [0], [1], [0, 0, 1, 1], [], []>} : vector<2x128xbf16>, vector<128x1xbf16>, vector<2x1xf32> -> vector<2x1xf32>
      %c0_62 = arith.constant 0 : index
      %c0_63 = arith.constant 0 : index
      %254 = vector.load %arg4[%c0_62, %c0_63] : memref<1x1xf32, #tpu.memory_space<vmem>>, vector<1x1xf32>
      %255 = vector.broadcast %254 : vector<1x1xf32> to vector<2x1xf32>
      %256 = arith.addf %253, %255 : vector<2x1xf32>
      %c0_64 = arith.constant 0 : index
      %c0_65 = arith.constant 0 : index
      %257 = vector.load %arg5[%c0_64, %c0_65] : memref<2x1xf32, #tpu.memory_space<vmem>>, vector<2x1xf32>
      tpu.vector_store %arg5[%c0_64, %c0_65], %256 {strides = array<i32>} : memref<2x1xf32, #tpu.memory_space<vmem>>, vector<2x1xf32>,
    } else {
    }
    return
  }
  func.func @transform_0(%arg0: i32) -> (i32, i32, i32) {
    %c0_i32 = arith.constant 0 : i32
    %c0_i32_0 = arith.constant 0 : i32
    %c0_i32_1 = arith.constant 0 : i32
    return %c0_i32, %arg0, %c0_i32_0 : i32, i32, i32
  }
  func.func @transform_1(%arg0: i32) -> (i32, i32) {
    %c0_i32 = arith.constant 0 : i32
    %c0_i32_0 = arith.constant 0 : i32
    %c0_i32_1 = arith.constant 0 : i32
    return %c0_i32, %c0_i32_0 : i32, i32
  }
  func.func @transform_2(%arg0: i32) -> (i32, i32) {
    %c0_i32 = arith.constant 0 : i32
    %c0_i32_0 = arith.constant 0 : i32
    %c0_i32_1 = arith.constant 0 : i32
    return %c0_i32, %c0_i32_0 : i32, i32
  }
  func.func @transform_3(%arg0: i32) -> (i32, i32) {
    %c0_i32 = arith.constant 0 : i32
    %c0_i32_0 = arith.constant 0 : i32
    %c0_i32_1 = arith.constant 0 : i32
    return %c0_i32, %c0_i32_0 : i32, i32
  }
  func.func @transform_4(%arg0: i32) -> (i32, i32) {
    %c0_i32 = arith.constant 0 : i32
    %c0_i32_0 = arith.constant 0 : i32
    %c0_i32_1 = arith.constant 0 : i32
    return %c0_i32, %c0_i32_0 : i32, i32
  }
}

</mosaic_0001>

<llo_original>
// kernel: _lambda_.3
$region0: #{_lambda_.3}
  #allocation0 [shape = 'u32[]', space=smem, size = 0x4, offset = 0x4, fixed_abs, tag = 'smem constant byte address 0x4 - core index']
  #allocation1 [shape = 'u32[72,128]{1,0:T(1,128)}', space=vmem, size = 0x9000, scoped, tag = 'internal scratch']
  #allocation2 [shape = 'f32[2,128]{1,0:T(2,128)}', space=vmem, size = 0x400, scoped, tag = 'scratch operand']
  #allocation3 [shape = 'f32[2,128]{1,0:T(2,128)}', space=vmem, size = 0x400, scoped, tag = 'scratch operand']
  #allocation4 [shape = 'f32[1,1]{1,0:T(1,128)S(1)}', space=vmem, size = 0x200, scoped, tag = 'scoped memory for _lambda_.3']
  %s0 = inlined_call_operand.vmem [shape: f32[2,16,512], index: 0, kind: input, shape index: {}]
  %s1 = inlined_call_operand.vmem [shape: bf16[128,512], index: 1, kind: input, shape index: {}]
  %s2 = inlined_call_operand.vmem [shape: bf16[128,1], index: 2, kind: input, shape index: {}]
  %s3 = inlined_call_operand.<no memory space> [shape: f32[1,1], index: 3, kind: input, shape index: {}]
  %s4 = inlined_call_operand.vmem [shape: f32[2,1], index: 4, kind: output, shape index: {}]
  %s5 = sld [smem:[#allocation0]]
  $region80: #{_lambda_.3} parent=0
    _
  %s7 = ssub.s32 1, %s5
  %s8 = scalar_select 0, %s7, %s5
  %v9 = vstv %s3
  %10 = vst [vmem:[#allocation4] sm:$0x1] %v9
  $region1: #{_lambda_.3} parent=0
    #allocation5 [shape = 'u8[65536]{0}', space=vmem, size = 0x10000, scoped, tag = 'input window, operand 0']
    loop: start=0, step=1, limit=4
    $region2: #{_lambda_.3} parent=1 // loop_pre_header
      _
    $region3: #{_lambda_.3} parent=1 // loop_header
      %s12 = sphi 0, %s16
      %p13 = scmp.ge.s32.totalorder %s12, 4
      %s22 = sphi 0, %s24
      %s25 = sphi 0, %s22
      %s26 = sphi 0, %s25
      %s42 = sphi 0, %s26
      %s46 = sphi 0, %s46
      %s48 = sphi 0, %s46
      %s49 = sphi 0, %s48
      %s63 = sphi 0, %s49
      %s67 = sphi 0, %s67
      %s69 = sphi 0, %s67
      %s70 = sphi 0, %s69
      %s84 = sphi 0, %s70
      %s88 = sphi 0, %s88
      %s90 = sphi 0, %s88
      %s91 = sphi 0, %s90
      %s105 = sphi 0, %s91
      %s109 = sphi 0, %s109
      %s111 = sphi 0, %s109
      %s112 = sphi 0, %s111
      %s126 = sphi 0, %s112
    $region4: #{_lambda_.3} parent=1 // loop_header_branch
      %15 = sbr.rel (%p13) target = $region8
    $region5: #{_lambda_.3} parent=1 // loop_body
      %s17 = ssub.s32 %s12, 1
      %s18 = ssub.s32 %s12, 2
      %s19 = sadd.s32 %s12, 1
      %s20 = ssub.s32 %s12, %s19
      %p21 = scmp.eq.s32.totalorder %s20, 0
      %s23 = sadd.s32 %s22, 1
      %s24 = scalar_select %p21, %s22, %s23
      %p27 = pneg %p21
      %p28 = scmp.eq.s32.totalorder %s12, 1
      %p29 = por %p27, %p28
      %p30 = scmp.ne.s32.totalorder %s22, %s25
      %p31 = scmp.eq.s32.totalorder %s12, 0
      %p32 = por %p30, %p31
      %p33 = scmp.ne.s32.totalorder %s22, %s25
      %p34 = scmp.eq.s32.totalorder %s17, 1
      %p35 = por %p33, %p34
      %p36 = scmp.ne.s32.totalorder %s25, %s26
      %p37 = scmp.eq.s32.totalorder %s17, 0
      %p38 = por %p36, %p37
      %p39 = scmp.ne.s32.totalorder %s25, %s26
      %p40 = scmp.eq.s32.totalorder %s18, 1
      %p41 = por %p39, %p40
      %p43 = scmp.ne.s32.totalorder %s26, %s42
      %p44 = scmp.eq.s32.totalorder %s18, 0
      %p45 = por %p43, %p44
      %s47 = sadd.s32 %s46, 1
      %p50 = scmp.eq.s32.totalorder %s12, 1
      %p51 = scmp.ne.s32.totalorder %s46, %s48
      %p52 = scmp.eq.s32.totalorder %s12, 0
      %p53 = por %p51, %p52
      %p54 = scmp.ne.s32.totalorder %s46, %s48
      %p55 = scmp.eq.s32.totalorder %s17, 1
      %p56 = por %p54, %p55
      %p57 = scmp.ne.s32.totalorder %s48, %s49
      %p58 = scmp.eq.s32.totalorder %s17, 0
      %p59 = por %p57, %p58
      %p60 = scmp.ne.s32.totalorder %s48, %s49
      %p61 = scmp.eq.s32.totalorder %s18, 1
      %p62 = por %p60, %p61
      %p64 = scmp.ne.s32.totalorder %s49, %s63
      %p65 = scmp.eq.s32.totalorder %s18, 0
      %p66 = por %p64, %p65
      %s68 = sadd.s32 %s67, 1
      %p71 = scmp.eq.s32.totalorder %s12, 1
      %p72 = scmp.ne.s32.totalorder %s67, %s69
      %p73 = scmp.eq.s32.totalorder %s12, 0
      %p74 = por %p72, %p73
      %p75 = scmp.ne.s32.totalorder %s67, %s69
      %p76 = scmp.eq.s32.totalorder %s17, 1
      %p77 = por %p75, %p76
      %p78 = scmp.ne.s32.totalorder %s69, %s70
      %p79 = scmp.eq.s32.totalorder %s17, 0
      %p80 = por %p78, %p79
      %p81 = scmp.ne.s32.totalorder %s69, %s70
      %p82 = scmp.eq.s32.totalorder %s18, 1
      %p83 = por %p81, %p82
      %p85 = scmp.ne.s32.totalorder %s70, %s84
      %p86 = scmp.eq.s32.totalorder %s18, 0
      %p87 = por %p85, %p86
      %s89 = sadd.s32 %s88, 1
      %p92 = scmp.eq.s32.totalorder %s12, 1
      %p93 = scmp.ne.s32.totalorder %s88, %s90
      %p94 = scmp.eq.s32.totalorder %s12, 0
      %p95 = por %p93, %p94
      %p96 = scmp.ne.s32.totalorder %s88, %s90
      %p97 = scmp.eq.s32.totalorder %s17, 1
      %p98 = por %p96, %p97
      %p99 = scmp.ne.s32.totalorder %s90, %s91
      %p100 = scmp.eq.s32.totalorder %s17, 0
      %p101 = por %p99, %p100
      %p102 = scmp.ne.s32.totalorder %s90, %s91
      %p103 = scmp.eq.s32.totalorder %s18, 1
      %p104 = por %p102, %p103
      %p106 = scmp.ne.s32.totalorder %s91, %s105
      %p107 = scmp.eq.s32.totalorder %s18, 0
      %p108 = por %p106, %p107
      %s110 = sadd.s32 %s109, 1
      %p113 = scmp.eq.s32.totalorder %s12, 1
      %p114 = scmp.ne.s32.totalorder %s109, %s111
      %p115 = scmp.eq.s32.totalorder %s12, 0
      %p116 = por %p114, %p115
      %p117 = scmp.ne.s32.totalorder %s109, %s111
      %p118 = scmp.eq.s32.totalorder %s17, 1
      %p119 = por %p117, %p118
      %p120 = scmp.ne.s32.totalorder %s111, %s112
      %p121 = scmp.eq.s32.totalorder %s17, 0
      %p122 = por %p120, %p121
      %p123 = scmp.ne.s32.totalorder %s111, %s112
      %p124 = scmp.eq.s32.totalorder %s18, 1
      %p125 = por %p123, %p124
      %p127 = scmp.ne.s32.totalorder %s112, %s126
      %p128 = scmp.eq.s32.totalorder %s18, 0
      %p129 = por %p127, %p128
      %p130 = scmp.le.s32.totalorder 1, %s12
      %p131 = scmp.lt.s32.totalorder %s12, 3
      %p132 = pnand %p130, %p131
      %p133 = pneg %p132
      // Predicated region
      $region9: #{_lambda_.3} parent=5 // pred_check
        _
      $region10: #{_lambda_.3} parent=5 // pred_check_branch
        %135 = sbr.rel (%p132) target = $region12
      $region11: #{_lambda_.3} parent=5 // pred_region
        %s136 = ssub.s32 %s12, 1
        // Predicated region
        $region13: #{_lambda_.3} parent=11 // pred_check
          %p137 = pneg %p59
        $region14: #{_lambda_.3} parent=11 // pred_check_branch
          %139 = sbr.rel (%p137) target = $region16
        $region15: #{_lambda_.3} parent=11 // pred_region
          _
        $region16: #{_lambda_.3} parent=11 // pred_fallthru
          _
        // Predicated region
        $region17: #{_lambda_.3} parent=11 // pred_check
          %p140 = pneg %p80
        $region18: #{_lambda_.3} parent=11 // pred_check_branch
          %142 = sbr.rel (%p140) target = $region20
        $region19: #{_lambda_.3} parent=11 // pred_region
          _
        $region20: #{_lambda_.3} parent=11 // pred_fallthru
          _
        // Predicated region
        $region21: #{_lambda_.3} parent=11 // pred_check
          %p143 = pneg %p101
        $region22: #{_lambda_.3} parent=11 // pred_check_branch
          %145 = sbr.rel (%p143) target = $region24
        $region23: #{_lambda_.3} parent=11 // pred_region
          _
        $region24: #{_lambda_.3} parent=11 // pred_fallthru
          _
      $region12: #{_lambda_.3} parent=5 // pred_fallthru
        _
      %p146 = scmp.lt.s32.totalorder %s12, 2
      // Predicated region
      $region25: #{_lambda_.3} parent=5 // pred_check
        %p147 = pneg %p146
      $region26: #{_lambda_.3} parent=5 // pred_check_branch
        %149 = sbr.rel (%p147) target = $region28
      $region27: #{_lambda_.3} parent=5 // pred_region
        // Predicated region
        $region29: #{_lambda_.3} parent=27 // pred_check
          %p150 = pneg %p32
        $region30: #{_lambda_.3} parent=27 // pred_check_branch
          %152 = sbr.rel (%p150) target = $region32
        $region31: #{_lambda_.3} parent=27 // pred_region
          %s153 = sand.u32 %s22, 1
          %s154 = sand.u32 %s22, 1
          %s155 = smul.addr %s154, 64
          %s156 = scalar_lea.vmem [#allocation5], %s155
          %s157 = smul.addr %s12, 4
          %s158 = smul.addr %s157, 8
          %s159 = scalar_lea.vmem %s0, %s158
          // Predicated region
          $region33: #{_lambda_.3} parent=31 // pred_check
            _
          $region34: #{_lambda_.3} parent=31 // pred_check_branch
            %161 = sbr.rel (0) target = $region36
          $region35: #{_lambda_.3} parent=31 // pred_region
            // Predicated region
            $region37: #{_lambda_.3} parent=35 // pred_check
              _
            $region38: #{_lambda_.3} parent=35 // pred_check_branch
              %163 = sbr.rel (0) target = $region40
            $region39: #{_lambda_.3} parent=35 // pred_region
              loop: start=0, step=1, limit=1
              $region41: #{_lambda_.3} parent=39 // loop_pre_header
                _
              $region42: #{_lambda_.3} parent=39 // loop_header
                %s165 = sphi 0, %s169
                %p166 = scmp.ge.s32.totalorder %s165, 1
                %s170 = sphi %s159, %s159
                %s171 = sphi %s156, %s156
              $region43: #{_lambda_.3} parent=39 // loop_header_branch
                %168 = sbr.rel (%p166) target = $region47
              $region44: #{_lambda_.3} parent=39 // loop_body
                %v172 = vld [vmem:[%s170] sm:$0xff]
                %173 = vst [vmem:[%s171] sm:$0xff] %v172
                %v174 = vld [vmem:[%s170 + $0x8] sm:$0xff]
                %175 = vst [vmem:[%s171 + $0x8] sm:$0xff] %v174
                %v176 = vld [vmem:[%s170 + $0x10] sm:$0xff]
                %177 = vst [vmem:[%s171 + $0x10] sm:$0xff] %v176
                %v178 = vld [vmem:[%s170 + $0x18] sm:$0xff]
                %179 = vst [vmem:[%s171 + $0x18] sm:$0xff] %v178
                %v180 = vld [vmem:[%s170 + $0x40] sm:$0xff]
                %181 = vst [vmem:[%s171 + $0x20] sm:$0xff] %v180
                %v182 = vld [vmem:[%s170 + $0x48] sm:$0xff]
                %183 = vst [vmem:[%s171 + $0x28] sm:$0xff] %v182
                %v184 = vld [vmem:[%s170 + $0x50] sm:$0xff]
                %185 = vst [vmem:[%s171 + $0x30] sm:$0xff] %v184
                %v186 = vld [vmem:[%s170 + $0x58] sm:$0xff]
                %187 = vst [vmem:[%s171 + $0x38] sm:$0xff] %v186
              $region45: #{_lambda_.3} parent=39 // loop_footer
                %s169 = sadd.s32 1, %s165
              $region46: #{_lambda_.3} parent=39 // loop_footer_branch
                %164 = sbr.rel target = $region42
              $region47: #{_lambda_.3} parent=39 // loop_exit
                _
            $region40: #{_lambda_.3} parent=35 // pred_fallthru
              _
            // Predicated region
            $region48: #{_lambda_.3} parent=35 // pred_check
              _
            $region49: #{_lambda_.3} parent=35 // pred_check_branch
              %189 = sbr.rel target = $region51
            $region50: #{_lambda_.3} parent=35 // pred_region
              _
            $region51: #{_lambda_.3} parent=35 // pred_fallthru
              _
          $region36: #{_lambda_.3} parent=31 // pred_fallthru
            _
          %190 = vnop
        $region32: #{_lambda_.3} parent=27 // pred_fallthru
          _
      $region28: #{_lambda_.3} parent=5 // pred_fallthru
        _
      %p191 = scmp.le.s32.totalorder 1, %s12
      %p192 = scmp.lt.s32.totalorder %s12, 3
      %p193 = pnand %p191, %p192
      %p194 = pneg %p193
      // Predicated region
      $region52: #{_lambda_.3} parent=5 // pred_check
        _
      $region53: #{_lambda_.3} parent=5 // pred_check_branch
        %196 = sbr.rel (%p193) target = $region55
      $region54: #{_lambda_.3} parent=5 // pred_region
        %s197 = ssub.s32 %s12, 1
        %s198 = sand.u32 %s25, 1
        %s199 = sand.u32 %s25, 1
        %s200 = smul.addr %s199, 64
        %s201 = scalar_lea.vmem [#allocation5], %s200
        // Predicated region
        $region56: #{_lambda_.3} parent=54 // pred_check
          %p202 = pneg %p38
        $region57: #{_lambda_.3} parent=54 // pred_check_branch
          %204 = sbr.rel (%p202) target = $region59
        $region58: #{_lambda_.3} parent=54 // pred_region
          _
        $region59: #{_lambda_.3} parent=54 // pred_fallthru
          _
        %s205 = sand.u32 %s25, 1
        %s206 = sand.u32 %s25, 1
        %s207 = smul.addr %s206, 64
        %s208 = scalar_lea.vmem [#allocation5], %s207
        %p209 = pneg %p38
        %p210 = pneg %p35
        %p211 = pneg %p59
        %p212 = pneg %p56
        %p213 = pneg %p80
        %p214 = pneg %p77
        %p215 = pneg %p101
        %p216 = pneg %p98
        %p217 = pneg %p122
        %p218 = pneg %p119
        %p219 = scmp.eq.s32.totalorder %s17, 0
        // Predicated region
        $region60: #{_lambda_.3} parent=54 // pred_check
          %p220 = pneg %p219
        $region61: #{_lambda_.3} parent=54 // pred_check_branch
          %222 = sbr.rel (%p220) target = $region63
        $region62: #{_lambda_.3} parent=54 // pred_region
          %223 = vst [vmem:[#allocation2] sm:$0x3] 0.0
          %224 = vst [vmem:[#allocation3] sm:$0x3] 0.0
        $region63: #{_lambda_.3} parent=54 // pred_fallthru
          _
        %v225 = vld [vmem:[#allocation2] sm:$0x3]
        %v226 = vld [vmem:[#allocation3] sm:$0x3]
        %v227 = vld [vmem:[%s1] sm:$0xff]
        %v228 = vld [vmem:[%s1 + $0x8] sm:$0xff]
        %v229 = vld [vmem:[%s1 + $0x10] sm:$0xff]
        %v230 = vld [vmem:[%s1 + $0x18] sm:$0xff]
        %v231 = vld [vmem:[%s1 + $0x20] sm:$0xff]
        %v232 = vld [vmem:[%s1 + $0x28] sm:$0xff]
        %v233 = vld [vmem:[%s1 + $0x30] sm:$0xff]
        %v234 = vld [vmem:[%s1 + $0x38] sm:$0xff]
        %v235 = vld [vmem:[%s1 + $0x40] sm:$0xff]
        %v236 = vld [vmem:[%s1 + $0x48] sm:$0xff]
        %v237 = vld [vmem:[%s1 + $0x50] sm:$0xff]
        %v238 = vld [vmem:[%s1 + $0x58] sm:$0xff]
        %v239 = vld [vmem:[%s1 + $0x60] sm:$0xff]
        %v240 = vld [vmem:[%s1 + $0x68] sm:$0xff]
        %v241 = vld [vmem:[%s1 + $0x70] sm:$0xff]
        %v242 = vld [vmem:[%s1 + $0x78] sm:$0xff]
        %v243 = vld [vmem:[%s1 + $0x80] sm:$0xff]
        %v244 = vld [vmem:[%s1 + $0x88] sm:$0xff]
        %v245 = vld [vmem:[%s1 + $0x90] sm:$0xff]
        %v246 = vld [vmem:[%s1 + $0x98] sm:$0xff]
        %v247 = vld [vmem:[%s1 + $0xa0] sm:$0xff]
        %v248 = vld [vmem:[%s1 + $0xa8] sm:$0xff]
        %v249 = vld [vmem:[%s1 + $0xb0] sm:$0xff]
        %v250 = vld [vmem:[%s1 + $0xb8] sm:$0xff]
        %v251 = vld [vmem:[%s1 + $0xc0] sm:$0xff]
        %v252 = vld [vmem:[%s1 + $0xc8] sm:$0xff]
        %v253 = vld [vmem:[%s1 + $0xd0] sm:$0xff]
        %v254 = vld [vmem:[%s1 + $0xd8] sm:$0xff]
        %v255 = vld [vmem:[%s1 + $0xe0] sm:$0xff]
        %v256 = vld [vmem:[%s1 + $0xe8] sm:$0xff]
        %v257 = vld [vmem:[%s1 + $0xf0] sm:$0xff]
        %v258 = vld [vmem:[%s1 + $0xf8] sm:$0xff]
        %v259 = vld [vmem:[%s201] ss:$8 sm:$0xf]
        %s260 = scalar_lea.vmem %s201, 32 [#allocation5]
        %v261 = vld [vmem:[%s260] ss:$8 sm:$0xf]
        %v262 = vpack.c.bf16 %v225, %v225
        %v295 = vunpack.c.l.b16 %v227
        %v296 = vunpack.c.h.b16 %v227
        %v297 = vunpack.c.l.b16 %v228
        %v298 = vunpack.c.h.b16 %v228
        %v299 = vunpack.c.l.b16 %v229
        %v300 = vunpack.c.h.b16 %v229
        %v301 = vunpack.c.l.b16 %v230
        %v302 = vunpack.c.h.b16 %v230
        %v303 = vunpack.c.l.b16 %v231
        %v304 = vunpack.c.h.b16 %v231
        %v305 = vunpack.c.l.b16 %v232
        %v306 = vunpack.c.h.b16 %v232
        %v307 = vunpack.c.l.b16 %v233
        %v308 = vunpack.c.h.b16 %v233
        %v309 = vunpack.c.l.b16 %v234
        %v310 = vunpack.c.h.b16 %v234
        %v311 = vunpack.c.l.b16 %v235
        %v312 = vunpack.c.h.b16 %v235
        %v313 = vunpack.c.l.b16 %v236
        %v314 = vunpack.c.h.b16 %v236
        %v315 = vunpack.c.l.b16 %v237
        %v316 = vunpack.c.h.b16 %v237
        %v317 = vunpack.c.l.b16 %v238
        %v318 = vunpack.c.h.b16 %v238
        %v319 = vunpack.c.l.b16 %v239
        %v320 = vunpack.c.h.b16 %v239
        %v321 = vunpack.c.l.b16 %v240
        %v322 = vunpack.c.h.b16 %v240
        %v323 = vunpack.c.l.b16 %v241
        %v324 = vunpack.c.h.b16 %v241
        %v325 = vunpack.c.l.b16 %v242
        %v326 = vunpack.c.h.b16 %v242
        %v327 = vunpack.c.l.b16 %v243
        %v328 = vunpack.c.h.b16 %v243
        %v329 = vunpack.c.l.b16 %v244
        %v330 = vunpack.c.h.b16 %v244
        %v331 = vunpack.c.l.b16 %v245
        %v332 = vunpack.c.h.b16 %v245
        %v333 = vunpack.c.l.b16 %v246
        %v334 = vunpack.c.h.b16 %v246
        %v335 = vunpack.c.l.b16 %v247
        %v336 = vunpack.c.h.b16 %v247
        %v337 = vunpack.c.l.b16 %v248
        %v338 = vunpack.c.h.b16 %v248
        %v339 = vunpack.c.l.b16 %v249
        %v340 = vunpack.c.h.b16 %v249
        %v341 = vunpack.c.l.b16 %v250
        %v342 = vunpack.c.h.b16 %v250
        %v343 = vunpack.c.l.b16 %v251
        %v344 = vunpack.c.h.b16 %v251
        %v345 = vunpack.c.l.b16 %v252
        %v346 = vunpack.c.h.b16 %v252
        %v347 = vunpack.c.l.b16 %v253
        %v348 = vunpack.c.h.b16 %v253
        %v349 = vunpack.c.l.b16 %v254
        %v350 = vunpack.c.h.b16 %v254
        %v351 = vunpack.c.l.b16 %v255
        %v352 = vunpack.c.h.b16 %v255
        %v353 = vunpack.c.l.b16 %v256
        %v354 = vunpack.c.h.b16 %v256
        %v355 = vunpack.c.l.b16 %v257
        %v356 = vunpack.c.h.b16 %v257
        %v357 = vunpack.c.l.b16 %v258
        %v358 = vunpack.c.h.b16 %v258
        %v359 = vpack.c.b16 %v299, %v295
        %v360 = vpack.c.b16 %v300, %v296
        %v361 = vpack.c.b16 %v301, %v297
        %v362 = vpack.c.b16 %v302, %v298
        %v363 = vpack.c.b16 %v307, %v303
        %v364 = vpack.c.b16 %v308, %v304
        %v365 = vpack.c.b16 %v309, %v305
        %v366 = vpack.c.b16 %v310, %v306
        %v367 = vpack.c.b16 %v315, %v311
        %v368 = vpack.c.b16 %v316, %v312
        %v369 = vpack.c.b16 %v317, %v313
        %v370 = vpack.c.b16 %v318, %v314
        %v371 = vpack.c.b16 %v323, %v319
        %v372 = vpack.c.b16 %v324, %v320
        %v373 = vpack.c.b16 %v325, %v321
        %v374 = vpack.c.b16 %v326, %v322
        %v375 = vpack.c.b16 %v331, %v327
        %v376 = vpack.c.b16 %v332, %v328
        %v377 = vpack.c.b16 %v333, %v329
        %v378 = vpack.c.b16 %v334, %v330
        %v379 = vpack.c.b16 %v339, %v335
        %v380 = vpack.c.b16 %v340, %v336
        %v381 = vpack.c.b16 %v341, %v337
        %v382 = vpack.c.b16 %v342, %v338
        %v383 = vpack.c.b16 %v347, %v343
        %v384 = vpack.c.b16 %v348, %v344
        %v385 = vpack.c.b16 %v349, %v345
        %v386 = vpack.c.b16 %v350, %v346
        %v387 = vpack.c.b16 %v355, %v351
        %v388 = vpack.c.b16 %v356, %v352
        %v389 = vpack.c.b16 %v357, %v353
        %v390 = vpack.c.b16 %v358, %v354
        %423 = vmatpush.bf16.msra.mxu0 %v387
        %424 = vmatpush.bf16.msra.mxu0 %v383
        %425 = vmatpush.bf16.msra.mxu0 %v379
        %426 = vmatpush.bf16.msra.mxu0 %v375
        %427 = vmatpush.bf16.msra.mxu0 %v371
        %428 = vmatpush.bf16.msra.mxu0 %v367
        %429 = vmatpush.bf16.msra.mxu0 %v363
        %430 = vmatpush.bf16.msra.mxu0 %v359
        %431 = vmatmul.bf16.gmra.mxu0 %v262
        %v432 = vpop.f32.mrf.mxu0
        %v433 = vadd.f32 0.0, %v432
        %v434 = vpop.f32.mrf.mxu0
        %435 = vdwg.mxu0
        %436 = vmatpush.bf16.msra.mxu0 %v388
        %437 = vmatpush.bf16.msra.mxu0 %v384
        %438 = vmatpush.bf16.msra.mxu0 %v380
        %439 = vmatpush.bf16.msra.mxu0 %v376
        %440 = vmatpush.bf16.msra.mxu0 %v372
        %441 = vmatpush.bf16.msra.mxu0 %v368
        %442 = vmatpush.bf16.msra.mxu0 %v364
        %443 = vmatpush.bf16.msra.mxu0 %v360
        %444 = vmatmul.bf16.gmra.mxu0 %v262
        %v445 = vpop.f32.mrf.mxu0
        %v446 = vadd.f32 0.0, %v445
        %v447 = vpop.f32.mrf.mxu0
        %448 = vdwg.mxu0
        %449 = vmatpush.bf16.msra.mxu0 %v389
        %450 = vmatpush.bf16.msra.mxu0 %v385
        %451 = vmatpush.bf16.msra.mxu0 %v381
        %452 = vmatpush.bf16.msra.mxu0 %v377
        %453 = vmatpush.bf16.msra.mxu0 %v373
        %454 = vmatpush.bf16.msra.mxu0 %v369
        %455 = vmatpush.bf16.msra.mxu0 %v365
        %456 = vmatpush.bf16.msra.mxu0 %v361
        %457 = vmatmul.bf16.gmra.mxu0 %v262
        %v458 = vpop.f32.mrf.mxu0
        %v459 = vadd.f32 0.0, %v458
        %v460 = vpop.f32.mrf.mxu0
        %461 = vdwg.mxu0
        %462 = vmatpush.bf16.msra.mxu0 %v390
        %463 = vmatpush.bf16.msra.mxu0 %v386
        %464 = vmatpush.bf16.msra.mxu0 %v382
        %465 = vmatpush.bf16.msra.mxu0 %v378
        %466 = vmatpush.bf16.msra.mxu0 %v374
        %467 = vmatpush.bf16.msra.mxu0 %v370
        %468 = vmatpush.bf16.msra.mxu0 %v366
        %469 = vmatpush.bf16.msra.mxu0 %v362
        %470 = vmatmul.bf16.gmra.mxu0 %v262
        %v471 = vpop.f32.mrf.mxu0
        %v472 = vadd.f32 0.0, %v471
        %v473 = vpop.f32.mrf.mxu0
        %474 = vdwg.mxu0
        %v479 = vrot.slane %v446, 7
        %v480 = vrot.slane %v459, 6
        %v481 = vrot.slane %v472, 5
        %vm482 = vcmask 1040384
        %v483 = vsel %vm482, %v433, %v479
        %vm484 = vcmask 1042434
        %v485 = vsel %vm484, %v480, %v481
        %vm486 = vcmask 1041408
        %v487 = vsel %vm486, %v483, %v485
        %vm488 = vcmask 1041409
        %v489 = vsel %vm488, %v433, %v479
        %vm490 = vcmask 1043459
        %v491 = vsel %vm490, %v480, %v481
        %vm492 = vcmask 1042433
        %v493 = vsel %vm492, %v489, %v491
        %v494 = vrot.slane %v493, 1
        %v497 = vadd.f32 %v259, %v487
        %v498 = vadd.f32 %v261, %v494
        %v499 = vxor.u32 %v497, 2147483648
        %v500 = vxor.u32 %v498, 2147483648
        %v501 = vmul.f32 %v499, 1.442695
        %v502 = vpow.pop %v501
        %v503 = vmul.f32 %v500, 1.442695
        %v504 = vpow.pop %v503
        %v505 = vadd.f32 %v502, 1.0
        %v506 = vadd.f32 %v504, 1.0
        %v507 = vrcp.pop %v505
        %v508 = vmul.f32 %v505, %v507
        %v509 = vsub.f32 1.0, %v508
        %v510 = vmul.f32 %v507, %v509
        %v511 = vadd.f32 %v507, %v510
        %vm512 = vweird.f32 %v505
        %vm513 = vweird.f32 %v507
        %vm514 = vmor %vm512, %vm513
        %v515 = vsel %vm514, %v507, %v511
        %v516 = vand.u32 2147483647, %v505
        %vm517 = vcmp.eq.f32.partialorder %v516, 8.507059e+37
        %v518 = vand.u32 %v505, 2147483648
        %v519 = vor.u32 1.1754944e-38, %v518
        %v520 = vsel %vm517, %v519, %v515
        %v521 = vmul.f32 1.0, %v520
        %v522 = vrcp.pop %v506
        %v523 = vmul.f32 %v506, %v522
        %v524 = vsub.f32 1.0, %v523
        %v525 = vmul.f32 %v522, %v524
        %v526 = vadd.f32 %v522, %v525
        %vm527 = vweird.f32 %v506
        %vm528 = vweird.f32 %v522
        %vm529 = vmor %vm527, %vm528
        %v530 = vsel %vm529, %v522, %v526
        %v531 = vand.u32 2147483647, %v506
        %vm532 = vcmp.eq.f32.partialorder %v531, 8.507059e+37
        %v533 = vand.u32 %v506, 2147483648
        %v534 = vor.u32 1.1754944e-38, %v533
        %v535 = vsel %vm532, %v534, %v530
        %v536 = vmul.f32 1.0, %v535
        %v539 = vrot.slane %v497, 1
        %v540 = vrot.slane %v498, 1
        %v543 = vxor.u32 %v539, 2147483648
        %v544 = vxor.u32 %v540, 2147483648
        %v545 = vmul.f32 %v543, 1.442695
        %v546 = vpow.pop %v545
        %v547 = vmul.f32 %v544, 1.442695
        %v548 = vpow.pop %v547
        %v549 = vadd.f32 %v546, 1.0
        %v550 = vadd.f32 %v548, 1.0
        %v551 = vrcp.pop %v549
        %v552 = vmul.f32 %v549, %v551
        %v553 = vsub.f32 1.0, %v552
        %v554 = vmul.f32 %v551, %v553
        %v555 = vadd.f32 %v551, %v554
        %vm556 = vweird.f32 %v549
        %vm557 = vweird.f32 %v551
        %vm558 = vmor %vm556, %vm557
        %v559 = vsel %vm558, %v551, %v555
        %v560 = vand.u32 2147483647, %v549
        %vm561 = vcmp.eq.f32.partialorder %v560, 8.507059e+37
        %v562 = vand.u32 %v549, 2147483648
        %v563 = vor.u32 1.1754944e-38, %v562
        %v564 = vsel %vm561, %v563, %v559
        %v565 = vmul.f32 1.0, %v564
        %v566 = vrcp.pop %v550
        %v567 = vmul.f32 %v550, %v566
        %v568 = vsub.f32 1.0, %v567
        %v569 = vmul.f32 %v566, %v568
        %v570 = vadd.f32 %v566, %v569
        %vm571 = vweird.f32 %v550
        %vm572 = vweird.f32 %v566
        %vm573 = vmor %vm571, %vm572
        %v574 = vsel %vm573, %v566, %v570
        %v575 = vand.u32 2147483647, %v550
        %vm576 = vcmp.eq.f32.partialorder %v575, 8.507059e+37
        %v577 = vand.u32 %v550, 2147483648
        %v578 = vor.u32 1.1754944e-38, %v577
        %v579 = vsel %vm576, %v578, %v574
        %v580 = vmul.f32 1.0, %v579
        %v581 = vrot.slane %v497, 2
        %v582 = vrot.slane %v498, 2
        %v585 = vtanh.pop %v581
        %v586 = vtanh.pop %v582
        %v587 = vrot.slane %v497, 3
        %v588 = vrot.slane %v498, 3
        %v591 = vxor.u32 %v587, 2147483648
        %v592 = vxor.u32 %v588, 2147483648
        %v593 = vmul.f32 %v591, 1.442695
        %v594 = vpow.pop %v593
        %v595 = vmul.f32 %v592, 1.442695
        %v596 = vpow.pop %v595
        %v597 = vadd.f32 %v594, 1.0
        %v598 = vadd.f32 %v596, 1.0
        %v599 = vrcp.pop %v597
        %v600 = vmul.f32 %v597, %v599
        %v601 = vsub.f32 1.0, %v600
        %v602 = vmul.f32 %v599, %v601
        %v603 = vadd.f32 %v599, %v602
        %vm604 = vweird.f32 %v597
        %vm605 = vweird.f32 %v599
        %vm606 = vmor %vm604, %vm605
        %v607 = vsel %vm606, %v599, %v603
        %v608 = vand.u32 2147483647, %v597
        %vm609 = vcmp.eq.f32.partialorder %v608, 8.507059e+37
        %v610 = vand.u32 %v597, 2147483648
        %v611 = vor.u32 1.1754944e-38, %v610
        %v612 = vsel %vm609, %v611, %v607
        %v613 = vmul.f32 1.0, %v612
        %v614 = vrcp.pop %v598
        %v615 = vmul.f32 %v598, %v614
        %v616 = vsub.f32 1.0, %v615
        %v617 = vmul.f32 %v614, %v616
        %v618 = vadd.f32 %v614, %v617
        %vm619 = vweird.f32 %v598
        %vm620 = vweird.f32 %v614
        %vm621 = vmor %vm619, %vm620
        %v622 = vsel %vm621, %v614, %v618
        %v623 = vand.u32 2147483647, %v598
        %vm624 = vcmp.eq.f32.partialorder %v623, 8.507059e+37
        %v625 = vand.u32 %v598, 2147483648
        %v626 = vor.u32 1.1754944e-38, %v625
        %v627 = vsel %vm624, %v626, %v622
        %v628 = vmul.f32 1.0, %v627
        %v630 = vrot.slane %v226, 1
        %v632 = vmul.f32 %v565, %v226
        %v633 = vmul.f32 %v580, %v630
        %v634 = vmul.f32 %v521, %v585
        %v635 = vmul.f32 %v536, %v586
        %v636 = vadd.f32 %v632, %v634
        %v637 = vadd.f32 %v633, %v635
        %v638 = vtanh.pop %v636
        %v639 = vtanh.pop %v637
        %v640 = vmul.f32 %v613, %v638
        %v641 = vmul.f32 %v628, %v639
        %s642 = scalar_lea.vmem %s201, 1 [#allocation5]
        %v643 = vld [vmem:[%s642] ss:$8 sm:$0xf]
        %s644 = scalar_lea.vmem %s201, 33 [#allocation5]
        %v645 = vld [vmem:[%s644] ss:$8 sm:$0xf]
        %v646 = vpack.c.bf16 %v640, %v640
        %v647 = vpack.c.bf16 %v641, %v641
        %v650 = vunpack.c.l.b16 %v646
        %v651 = vunpack.c.l.b16 %v647
        %v652 = vrot.slane %v651, 7
        %v653 = vsel %vm488, %v652, %v650
        %v654 = vpack.c.b16 %v653, %v653
        %656 = vmatpush.bf16.msra.mxu0 %v387
        %657 = vmatpush.bf16.msra.mxu0 %v383
        %658 = vmatpush.bf16.msra.mxu0 %v379
        %659 = vmatpush.bf16.msra.mxu0 %v375
        %660 = vmatpush.bf16.msra.mxu0 %v371
        %661 = vmatpush.bf16.msra.mxu0 %v367
        %662 = vmatpush.bf16.msra.mxu0 %v363
        %663 = vmatpush.bf16.msra.mxu0 %v359
        %664 = vmatmul.bf16.gmra.mxu0 %v654
        %v665 = vpop.f32.mrf.mxu0
        %v666 = vadd.f32 0.0, %v665
        %v667 = vpop.f32.mrf.mxu0
        %668 = vdwg.mxu0
        %669 = vmatpush.bf16.msra.mxu0 %v388
        %670 = vmatpush.bf16.msra.mxu0 %v384
        %671 = vmatpush.bf16.msra.mxu0 %v380
        %672 = vmatpush.bf16.msra.mxu0 %v376
        %673 = vmatpush.bf16.msra.mxu0 %v372
        %674 = vmatpush.bf16.msra.mxu0 %v368
        %675 = vmatpush.bf16.msra.mxu0 %v364
        %676 = vmatpush.bf16.msra.mxu0 %v360
        %677 = vmatmul.bf16.gmra.mxu0 %v654
        %v678 = vpop.f32.mrf.mxu0
        %v679 = vadd.f32 0.0, %v678
        %v680 = vpop.f32.mrf.mxu0
        %681 = vdwg.mxu0
        %682 = vmatpush.bf16.msra.mxu0 %v389
        %683 = vmatpush.bf16.msra.mxu0 %v385
        %684 = vmatpush.bf16.msra.mxu0 %v381
        %685 = vmatpush.bf16.msra.mxu0 %v377
        %686 = vmatpush.bf16.msra.mxu0 %v373
        %687 = vmatpush.bf16.msra.mxu0 %v369
        %688 = vmatpush.bf16.msra.mxu0 %v365
        %689 = vmatpush.bf16.msra.mxu0 %v361
        %690 = vmatmul.bf16.gmra.mxu0 %v654
        %v691 = vpop.f32.mrf.mxu0
        %v692 = vadd.f32 0.0, %v691
        %v693 = vpop.f32.mrf.mxu0
        %694 = vdwg.mxu0
        %695 = vmatpush.bf16.msra.mxu0 %v390
        %696 = vmatpush.bf16.msra.mxu0 %v386
        %697 = vmatpush.bf16.msra.mxu0 %v382
        %698 = vmatpush.bf16.msra.mxu0 %v378
        %699 = vmatpush.bf16.msra.mxu0 %v374
        %700 = vmatpush.bf16.msra.mxu0 %v370
        %701 = vmatpush.bf16.msra.mxu0 %v366
        %702 = vmatpush.bf16.msra.mxu0 %v362
        %703 = vmatmul.bf16.gmra.mxu0 %v654
        %v704 = vpop.f32.mrf.mxu0
        %v705 = vadd.f32 0.0, %v704
        %v706 = vpop.f32.mrf.mxu0
        %707 = vdwg.mxu0
        %v712 = vrot.slane %v679, 7
        %v713 = vrot.slane %v692, 6
        %v714 = vrot.slane %v705, 5
        %v715 = vsel %vm482, %v666, %v712
        %v716 = vsel %vm484, %v713, %v714
        %v717 = vsel %vm486, %v715, %v716
        %v718 = vsel %vm488, %v666, %v712
        %v719 = vsel %vm490, %v713, %v714
        %v720 = vsel %vm492, %v718, %v719
        %v721 = vrot.slane %v720, 1
        %v724 = vadd.f32 %v643, %v717
        %v725 = vadd.f32 %v645, %v721
        %v726 = vxor.u32 %v724, 2147483648
        %v727 = vxor.u32 %v725, 2147483648
        %v728 = vmul.f32 %v726, 1.442695
        %v729 = vpow.pop %v728
        %v730 = vmul.f32 %v727, 1.442695
        %v731 = vpow.pop %v730
        %v732 = vadd.f32 %v729, 1.0
        %v733 = vadd.f32 %v731, 1.0
        %v734 = vrcp.pop %v732
        %v735 = vmul.f32 %v732, %v734
        %v736 = vsub.f32 1.0, %v735
        %v737 = vmul.f32 %v734, %v736
        %v738 = vadd.f32 %v734, %v737
        %vm739 = vweird.f32 %v732
        %vm740 = vweird.f32 %v734
        %vm741 = vmor %vm739, %vm740
        %v742 = vsel %vm741, %v734, %v738
        %v743 = vand.u32 2147483647, %v732
        %vm744 = vcmp.eq.f32.partialorder %v743, 8.507059e+37
        %v745 = vand.u32 %v732, 2147483648
        %v746 = vor.u32 1.1754944e-38, %v745
        %v747 = vsel %vm744, %v746, %v742
        %v748 = vmul.f32 1.0, %v747
        %v749 = vrcp.pop %v733
        %v750 = vmul.f32 %v733, %v749
        %v751 = vsub.f32 1.0, %v750
        %v752 = vmul.f32 %v749, %v751
        %v753 = vadd.f32 %v749, %v752
        %vm754 = vweird.f32 %v733
        %vm755 = vweird.f32 %v749
        %vm756 = vmor %vm754, %vm755
        %v757 = vsel %vm756, %v749, %v753
        %v758 = vand.u32 2147483647, %v733
        %vm759 = vcmp.eq.f32.partialorder %v758, 8.507059e+37
        %v760 = vand.u32 %v733, 2147483648
        %v761 = vor.u32 1.1754944e-38, %v760
        %v762 = vsel %vm759, %v761, %v757
        %v763 = vmul.f32 1.0, %v762
        %v766 = vrot.slane %v724, 1
        %v767 = vrot.slane %v725, 1
        %v770 = vxor.u32 %v766, 2147483648
        %v771 = vxor.u32 %v767, 2147483648
        %v772 = vmul.f32 %v770, 1.442695
        %v773 = vpow.pop %v772
        %v774 = vmul.f32 %v771, 1.442695
        %v775 = vpow.pop %v774
        %v776 = vadd.f32 %v773, 1.0
        %v777 = vadd.f32 %v775, 1.0
        %v778 = vrcp.pop %v776
        %v779 = vmul.f32 %v776, %v778
        %v780 = vsub.f32 1.0, %v779
        %v781 = vmul.f32 %v778, %v780
        %v782 = vadd.f32 %v778, %v781
        %vm783 = vweird.f32 %v776
        %vm784 = vweird.f32 %v778
        %vm785 = vmor %vm783, %vm784
        %v786 = vsel %vm785, %v778, %v782
        %v787 = vand.u32 2147483647, %v776
        %vm788 = vcmp.eq.f32.partialorder %v787, 8.507059e+37
        %v789 = vand.u32 %v776, 2147483648
        %v790 = vor.u32 1.1754944e-38, %v789
        %v791 = vsel %vm788, %v790, %v786
        %v792 = vmul.f32 1.0, %v791
        %v793 = vrcp.pop %v777
        %v794 = vmul.f32 %v777, %v793
        %v795 = vsub.f32 1.0, %v794
        %v796 = vmul.f32 %v793, %v795
        %v797 = vadd.f32 %v793, %v796
        %vm798 = vweird.f32 %v777
        %vm799 = vweird.f32 %v793
        %vm800 = vmor %vm798, %vm799
        %v801 = vsel %vm800, %v793, %v797
        %v802 = vand.u32 2147483647, %v777
        %vm803 = vcmp.eq.f32.partialorder %v802, 8.507059e+37
        %v804 = vand.u32 %v777, 2147483648
        %v805 = vor.u32 1.1754944e-38, %v804
        %v806 = vsel %vm803, %v805, %v801
        %v807 = vmul.f32 1.0, %v806
        %v808 = vrot.slane %v724, 2
        %v809 = vrot.slane %v725, 2
        %v812 = vtanh.pop %v808
        %v813 = vtanh.pop %v809
        %v814 = vrot.slane %v724, 3
        %v815 = vrot.slane %v725, 3
        %v818 = vxor.u32 %v814, 2147483648
        %v819 = vxor.u32 %v815, 2147483648
        %v820 = vmul.f32 %v818, 1.442695
        %v821 = vpow.pop %v820
        %v822 = vmul.f32 %v819, 1.442695
        %v823 = vpow.pop %v822
        %v824 = vadd.f32 %v821, 1.0
        %v825 = vadd.f32 %v823, 1.0
        %v826 = vrcp.pop %v824
        %v827 = vmul.f32 %v824, %v826
        %v828 = vsub.f32 1.0, %v827
        %v829 = vmul.f32 %v826, %v828
        %v830 = vadd.f32 %v826, %v829
        %vm831 = vweird.f32 %v824
        %vm832 = vweird.f32 %v826
        %vm833 = vmor %vm831, %vm832
        %v834 = vsel %vm833, %v826, %v830
        %v835 = vand.u32 2147483647, %v824
        %vm836 = vcmp.eq.f32.partialorder %v835, 8.507059e+37
        %v837 = vand.u32 %v824, 2147483648
        %v838 = vor.u32 1.1754944e-38, %v837
        %v839 = vsel %vm836, %v838, %v834
        %v840 = vmul.f32 1.0, %v839
        %v841 = vrcp.pop %v825
        %v842 = vmul.f32 %v825, %v841
        %v843 = vsub.f32 1.0, %v842
        %v844 = vmul.f32 %v841, %v843
        %v845 = vadd.f32 %v841, %v844
        %vm846 = vweird.f32 %v825
        %vm847 = vweird.f32 %v841
        %vm848 = vmor %vm846, %vm847
        %v849 = vsel %vm848, %v841, %v845
        %v850 = vand.u32 2147483647, %v825
        %vm851 = vcmp.eq.f32.partialorder %v850, 8.507059e+37
        %v852 = vand.u32 %v825, 2147483648
        %v853 = vor.u32 1.1754944e-38, %v852
        %v854 = vsel %vm851, %v853, %v849
        %v855 = vmul.f32 1.0, %v854
        %v856 = vmul.f32 %v792, %v636
        %v857 = vmul.f32 %v807, %v637
        %v858 = vmul.f32 %v748, %v812
        %v859 = vmul.f32 %v763, %v813
        %v860 = vadd.f32 %v856, %v858
        %v861 = vadd.f32 %v857, %v859
        %v862 = vtanh.pop %v860
        %v863 = vtanh.pop %v861
        %v864 = vmul.f32 %v840, %v862
        %v865 = vmul.f32 %v855, %v863
        %s866 = scalar_lea.vmem %s201, 2 [#allocation5]
        %v867 = vld [vmem:[%s866] ss:$8 sm:$0xf]
        %s868 = scalar_lea.vmem %s201, 34 [#allocation5]
        %v869 = vld [vmem:[%s868] ss:$8 sm:$0xf]
        %v870 = vpack.c.bf16 %v864, %v864
        %v871 = vpack.c.bf16 %v865, %v865
        %v874 = vunpack.c.l.b16 %v870
        %v875 = vunpack.c.l.b16 %v871
        %v876 = vrot.slane %v875, 7
        %v877 = vsel %vm488, %v876, %v874
        %v878 = vpack.c.b16 %v877, %v877
        %880 = vmatpush.bf16.msra.mxu0 %v387
        %881 = vmatpush.bf16.msra.mxu0 %v383
        %882 = vmatpush.bf16.msra.mxu0 %v379
        %883 = vmatpush.bf16.msra.mxu0 %v375
        %884 = vmatpush.bf16.msra.mxu0 %v371
        %885 = vmatpush.bf16.msra.mxu0 %v367
        %886 = vmatpush.bf16.msra.mxu0 %v363
        %887 = vmatpush.bf16.msra.mxu0 %v359
        %888 = vmatmul.bf16.gmra.mxu0 %v878
        %v889 = vpop.f32.mrf.mxu0
        %v890 = vadd.f32 0.0, %v889
        %v891 = vpop.f32.mrf.mxu0
        %892 = vdwg.mxu0
        %893 = vmatpush.bf16.msra.mxu0 %v388
        %894 = vmatpush.bf16.msra.mxu0 %v384
        %895 = vmatpush.bf16.msra.mxu0 %v380
        %896 = vmatpush.bf16.msra.mxu0 %v376
        %897 = vmatpush.bf16.msra.mxu0 %v372
        %898 = vmatpush.bf16.msra.mxu0 %v368
        %899 = vmatpush.bf16.msra.mxu0 %v364
        %900 = vmatpush.bf16.msra.mxu0 %v360
        %901 = vmatmul.bf16.gmra.mxu0 %v878
        %v902 = vpop.f32.mrf.mxu0
        %v903 = vadd.f32 0.0, %v902
        %v904 = vpop.f32.mrf.mxu0
        %905 = vdwg.mxu0
        %906 = vmatpush.bf16.msra.mxu0 %v389
        %907 = vmatpush.bf16.msra.mxu0 %v385
        %908 = vmatpush.bf16.msra.mxu0 %v381
        %909 = vmatpush.bf16.msra.mxu0 %v377
        %910 = vmatpush.bf16.msra.mxu0 %v373
        %911 = vmatpush.bf16.msra.mxu0 %v369
        %912 = vmatpush.bf16.msra.mxu0 %v365
        %913 = vmatpush.bf16.msra.mxu0 %v361
        %914 = vmatmul.bf16.gmra.mxu0 %v878
        %v915 = vpop.f32.mrf.mxu0
        %v916 = vadd.f32 0.0, %v915
        %v917 = vpop.f32.mrf.mxu0
        %918 = vdwg.mxu0
        %919 = vmatpush.bf16.msra.mxu0 %v390
        %920 = vmatpush.bf16.msra.mxu0 %v386
        %921 = vmatpush.bf16.msra.mxu0 %v382
        %922 = vmatpush.bf16.msra.mxu0 %v378
        %923 = vmatpush.bf16.msra.mxu0 %v374
        %924 = vmatpush.bf16.msra.mxu0 %v370
        %925 = vmatpush.bf16.msra.mxu0 %v366
        %926 = vmatpush.bf16.msra.mxu0 %v362
        %927 = vmatmul.bf16.gmra.mxu0 %v878
        %v928 = vpop.f32.mrf.mxu0
        %v929 = vadd.f32 0.0, %v928
        %v930 = vpop.f32.mrf.mxu0
        %931 = vdwg.mxu0
        %v936 = vrot.slane %v903, 7
        %v937 = vrot.slane %v916, 6
        %v938 = vrot.slane %v929, 5
        %v939 = vsel %vm482, %v890, %v936
        %v940 = vsel %vm484, %v937, %v938
        %v941 = vsel %vm486, %v939, %v940
        %v942 = vsel %vm488, %v890, %v936
        %v943 = vsel %vm490, %v937, %v938
        %v944 = vsel %vm492, %v942, %v943
        %v945 = vrot.slane %v944, 1
        %v948 = vadd.f32 %v867, %v941
        %v949 = vadd.f32 %v869, %v945
        %v950 = vxor.u32 %v948, 2147483648
        %v951 = vxor.u32 %v949, 2147483648
        %v952 = vmul.f32 %v950, 1.442695
        %v953 = vpow.pop %v952
        %v954 = vmul.f32 %v951, 1.442695
        %v955 = vpow.pop %v954
        %v956 = vadd.f32 %v953, 1.0
        %v957 = vadd.f32 %v955, 1.0
        %v958 = vrcp.pop %v956
        %v959 = vmul.f32 %v956, %v958
        %v960 = vsub.f32 1.0, %v959
        %v961 = vmul.f32 %v958, %v960
        %v962 = vadd.f32 %v958, %v961
        %vm963 = vweird.f32 %v956
        %vm964 = vweird.f32 %v958
        %vm965 = vmor %vm963, %vm964
        %v966 = vsel %vm965, %v958, %v962
        %v967 = vand.u32 2147483647, %v956
        %vm968 = vcmp.eq.f32.partialorder %v967, 8.507059e+37
        %v969 = vand.u32 %v956, 2147483648
        %v970 = vor.u32 1.1754944e-38, %v969
        %v971 = vsel %vm968, %v970, %v966
        %v972 = vmul.f32 1.0, %v971
        %v973 = vrcp.pop %v957
        %v974 = vmul.f32 %v957, %v973
        %v975 = vsub.f32 1.0, %v974
        %v976 = vmul.f32 %v973, %v975
        %v977 = vadd.f32 %v973, %v976
        %vm978 = vweird.f32 %v957
        %vm979 = vweird.f32 %v973
        %vm980 = vmor %vm978, %vm979
        %v981 = vsel %vm980, %v973, %v977
        %v982 = vand.u32 2147483647, %v957
        %vm983 = vcmp.eq.f32.partialorder %v982, 8.507059e+37
        %v984 = vand.u32 %v957, 2147483648
        %v985 = vor.u32 1.1754944e-38, %v984
        %v986 = vsel %vm983, %v985, %v981
        %v987 = vmul.f32 1.0, %v986
        %v990 = vrot.slane %v948, 1
        %v991 = vrot.slane %v949, 1
        %v994 = vxor.u32 %v990, 2147483648
        %v995 = vxor.u32 %v991, 2147483648
        %v996 = vmul.f32 %v994, 1.442695
        %v997 = vpow.pop %v996
        %v998 = vmul.f32 %v995, 1.442695
        %v999 = vpow.pop %v998
        %v1000 = vadd.f32 %v997, 1.0
        %v1001 = vadd.f32 %v999, 1.0
        %v1002 = vrcp.pop %v1000
        %v1003 = vmul.f32 %v1000, %v1002
        %v1004 = vsub.f32 1.0, %v1003
        %v1005 = vmul.f32 %v1002, %v1004
        %v1006 = vadd.f32 %v1002, %v1005
        %vm1007 = vweird.f32 %v1000
        %vm1008 = vweird.f32 %v1002
        %vm1009 = vmor %vm1007, %vm1008
        %v1010 = vsel %vm1009, %v1002, %v1006
        %v1011 = vand.u32 2147483647, %v1000
        %vm1012 = vcmp.eq.f32.partialorder %v1011, 8.507059e+37
        %v1013 = vand.u32 %v1000, 2147483648
        %v1014 = vor.u32 1.1754944e-38, %v1013
        %v1015 = vsel %vm1012, %v1014, %v1010
        %v1016 = vmul.f32 1.0, %v1015
        %v1017 = vrcp.pop %v1001
        %v1018 = vmul.f32 %v1001, %v1017
        %v1019 = vsub.f32 1.0, %v1018
        %v1020 = vmul.f32 %v1017, %v1019
        %v1021 = vadd.f32 %v1017, %v1020
        %vm1022 = vweird.f32 %v1001
        %vm1023 = vweird.f32 %v1017
        %vm1024 = vmor %vm1022, %vm1023
        %v1025 = vsel %vm1024, %v1017, %v1021
        %v1026 = vand.u32 2147483647, %v1001
        %vm1027 = vcmp.eq.f32.partialorder %v1026, 8.507059e+37
        %v1028 = vand.u32 %v1001, 2147483648
        %v1029 = vor.u32 1.1754944e-38, %v1028
        %v1030 = vsel %vm1027, %v1029, %v1025
        %v1031 = vmul.f32 1.0, %v1030
        %v1032 = vrot.slane %v948, 2
        %v1033 = vrot.slane %v949, 2
        %v1036 = vtanh.pop %v1032
        %v1037 = vtanh.pop %v1033
        %v1038 = vrot.slane %v948, 3
        %v1039 = vrot.slane %v949, 3
        %v1042 = vxor.u32 %v1038, 2147483648
        %v1043 = vxor.u32 %v1039, 2147483648
        %v1044 = vmul.f32 %v1042, 1.442695
        %v1045 = vpow.pop %v1044
        %v1046 = vmul.f32 %v1043, 1.442695
        %v1047 = vpow.pop %v1046
        %v1048 = vadd.f32 %v1045, 1.0
        %v1049 = vadd.f32 %v1047, 1.0
        %v1050 = vrcp.pop %v1048
        %v1051 = vmul.f32 %v1048, %v1050
        %v1052 = vsub.f32 1.0, %v1051
        %v1053 = vmul.f32 %v1050, %v1052
        %v1054 = vadd.f32 %v1050, %v1053
        %vm1055 = vweird.f32 %v1048
        %vm1056 = vweird.f32 %v1050
        %vm1057 = vmor %vm1055, %vm1056
        %v1058 = vsel %vm1057, %v1050, %v1054
        %v1059 = vand.u32 2147483647, %v1048
        %vm1060 = vcmp.eq.f32.partialorder %v1059, 8.507059e+37
        %v1061 = vand.u32 %v1048, 2147483648
        %v1062 = vor.u32 1.1754944e-38, %v1061
        %v1063 = vsel %vm1060, %v1062, %v1058
        %v1064 = vmul.f32 1.0, %v1063
        %v1065 = vrcp.pop %v1049
        %v1066 = vmul.f32 %v1049, %v1065
        %v1067 = vsub.f32 1.0, %v1066
        %v1068 = vmul.f32 %v1065, %v1067
        %v1069 = vadd.f32 %v1065, %v1068
        %vm1070 = vweird.f32 %v1049
        %vm1071 = vweird.f32 %v1065
        %vm1072 = vmor %vm1070, %vm1071
        %v1073 = vsel %vm1072, %v1065, %v1069
        %v1074 = vand.u32 2147483647, %v1049
        %vm1075 = vcmp.eq.f32.partialorder %v1074, 8.507059e+37
        %v1076 = vand.u32 %v1049, 2147483648
        %v1077 = vor.u32 1.1754944e-38, %v1076
        %v1078 = vsel %vm1075, %v1077, %v1073
        %v1079 = vmul.f32 1.0, %v1078
        %v1080 = vmul.f32 %v1016, %v860
        %v1081 = vmul.f32 %v1031, %v861
        %v1082 = vmul.f32 %v972, %v1036
        %v1083 = vmul.f32 %v987, %v1037
        %v1084 = vadd.f32 %v1080, %v1082
        %v1085 = vadd.f32 %v1081, %v1083
        %v1086 = vtanh.pop %v1084
        %v1087 = vtanh.pop %v1085
        %v1088 = vmul.f32 %v1064, %v1086
        %v1089 = vmul.f32 %v1079, %v1087
        %s1090 = scalar_lea.vmem %s201, 3 [#allocation5]
        %v1091 = vld [vmem:[%s1090] ss:$8 sm:$0xf]
        %s1092 = scalar_lea.vmem %s201, 35 [#allocation5]
        %v1093 = vld [vmem:[%s1092] ss:$8 sm:$0xf]
        %v1094 = vpack.c.bf16 %v1088, %v1088
        %v1095 = vpack.c.bf16 %v1089, %v1089
        %v1098 = vunpack.c.l.b16 %v1094
        %v1099 = vunpack.c.l.b16 %v1095
        %v1100 = vrot.slane %v1099, 7
        %v1101 = vsel %vm488, %v1100, %v1098
        %v1102 = vpack.c.b16 %v1101, %v1101
        %1104 = vmatpush.bf16.msra.mxu0 %v387
        %1105 = vmatpush.bf16.msra.mxu0 %v383
        %1106 = vmatpush.bf16.msra.mxu0 %v379
        %1107 = vmatpush.bf16.msra.mxu0 %v375
        %1108 = vmatpush.bf16.msra.mxu0 %v371
        %1109 = vmatpush.bf16.msra.mxu0 %v367
        %1110 = vmatpush.bf16.msra.mxu0 %v363
        %1111 = vmatpush.bf16.msra.mxu0 %v359
        %1112 = vmatmul.bf16.gmra.mxu0 %v1102
        %v1113 = vpop.f32.mrf.mxu0
        %v1114 = vadd.f32 0.0, %v1113
        %v1115 = vpop.f32.mrf.mxu0
        %1116 = vdwg.mxu0
        %1117 = vmatpush.bf16.msra.mxu0 %v388
        %1118 = vmatpush.bf16.msra.mxu0 %v384
        %1119 = vmatpush.bf16.msra.mxu0 %v380
        %1120 = vmatpush.bf16.msra.mxu0 %v376
        %1121 = vmatpush.bf16.msra.mxu0 %v372
        %1122 = vmatpush.bf16.msra.mxu0 %v368
        %1123 = vmatpush.bf16.msra.mxu0 %v364
        %1124 = vmatpush.bf16.msra.mxu0 %v360
        %1125 = vmatmul.bf16.gmra.mxu0 %v1102
        %v1126 = vpop.f32.mrf.mxu0
        %v1127 = vadd.f32 0.0, %v1126
        %v1128 = vpop.f32.mrf.mxu0
        %1129 = vdwg.mxu0
        %1130 = vmatpush.bf16.msra.mxu0 %v389
        %1131 = vmatpush.bf16.msra.mxu0 %v385
        %1132 = vmatpush.bf16.msra.mxu0 %v381
        %1133 = vmatpush.bf16.msra.mxu0 %v377
        %1134 = vmatpush.bf16.msra.mxu0 %v373
        %1135 = vmatpush.bf16.msra.mxu0 %v369
        %1136 = vmatpush.bf16.msra.mxu0 %v365
        %1137 = vmatpush.bf16.msra.mxu0 %v361
        %1138 = vmatmul.bf16.gmra.mxu0 %v1102
        %v1139 = vpop.f32.mrf.mxu0
        %v1140 = vadd.f32 0.0, %v1139
        %v1141 = vpop.f32.mrf.mxu0
        %1142 = vdwg.mxu0
        %1143 = vmatpush.bf16.msra.mxu0 %v390
        %1144 = vmatpush.bf16.msra.mxu0 %v386
        %1145 = vmatpush.bf16.msra.mxu0 %v382
        %1146 = vmatpush.bf16.msra.mxu0 %v378
        %1147 = vmatpush.bf16.msra.mxu0 %v374
        %1148 = vmatpush.bf16.msra.mxu0 %v370
        %1149 = vmatpush.bf16.msra.mxu0 %v366
        %1150 = vmatpush.bf16.msra.mxu0 %v362
        %1151 = vmatmul.bf16.gmra.mxu0 %v1102
        %v1152 = vpop.f32.mrf.mxu0
        %v1153 = vadd.f32 0.0, %v1152
        %v1154 = vpop.f32.mrf.mxu0
        %1155 = vdwg.mxu0
        %v1160 = vrot.slane %v1127, 7
        %v1161 = vrot.slane %v1140, 6
        %v1162 = vrot.slane %v1153, 5
        %v1163 = vsel %vm482, %v1114, %v1160
        %v1164 = vsel %vm484, %v1161, %v1162
        %v1165 = vsel %vm486, %v1163, %v1164
        %v1166 = vsel %vm488, %v1114, %v1160
        %v1167 = vsel %vm490, %v1161, %v1162
        %v1168 = vsel %vm492, %v1166, %v1167
        %v1169 = vrot.slane %v1168, 1
        %v1172 = vadd.f32 %v1091, %v1165
        %v1173 = vadd.f32 %v1093, %v1169
        %v1174 = vxor.u32 %v1172, 2147483648
        %v1175 = vxor.u32 %v1173, 2147483648
        %v1176 = vmul.f32 %v1174, 1.442695
        %v1177 = vpow.pop %v1176
        %v1178 = vmul.f32 %v1175, 1.442695
        %v1179 = vpow.pop %v1178
        %v1180 = vadd.f32 %v1177, 1.0
        %v1181 = vadd.f32 %v1179, 1.0
        %v1182 = vrcp.pop %v1180
        %v1183 = vmul.f32 %v1180, %v1182
        %v1184 = vsub.f32 1.0, %v1183
        %v1185 = vmul.f32 %v1182, %v1184
        %v1186 = vadd.f32 %v1182, %v1185
        %vm1187 = vweird.f32 %v1180
        %vm1188 = vweird.f32 %v1182
        %vm1189 = vmor %vm1187, %vm1188
        %v1190 = vsel %vm1189, %v1182, %v1186
        %v1191 = vand.u32 2147483647, %v1180
        %vm1192 = vcmp.eq.f32.partialorder %v1191, 8.507059e+37
        %v1193 = vand.u32 %v1180, 2147483648
        %v1194 = vor.u32 1.1754944e-38, %v1193
        %v1195 = vsel %vm1192, %v1194, %v1190
        %v1196 = vmul.f32 1.0, %v1195
        %v1197 = vrcp.pop %v1181
        %v1198 = vmul.f32 %v1181, %v1197
        %v1199 = vsub.f32 1.0, %v1198
        %v1200 = vmul.f32 %v1197, %v1199
        %v1201 = vadd.f32 %v1197, %v1200
        %vm1202 = vweird.f32 %v1181
        %vm1203 = vweird.f32 %v1197
        %vm1204 = vmor %vm1202, %vm1203
        %v1205 = vsel %vm1204, %v1197, %v1201
        %v1206 = vand.u32 2147483647, %v1181
        %vm1207 = vcmp.eq.f32.partialorder %v1206, 8.507059e+37
        %v1208 = vand.u32 %v1181, 2147483648
        %v1209 = vor.u32 1.1754944e-38, %v1208
        %v1210 = vsel %vm1207, %v1209, %v1205
        %v1211 = vmul.f32 1.0, %v1210
        %v1214 = vrot.slane %v1172, 1
        %v1215 = vrot.slane %v1173, 1
        %v1218 = vxor.u32 %v1214, 2147483648
        %v1219 = vxor.u32 %v1215, 2147483648
        %v1220 = vmul.f32 %v1218, 1.442695
        %v1221 = vpow.pop %v1220
        %v1222 = vmul.f32 %v1219, 1.442695
        %v1223 = vpow.pop %v1222
        %v1224 = vadd.f32 %v1221, 1.0
        %v1225 = vadd.f32 %v1223, 1.0
        %v1226 = vrcp.pop %v1224
        %v1227 = vmul.f32 %v1224, %v1226
        %v1228 = vsub.f32 1.0, %v1227
        %v1229 = vmul.f32 %v1226, %v1228
        %v1230 = vadd.f32 %v1226, %v1229
        %vm1231 = vweird.f32 %v1224
        %vm1232 = vweird.f32 %v1226
        %vm1233 = vmor %vm1231, %vm1232
        %v1234 = vsel %vm1233, %v1226, %v1230
        %v1235 = vand.u32 2147483647, %v1224
        %vm1236 = vcmp.eq.f32.partialorder %v1235, 8.507059e+37
        %v1237 = vand.u32 %v1224, 2147483648
        %v1238 = vor.u32 1.1754944e-38, %v1237
        %v1239 = vsel %vm1236, %v1238, %v1234
        %v1240 = vmul.f32 1.0, %v1239
        %v1241 = vrcp.pop %v1225
        %v1242 = vmul.f32 %v1225, %v1241
        %v1243 = vsub.f32 1.0, %v1242
        %v1244 = vmul.f32 %v1241, %v1243
        %v1245 = vadd.f32 %v1241, %v1244
        %vm1246 = vweird.f32 %v1225
        %vm1247 = vweird.f32 %v1241
        %vm1248 = vmor %vm1246, %vm1247
        %v1249 = vsel %vm1248, %v1241, %v1245
        %v1250 = vand.u32 2147483647, %v1225
        %vm1251 = vcmp.eq.f32.partialorder %v1250, 8.507059e+37
        %v1252 = vand.u32 %v1225, 2147483648
        %v1253 = vor.u32 1.1754944e-38, %v1252
        %v1254 = vsel %vm1251, %v1253, %v1249
        %v1255 = vmul.f32 1.0, %v1254
        %v1256 = vrot.slane %v1172, 2
        %v1257 = vrot.slane %v1173, 2
        %v1260 = vtanh.pop %v1256
        %v1261 = vtanh.pop %v1257
        %v1262 = vrot.slane %v1172, 3
        %v1263 = vrot.slane %v1173, 3
        %v1266 = vxor.u32 %v1262, 2147483648
        %v1267 = vxor.u32 %v1263, 2147483648
        %v1268 = vmul.f32 %v1266, 1.442695
        %v1269 = vpow.pop %v1268
        %v1270 = vmul.f32 %v1267, 1.442695
        %v1271 = vpow.pop %v1270
        %v1272 = vadd.f32 %v1269, 1.0
        %v1273 = vadd.f32 %v1271, 1.0
        %v1274 = vrcp.pop %v1272
        %v1275 = vmul.f32 %v1272, %v1274
        %v1276 = vsub.f32 1.0, %v1275
        %v1277 = vmul.f32 %v1274, %v1276
        %v1278 = vadd.f32 %v1274, %v1277
        %vm1279 = vweird.f32 %v1272
        %vm1280 = vweird.f32 %v1274
        %vm1281 = vmor %vm1279, %vm1280
        %v1282 = vsel %vm1281, %v1274, %v1278
        %v1283 = vand.u32 2147483647, %v1272
        %vm1284 = vcmp.eq.f32.partialorder %v1283, 8.507059e+37
        %v1285 = vand.u32 %v1272, 2147483648
        %v1286 = vor.u32 1.1754944e-38, %v1285
        %v1287 = vsel %vm1284, %v1286, %v1282
        %v1288 = vmul.f32 1.0, %v1287
        %v1289 = vrcp.pop %v1273
        %v1290 = vmul.f32 %v1273, %v1289
        %v1291 = vsub.f32 1.0, %v1290
        %v1292 = vmul.f32 %v1289, %v1291
        %v1293 = vadd.f32 %v1289, %v1292
        %vm1294 = vweird.f32 %v1273
        %vm1295 = vweird.f32 %v1289
        %vm1296 = vmor %vm1294, %vm1295
        %v1297 = vsel %vm1296, %v1289, %v1293
        %v1298 = vand.u32 2147483647, %v1273
        %vm1299 = vcmp.eq.f32.partialorder %v1298, 8.507059e+37
        %v1300 = vand.u32 %v1273, 2147483648
        %v1301 = vor.u32 1.1754944e-38, %v1300
        %v1302 = vsel %vm1299, %v1301, %v1297
        %v1303 = vmul.f32 1.0, %v1302
        %v1304 = vmul.f32 %v1240, %v1084
        %v1305 = vmul.f32 %v1255, %v1085
        %v1306 = vmul.f32 %v1196, %v1260
        %v1307 = vmul.f32 %v1211, %v1261
        %v1308 = vadd.f32 %v1304, %v1306
        %v1309 = vadd.f32 %v1305, %v1307
        %v1310 = vtanh.pop %v1308
        %v1311 = vtanh.pop %v1309
        %v1312 = vmul.f32 %v1288, %v1310
        %v1313 = vmul.f32 %v1303, %v1311
        %s1314 = scalar_lea.vmem %s201, 4 [#allocation5]
        %v1315 = vld [vmem:[%s1314] ss:$8 sm:$0xf]
        %s1316 = scalar_lea.vmem %s201, 36 [#allocation5]
        %v1317 = vld [vmem:[%s1316] ss:$8 sm:$0xf]
        %v1318 = vpack.c.bf16 %v1312, %v1312
        %v1319 = vpack.c.bf16 %v1313, %v1313
        %v1322 = vunpack.c.l.b16 %v1318
        %v1323 = vunpack.c.l.b16 %v1319
        %v1324 = vrot.slane %v1323, 7
        %v1325 = vsel %vm488, %v1324, %v1322
        %v1326 = vpack.c.b16 %v1325, %v1325
        %1328 = vmatpush.bf16.msra.mxu0 %v387
        %1329 = vmatpush.bf16.msra.mxu0 %v383
        %1330 = vmatpush.bf16.msra.mxu0 %v379
        %1331 = vmatpush.bf16.msra.mxu0 %v375
        %1332 = vmatpush.bf16.msra.mxu0 %v371
        %1333 = vmatpush.bf16.msra.mxu0 %v367
        %1334 = vmatpush.bf16.msra.mxu0 %v363
        %1335 = vmatpush.bf16.msra.mxu0 %v359
        %1336 = vmatmul.bf16.gmra.mxu0 %v1326
        %v1337 = vpop.f32.mrf.mxu0
        %v1338 = vadd.f32 0.0, %v1337
        %v1339 = vpop.f32.mrf.mxu0
        %1340 = vdwg.mxu0
        %1341 = vmatpush.bf16.msra.mxu0 %v388
        %1342 = vmatpush.bf16.msra.mxu0 %v384
        %1343 = vmatpush.bf16.msra.mxu0 %v380
        %1344 = vmatpush.bf16.msra.mxu0 %v376
        %1345 = vmatpush.bf16.msra.mxu0 %v372
        %1346 = vmatpush.bf16.msra.mxu0 %v368
        %1347 = vmatpush.bf16.msra.mxu0 %v364
        %1348 = vmatpush.bf16.msra.mxu0 %v360
        %1349 = vmatmul.bf16.gmra.mxu0 %v1326
        %v1350 = vpop.f32.mrf.mxu0
        %v1351 = vadd.f32 0.0, %v1350
        %v1352 = vpop.f32.mrf.mxu0
        %1353 = vdwg.mxu0
        %1354 = vmatpush.bf16.msra.mxu0 %v389
        %1355 = vmatpush.bf16.msra.mxu0 %v385
        %1356 = vmatpush.bf16.msra.mxu0 %v381
        %1357 = vmatpush.bf16.msra.mxu0 %v377
        %1358 = vmatpush.bf16.msra.mxu0 %v373
        %1359 = vmatpush.bf16.msra.mxu0 %v369
        %1360 = vmatpush.bf16.msra.mxu0 %v365
        %1361 = vmatpush.bf16.msra.mxu0 %v361
        %1362 = vmatmul.bf16.gmra.mxu0 %v1326
        %v1363 = vpop.f32.mrf.mxu0
        %v1364 = vadd.f32 0.0, %v1363
        %v1365 = vpop.f32.mrf.mxu0
        %1366 = vdwg.mxu0
        %1367 = vmatpush.bf16.msra.mxu0 %v390
        %1368 = vmatpush.bf16.msra.mxu0 %v386
        %1369 = vmatpush.bf16.msra.mxu0 %v382
        %1370 = vmatpush.bf16.msra.mxu0 %v378
        %1371 = vmatpush.bf16.msra.mxu0 %v374
        %1372 = vmatpush.bf16.msra.mxu0 %v370
        %1373 = vmatpush.bf16.msra.mxu0 %v366
        %1374 = vmatpush.bf16.msra.mxu0 %v362
        %1375 = vmatmul.bf16.gmra.mxu0 %v1326
        %v1376 = vpop.f32.mrf.mxu0
        %v1377 = vadd.f32 0.0, %v1376
        %v1378 = vpop.f32.mrf.mxu0
        %1379 = vdwg.mxu0
        %v1384 = vrot.slane %v1351, 7
        %v1385 = vrot.slane %v1364, 6
        %v1386 = vrot.slane %v1377, 5
        %v1387 = vsel %vm482, %v1338, %v1384
        %v1388 = vsel %vm484, %v1385, %v1386
        %v1389 = vsel %vm486, %v1387, %v1388
        %v1390 = vsel %vm488, %v1338, %v1384
        %v1391 = vsel %vm490, %v1385, %v1386
        %v1392 = vsel %vm492, %v1390, %v1391
        %v1393 = vrot.slane %v1392, 1
        %v1396 = vadd.f32 %v1315, %v1389
        %v1397 = vadd.f32 %v1317, %v1393
        %v1398 = vxor.u32 %v1396, 2147483648
        %v1399 = vxor.u32 %v1397, 2147483648
        %v1400 = vmul.f32 %v1398, 1.442695
        %v1401 = vpow.pop %v1400
        %v1402 = vmul.f32 %v1399, 1.442695
        %v1403 = vpow.pop %v1402
        %v1404 = vadd.f32 %v1401, 1.0
        %v1405 = vadd.f32 %v1403, 1.0
        %v1406 = vrcp.pop %v1404
        %v1407 = vmul.f32 %v1404, %v1406
        %v1408 = vsub.f32 1.0, %v1407
        %v1409 = vmul.f32 %v1406, %v1408
        %v1410 = vadd.f32 %v1406, %v1409
        %vm1411 = vweird.f32 %v1404
        %vm1412 = vweird.f32 %v1406
        %vm1413 = vmor %vm1411, %vm1412
        %v1414 = vsel %vm1413, %v1406, %v1410
        %v1415 = vand.u32 2147483647, %v1404
        %vm1416 = vcmp.eq.f32.partialorder %v1415, 8.507059e+37
        %v1417 = vand.u32 %v1404, 2147483648
        %v1418 = vor.u32 1.1754944e-38, %v1417
        %v1419 = vsel %vm1416, %v1418, %v1414
        %v1420 = vmul.f32 1.0, %v1419
        %v1421 = vrcp.pop %v1405
        %v1422 = vmul.f32 %v1405, %v1421
        %v1423 = vsub.f32 1.0, %v1422
        %v1424 = vmul.f32 %v1421, %v1423
        %v1425 = vadd.f32 %v1421, %v1424
        %vm1426 = vweird.f32 %v1405
        %vm1427 = vweird.f32 %v1421
        %vm1428 = vmor %vm1426, %vm1427
        %v1429 = vsel %vm1428, %v1421, %v1425
        %v1430 = vand.u32 2147483647, %v1405
        %vm1431 = vcmp.eq.f32.partialorder %v1430, 8.507059e+37
        %v1432 = vand.u32 %v1405, 2147483648
        %v1433 = vor.u32 1.1754944e-38, %v1432
        %v1434 = vsel %vm1431, %v1433, %v1429
        %v1435 = vmul.f32 1.0, %v1434
        %v1438 = vrot.slane %v1396, 1
        %v1439 = vrot.slane %v1397, 1
        %v1442 = vxor.u32 %v1438, 2147483648
        %v1443 = vxor.u32 %v1439, 2147483648
        %v1444 = vmul.f32 %v1442, 1.442695
        %v1445 = vpow.pop %v1444
        %v1446 = vmul.f32 %v1443, 1.442695
        %v1447 = vpow.pop %v1446
        %v1448 = vadd.f32 %v1445, 1.0
        %v1449 = vadd.f32 %v1447, 1.0
        %v1450 = vrcp.pop %v1448
        %v1451 = vmul.f32 %v1448, %v1450
        %v1452 = vsub.f32 1.0, %v1451
        %v1453 = vmul.f32 %v1450, %v1452
        %v1454 = vadd.f32 %v1450, %v1453
        %vm1455 = vweird.f32 %v1448
        %vm1456 = vweird.f32 %v1450
        %vm1457 = vmor %vm1455, %vm1456
        %v1458 = vsel %vm1457, %v1450, %v1454
        %v1459 = vand.u32 2147483647, %v1448
        %vm1460 = vcmp.eq.f32.partialorder %v1459, 8.507059e+37
        %v1461 = vand.u32 %v1448, 2147483648
        %v1462 = vor.u32 1.1754944e-38, %v1461
        %v1463 = vsel %vm1460, %v1462, %v1458
        %v1464 = vmul.f32 1.0, %v1463
        %v1465 = vrcp.pop %v1449
        %v1466 = vmul.f32 %v1449, %v1465
        %v1467 = vsub.f32 1.0, %v1466
        %v1468 = vmul.f32 %v1465, %v1467
        %v1469 = vadd.f32 %v1465, %v1468
        %vm1470 = vweird.f32 %v1449
        %vm1471 = vweird.f32 %v1465
        %vm1472 = vmor %vm1470, %vm1471
        %v1473 = vsel %vm1472, %v1465, %v1469
        %v1474 = vand.u32 2147483647, %v1449
        %vm1475 = vcmp.eq.f32.partialorder %v1474, 8.507059e+37
        %v1476 = vand.u32 %v1449, 2147483648
        %v1477 = vor.u32 1.1754944e-38, %v1476
        %v1478 = vsel %vm1475, %v1477, %v1473
        %v1479 = vmul.f32 1.0, %v1478
        %v1480 = vrot.slane %v1396, 2
        %v1481 = vrot.slane %v1397, 2
        %v1484 = vtanh.pop %v1480
        %v1485 = vtanh.pop %v1481
        %v1486 = vrot.slane %v1396, 3
        %v1487 = vrot.slane %v1397, 3
        %v1490 = vxor.u32 %v1486, 2147483648
        %v1491 = vxor.u32 %v1487, 2147483648
        %v1492 = vmul.f32 %v1490, 1.442695
        %v1493 = vpow.pop %v1492
        %v1494 = vmul.f32 %v1491, 1.442695
        %v1495 = vpow.pop %v1494
        %v1496 = vadd.f32 %v1493, 1.0
        %v1497 = vadd.f32 %v1495, 1.0
        %v1498 = vrcp.pop %v1496
        %v1499 = vmul.f32 %v1496, %v1498
        %v1500 = vsub.f32 1.0, %v1499
        %v1501 = vmul.f32 %v1498, %v1500
        %v1502 = vadd.f32 %v1498, %v1501
        %vm1503 = vweird.f32 %v1496
        %vm1504 = vweird.f32 %v1498
        %vm1505 = vmor %vm1503, %vm1504
        %v1506 = vsel %vm1505, %v1498, %v1502
        %v1507 = vand.u32 2147483647, %v1496
        %vm1508 = vcmp.eq.f32.partialorder %v1507, 8.507059e+37
        %v1509 = vand.u32 %v1496, 2147483648
        %v1510 = vor.u32 1.1754944e-38, %v1509
        %v1511 = vsel %vm1508, %v1510, %v1506
        %v1512 = vmul.f32 1.0, %v1511
        %v1513 = vrcp.pop %v1497
        %v1514 = vmul.f32 %v1497, %v1513
        %v1515 = vsub.f32 1.0, %v1514
        %v1516 = vmul.f32 %v1513, %v1515
        %v1517 = vadd.f32 %v1513, %v1516
        %vm1518 = vweird.f32 %v1497
        %vm1519 = vweird.f32 %v1513
        %vm1520 = vmor %vm1518, %vm1519
        %v1521 = vsel %vm1520, %v1513, %v1517
        %v1522 = vand.u32 2147483647, %v1497
        %vm1523 = vcmp.eq.f32.partialorder %v1522, 8.507059e+37
        %v1524 = vand.u32 %v1497, 2147483648
        %v1525 = vor.u32 1.1754944e-38, %v1524
        %v1526 = vsel %vm1523, %v1525, %v1521
        %v1527 = vmul.f32 1.0, %v1526
        %v1528 = vmul.f32 %v1464, %v1308
        %v1529 = vmul.f32 %v1479, %v1309
        %v1530 = vmul.f32 %v1420, %v1484
        %v1531 = vmul.f32 %v1435, %v1485
        %v1532 = vadd.f32 %v1528, %v1530
        %v1533 = vadd.f32 %v1529, %v1531
        %v1534 = vtanh.pop %v1532
        %v1535 = vtanh.pop %v1533
        %v1536 = vmul.f32 %v1512, %v1534
        %v1537 = vmul.f32 %v1527, %v1535
        %s1538 = scalar_lea.vmem %s201, 5 [#allocation5]
        %v1539 = vld [vmem:[%s1538] ss:$8 sm:$0xf]
        %s1540 = scalar_lea.vmem %s201, 37 [#allocation5]
        %v1541 = vld [vmem:[%s1540] ss:$8 sm:$0xf]
        %v1542 = vpack.c.bf16 %v1536, %v1536
        %v1543 = vpack.c.bf16 %v1537, %v1537
        %v1546 = vunpack.c.l.b16 %v1542
        %v1547 = vunpack.c.l.b16 %v1543
        %v1548 = vrot.slane %v1547, 7
        %v1549 = vsel %vm488, %v1548, %v1546
        %v1550 = vpack.c.b16 %v1549, %v1549
        %1552 = vmatpush.bf16.msra.mxu0 %v387
        %1553 = vmatpush.bf16.msra.mxu0 %v383
        %1554 = vmatpush.bf16.msra.mxu0 %v379
        %1555 = vmatpush.bf16.msra.mxu0 %v375
        %1556 = vmatpush.bf16.msra.mxu0 %v371
        %1557 = vmatpush.bf16.msra.mxu0 %v367
        %1558 = vmatpush.bf16.msra.mxu0 %v363
        %1559 = vmatpush.bf16.msra.mxu0 %v359
        %1560 = vmatmul.bf16.gmra.mxu0 %v1550
        %v1561 = vpop.f32.mrf.mxu0
        %v1562 = vadd.f32 0.0, %v1561
        %v1563 = vpop.f32.mrf.mxu0
        %1564 = vdwg.mxu0
        %1565 = vmatpush.bf16.msra.mxu0 %v388
        %1566 = vmatpush.bf16.msra.mxu0 %v384
        %1567 = vmatpush.bf16.msra.mxu0 %v380
        %1568 = vmatpush.bf16.msra.mxu0 %v376
        %1569 = vmatpush.bf16.msra.mxu0 %v372
        %1570 = vmatpush.bf16.msra.mxu0 %v368
        %1571 = vmatpush.bf16.msra.mxu0 %v364
        %1572 = vmatpush.bf16.msra.mxu0 %v360
        %1573 = vmatmul.bf16.gmra.mxu0 %v1550
        %v1574 = vpop.f32.mrf.mxu0
        %v1575 = vadd.f32 0.0, %v1574
        %v1576 = vpop.f32.mrf.mxu0
        %1577 = vdwg.mxu0
        %1578 = vmatpush.bf16.msra.mxu0 %v389
        %1579 = vmatpush.bf16.msra.mxu0 %v385
        %1580 = vmatpush.bf16.msra.mxu0 %v381
        %1581 = vmatpush.bf16.msra.mxu0 %v377
        %1582 = vmatpush.bf16.msra.mxu0 %v373
        %1583 = vmatpush.bf16.msra.mxu0 %v369
        %1584 = vmatpush.bf16.msra.mxu0 %v365
        %1585 = vmatpush.bf16.msra.mxu0 %v361
        %1586 = vmatmul.bf16.gmra.mxu0 %v1550
        %v1587 = vpop.f32.mrf.mxu0
        %v1588 = vadd.f32 0.0, %v1587
        %v1589 = vpop.f32.mrf.mxu0
        %1590 = vdwg.mxu0
        %1591 = vmatpush.bf16.msra.mxu0 %v390
        %1592 = vmatpush.bf16.msra.mxu0 %v386
        %1593 = vmatpush.bf16.msra.mxu0 %v382
        %1594 = vmatpush.bf16.msra.mxu0 %v378
        %1595 = vmatpush.bf16.msra.mxu0 %v374
        %1596 = vmatpush.bf16.msra.mxu0 %v370
        %1597 = vmatpush.bf16.msra.mxu0 %v366
        %1598 = vmatpush.bf16.msra.mxu0 %v362
        %1599 = vmatmul.bf16.gmra.mxu0 %v1550
        %v1600 = vpop.f32.mrf.mxu0
        %v1601 = vadd.f32 0.0, %v1600
        %v1602 = vpop.f32.mrf.mxu0
        %1603 = vdwg.mxu0
        %v1608 = vrot.slane %v1575, 7
        %v1609 = vrot.slane %v1588, 6
        %v1610 = vrot.slane %v1601, 5
        %v1611 = vsel %vm482, %v1562, %v1608
        %v1612 = vsel %vm484, %v1609, %v1610
        %v1613 = vsel %vm486, %v1611, %v1612
        %v1614 = vsel %vm488, %v1562, %v1608
        %v1615 = vsel %vm490, %v1609, %v1610
        %v1616 = vsel %vm492, %v1614, %v1615
        %v1617 = vrot.slane %v1616, 1
        %v1620 = vadd.f32 %v1539, %v1613
        %v1621 = vadd.f32 %v1541, %v1617
        %v1622 = vxor.u32 %v1620, 2147483648
        %v1623 = vxor.u32 %v1621, 2147483648
        %v1624 = vmul.f32 %v1622, 1.442695
        %v1625 = vpow.pop %v1624
        %v1626 = vmul.f32 %v1623, 1.442695
        %v1627 = vpow.pop %v1626
        %v1628 = vadd.f32 %v1625, 1.0
        %v1629 = vadd.f32 %v1627, 1.0
        %v1630 = vrcp.pop %v1628
        %v1631 = vmul.f32 %v1628, %v1630
        %v1632 = vsub.f32 1.0, %v1631
        %v1633 = vmul.f32 %v1630, %v1632
        %v1634 = vadd.f32 %v1630, %v1633
        %vm1635 = vweird.f32 %v1628
        %vm1636 = vweird.f32 %v1630
        %vm1637 = vmor %vm1635, %vm1636
        %v1638 = vsel %vm1637, %v1630, %v1634
        %v1639 = vand.u32 2147483647, %v1628
        %vm1640 = vcmp.eq.f32.partialorder %v1639, 8.507059e+37
        %v1641 = vand.u32 %v1628, 2147483648
        %v1642 = vor.u32 1.1754944e-38, %v1641
        %v1643 = vsel %vm1640, %v1642, %v1638
        %v1644 = vmul.f32 1.0, %v1643
        %v1645 = vrcp.pop %v1629
        %v1646 = vmul.f32 %v1629, %v1645
        %v1647 = vsub.f32 1.0, %v1646
        %v1648 = vmul.f32 %v1645, %v1647
        %v1649 = vadd.f32 %v1645, %v1648
        %vm1650 = vweird.f32 %v1629
        %vm1651 = vweird.f32 %v1645
        %vm1652 = vmor %vm1650, %vm1651
        %v1653 = vsel %vm1652, %v1645, %v1649
        %v1654 = vand.u32 2147483647, %v1629
        %vm1655 = vcmp.eq.f32.partialorder %v1654, 8.507059e+37
        %v1656 = vand.u32 %v1629, 2147483648
        %v1657 = vor.u32 1.1754944e-38, %v1656
        %v1658 = vsel %vm1655, %v1657, %v1653
        %v1659 = vmul.f32 1.0, %v1658
        %v1662 = vrot.slane %v1620, 1
        %v1663 = vrot.slane %v1621, 1
        %v1666 = vxor.u32 %v1662, 2147483648
        %v1667 = vxor.u32 %v1663, 2147483648
        %v1668 = vmul.f32 %v1666, 1.442695
        %v1669 = vpow.pop %v1668
        %v1670 = vmul.f32 %v1667, 1.442695
        %v1671 = vpow.pop %v1670
        %v1672 = vadd.f32 %v1669, 1.0
        %v1673 = vadd.f32 %v1671, 1.0
        %v1674 = vrcp.pop %v1672
        %v1675 = vmul.f32 %v1672, %v1674
        %v1676 = vsub.f32 1.0, %v1675
        %v1677 = vmul.f32 %v1674, %v1676
        %v1678 = vadd.f32 %v1674, %v1677
        %vm1679 = vweird.f32 %v1672
        %vm1680 = vweird.f32 %v1674
        %vm1681 = vmor %vm1679, %vm1680
        %v1682 = vsel %vm1681, %v1674, %v1678
        %v1683 = vand.u32 2147483647, %v1672
        %vm1684 = vcmp.eq.f32.partialorder %v1683, 8.507059e+37
        %v1685 = vand.u32 %v1672, 2147483648
        %v1686 = vor.u32 1.1754944e-38, %v1685
        %v1687 = vsel %vm1684, %v1686, %v1682
        %v1688 = vmul.f32 1.0, %v1687
        %v1689 = vrcp.pop %v1673
        %v1690 = vmul.f32 %v1673, %v1689
        %v1691 = vsub.f32 1.0, %v1690
        %v1692 = vmul.f32 %v1689, %v1691
        %v1693 = vadd.f32 %v1689, %v1692
        %vm1694 = vweird.f32 %v1673
        %vm1695 = vweird.f32 %v1689
        %vm1696 = vmor %vm1694, %vm1695
        %v1697 = vsel %vm1696, %v1689, %v1693
        %v1698 = vand.u32 2147483647, %v1673
        %vm1699 = vcmp.eq.f32.partialorder %v1698, 8.507059e+37
        %v1700 = vand.u32 %v1673, 2147483648
        %v1701 = vor.u32 1.1754944e-38, %v1700
        %v1702 = vsel %vm1699, %v1701, %v1697
        %v1703 = vmul.f32 1.0, %v1702
        %v1704 = vrot.slane %v1620, 2
        %v1705 = vrot.slane %v1621, 2
        %v1708 = vtanh.pop %v1704
        %v1709 = vtanh.pop %v1705
        %v1710 = vrot.slane %v1620, 3
        %v1711 = vrot.slane %v1621, 3
        %v1714 = vxor.u32 %v1710, 2147483648
        %v1715 = vxor.u32 %v1711, 2147483648
        %v1716 = vmul.f32 %v1714, 1.442695
        %v1717 = vpow.pop %v1716
        %v1718 = vmul.f32 %v1715, 1.442695
        %v1719 = vpow.pop %v1718
        %v1720 = vadd.f32 %v1717, 1.0
        %v1721 = vadd.f32 %v1719, 1.0
        %v1722 = vrcp.pop %v1720
        %v1723 = vmul.f32 %v1720, %v1722
        %v1724 = vsub.f32 1.0, %v1723
        %v1725 = vmul.f32 %v1722, %v1724
        %v1726 = vadd.f32 %v1722, %v1725
        %vm1727 = vweird.f32 %v1720
        %vm1728 = vweird.f32 %v1722
        %vm1729 = vmor %vm1727, %vm1728
        %v1730 = vsel %vm1729, %v1722, %v1726
        %v1731 = vand.u32 2147483647, %v1720
        %vm1732 = vcmp.eq.f32.partialorder %v1731, 8.507059e+37
        %v1733 = vand.u32 %v1720, 2147483648
        %v1734 = vor.u32 1.1754944e-38, %v1733
        %v1735 = vsel %vm1732, %v1734, %v1730
        %v1736 = vmul.f32 1.0, %v1735
        %v1737 = vrcp.pop %v1721
        %v1738 = vmul.f32 %v1721, %v1737
        %v1739 = vsub.f32 1.0, %v1738
        %v1740 = vmul.f32 %v1737, %v1739
        %v1741 = vadd.f32 %v1737, %v1740
        %vm1742 = vweird.f32 %v1721
        %vm1743 = vweird.f32 %v1737
        %vm1744 = vmor %vm1742, %vm1743
        %v1745 = vsel %vm1744, %v1737, %v1741
        %v1746 = vand.u32 2147483647, %v1721
        %vm1747 = vcmp.eq.f32.partialorder %v1746, 8.507059e+37
        %v1748 = vand.u32 %v1721, 2147483648
        %v1749 = vor.u32 1.1754944e-38, %v1748
        %v1750 = vsel %vm1747, %v1749, %v1745
        %v1751 = vmul.f32 1.0, %v1750
        %v1752 = vmul.f32 %v1688, %v1532
        %v1753 = vmul.f32 %v1703, %v1533
        %v1754 = vmul.f32 %v1644, %v1708
        %v1755 = vmul.f32 %v1659, %v1709
        %v1756 = vadd.f32 %v1752, %v1754
        %v1757 = vadd.f32 %v1753, %v1755
        %v1758 = vtanh.pop %v1756
        %v1759 = vtanh.pop %v1757
        %v1760 = vmul.f32 %v1736, %v1758
        %v1761 = vmul.f32 %v1751, %v1759
        %s1762 = scalar_lea.vmem %s201, 6 [#allocation5]
        %v1763 = vld [vmem:[%s1762] ss:$8 sm:$0xf]
        %s1764 = scalar_lea.vmem %s201, 38 [#allocation5]
        %v1765 = vld [vmem:[%s1764] ss:$8 sm:$0xf]
        %v1766 = vpack.c.bf16 %v1760, %v1760
        %v1767 = vpack.c.bf16 %v1761, %v1761
        %v1770 = vunpack.c.l.b16 %v1766
        %v1771 = vunpack.c.l.b16 %v1767
        %v1772 = vrot.slane %v1771, 7
        %v1773 = vsel %vm488, %v1772, %v1770
        %v1774 = vpack.c.b16 %v1773, %v1773
        %1776 = vmatpush.bf16.msra.mxu0 %v387
        %1777 = vmatpush.bf16.msra.mxu0 %v383
        %1778 = vmatpush.bf16.msra.mxu0 %v379
        %1779 = vmatpush.bf16.msra.mxu0 %v375
        %1780 = vmatpush.bf16.msra.mxu0 %v371
        %1781 = vmatpush.bf16.msra.mxu0 %v367
        %1782 = vmatpush.bf16.msra.mxu0 %v363
        %1783 = vmatpush.bf16.msra.mxu0 %v359
        %1784 = vmatmul.bf16.gmra.mxu0 %v1774
        %v1785 = vpop.f32.mrf.mxu0
        %v1786 = vadd.f32 0.0, %v1785
        %v1787 = vpop.f32.mrf.mxu0
        %1788 = vdwg.mxu0
        %1789 = vmatpush.bf16.msra.mxu0 %v388
        %1790 = vmatpush.bf16.msra.mxu0 %v384
        %1791 = vmatpush.bf16.msra.mxu0 %v380
        %1792 = vmatpush.bf16.msra.mxu0 %v376
        %1793 = vmatpush.bf16.msra.mxu0 %v372
        %1794 = vmatpush.bf16.msra.mxu0 %v368
        %1795 = vmatpush.bf16.msra.mxu0 %v364
        %1796 = vmatpush.bf16.msra.mxu0 %v360
        %1797 = vmatmul.bf16.gmra.mxu0 %v1774
        %v1798 = vpop.f32.mrf.mxu0
        %v1799 = vadd.f32 0.0, %v1798
        %v1800 = vpop.f32.mrf.mxu0
        %1801 = vdwg.mxu0
        %1802 = vmatpush.bf16.msra.mxu0 %v389
        %1803 = vmatpush.bf16.msra.mxu0 %v385
        %1804 = vmatpush.bf16.msra.mxu0 %v381
        %1805 = vmatpush.bf16.msra.mxu0 %v377
        %1806 = vmatpush.bf16.msra.mxu0 %v373
        %1807 = vmatpush.bf16.msra.mxu0 %v369
        %1808 = vmatpush.bf16.msra.mxu0 %v365
        %1809 = vmatpush.bf16.msra.mxu0 %v361
        %1810 = vmatmul.bf16.gmra.mxu0 %v1774
        %v1811 = vpop.f32.mrf.mxu0
        %v1812 = vadd.f32 0.0, %v1811
        %v1813 = vpop.f32.mrf.mxu0
        %1814 = vdwg.mxu0
        %1815 = vmatpush.bf16.msra.mxu0 %v390
        %1816 = vmatpush.bf16.msra.mxu0 %v386
        %1817 = vmatpush.bf16.msra.mxu0 %v382
        %1818 = vmatpush.bf16.msra.mxu0 %v378
        %1819 = vmatpush.bf16.msra.mxu0 %v374
        %1820 = vmatpush.bf16.msra.mxu0 %v370
        %1821 = vmatpush.bf16.msra.mxu0 %v366
        %1822 = vmatpush.bf16.msra.mxu0 %v362
        %1823 = vmatmul.bf16.gmra.mxu0 %v1774
        %v1824 = vpop.f32.mrf.mxu0
        %v1825 = vadd.f32 0.0, %v1824
        %v1826 = vpop.f32.mrf.mxu0
        %1827 = vdwg.mxu0
        %v1832 = vrot.slane %v1799, 7
        %v1833 = vrot.slane %v1812, 6
        %v1834 = vrot.slane %v1825, 5
        %v1835 = vsel %vm482, %v1786, %v1832
        %v1836 = vsel %vm484, %v1833, %v1834
        %v1837 = vsel %vm486, %v1835, %v1836
        %v1838 = vsel %vm488, %v1786, %v1832
        %v1839 = vsel %vm490, %v1833, %v1834
        %v1840 = vsel %vm492, %v1838, %v1839
        %v1841 = vrot.slane %v1840, 1
        %v1844 = vadd.f32 %v1763, %v1837
        %v1845 = vadd.f32 %v1765, %v1841
        %v1846 = vxor.u32 %v1844, 2147483648
        %v1847 = vxor.u32 %v1845, 2147483648
        %v1848 = vmul.f32 %v1846, 1.442695
        %v1849 = vpow.pop %v1848
        %v1850 = vmul.f32 %v1847, 1.442695
        %v1851 = vpow.pop %v1850
        %v1852 = vadd.f32 %v1849, 1.0
        %v1853 = vadd.f32 %v1851, 1.0
        %v1854 = vrcp.pop %v1852
        %v1855 = vmul.f32 %v1852, %v1854
        %v1856 = vsub.f32 1.0, %v1855
        %v1857 = vmul.f32 %v1854, %v1856
        %v1858 = vadd.f32 %v1854, %v1857
        %vm1859 = vweird.f32 %v1852
        %vm1860 = vweird.f32 %v1854
        %vm1861 = vmor %vm1859, %vm1860
        %v1862 = vsel %vm1861, %v1854, %v1858
        %v1863 = vand.u32 2147483647, %v1852
        %vm1864 = vcmp.eq.f32.partialorder %v1863, 8.507059e+37
        %v1865 = vand.u32 %v1852, 2147483648
        %v1866 = vor.u32 1.1754944e-38, %v1865
        %v1867 = vsel %vm1864, %v1866, %v1862
        %v1868 = vmul.f32 1.0, %v1867
        %v1869 = vrcp.pop %v1853
        %v1870 = vmul.f32 %v1853, %v1869
        %v1871 = vsub.f32 1.0, %v1870
        %v1872 = vmul.f32 %v1869, %v1871
        %v1873 = vadd.f32 %v1869, %v1872
        %vm1874 = vweird.f32 %v1853
        %vm1875 = vweird.f32 %v1869
        %vm1876 = vmor %vm1874, %vm1875
        %v1877 = vsel %vm1876, %v1869, %v1873
        %v1878 = vand.u32 2147483647, %v1853
        %vm1879 = vcmp.eq.f32.partialorder %v1878, 8.507059e+37
        %v1880 = vand.u32 %v1853, 2147483648
        %v1881 = vor.u32 1.1754944e-38, %v1880
        %v1882 = vsel %vm1879, %v1881, %v1877
        %v1883 = vmul.f32 1.0, %v1882
        %v1886 = vrot.slane %v1844, 1
        %v1887 = vrot.slane %v1845, 1
        %v1890 = vxor.u32 %v1886, 2147483648
        %v1891 = vxor.u32 %v1887, 2147483648
        %v1892 = vmul.f32 %v1890, 1.442695
        %v1893 = vpow.pop %v1892
        %v1894 = vmul.f32 %v1891, 1.442695
        %v1895 = vpow.pop %v1894
        %v1896 = vadd.f32 %v1893, 1.0
        %v1897 = vadd.f32 %v1895, 1.0
        %v1898 = vrcp.pop %v1896
        %v1899 = vmul.f32 %v1896, %v1898
        %v1900 = vsub.f32 1.0, %v1899
        %v1901 = vmul.f32 %v1898, %v1900
        %v1902 = vadd.f32 %v1898, %v1901
        %vm1903 = vweird.f32 %v1896
        %vm1904 = vweird.f32 %v1898
        %vm1905 = vmor %vm1903, %vm1904
        %v1906 = vsel %vm1905, %v1898, %v1902
        %v1907 = vand.u32 2147483647, %v1896
        %vm1908 = vcmp.eq.f32.partialorder %v1907, 8.507059e+37
        %v1909 = vand.u32 %v1896, 2147483648
        %v1910 = vor.u32 1.1754944e-38, %v1909
        %v1911 = vsel %vm1908, %v1910, %v1906
        %v1912 = vmul.f32 1.0, %v1911
        %v1913 = vrcp.pop %v1897
        %v1914 = vmul.f32 %v1897, %v1913
        %v1915 = vsub.f32 1.0, %v1914
        %v1916 = vmul.f32 %v1913, %v1915
        %v1917 = vadd.f32 %v1913, %v1916
        %vm1918 = vweird.f32 %v1897
        %vm1919 = vweird.f32 %v1913
        %vm1920 = vmor %vm1918, %vm1919
        %v1921 = vsel %vm1920, %v1913, %v1917
        %v1922 = vand.u32 2147483647, %v1897
        %vm1923 = vcmp.eq.f32.partialorder %v1922, 8.507059e+37
        %v1924 = vand.u32 %v1897, 2147483648
        %v1925 = vor.u32 1.1754944e-38, %v1924
        %v1926 = vsel %vm1923, %v1925, %v1921
        %v1927 = vmul.f32 1.0, %v1926
        %v1928 = vrot.slane %v1844, 2
        %v1929 = vrot.slane %v1845, 2
        %v1932 = vtanh.pop %v1928
        %v1933 = vtanh.pop %v1929
        %v1934 = vrot.slane %v1844, 3
        %v1935 = vrot.slane %v1845, 3
        %v1938 = vxor.u32 %v1934, 2147483648
        %v1939 = vxor.u32 %v1935, 2147483648
        %v1940 = vmul.f32 %v1938, 1.442695
        %v1941 = vpow.pop %v1940
        %v1942 = vmul.f32 %v1939, 1.442695
        %v1943 = vpow.pop %v1942
        %v1944 = vadd.f32 %v1941, 1.0
        %v1945 = vadd.f32 %v1943, 1.0
        %v1946 = vrcp.pop %v1944
        %v1947 = vmul.f32 %v1944, %v1946
        %v1948 = vsub.f32 1.0, %v1947
        %v1949 = vmul.f32 %v1946, %v1948
        %v1950 = vadd.f32 %v1946, %v1949
        %vm1951 = vweird.f32 %v1944
        %vm1952 = vweird.f32 %v1946
        %vm1953 = vmor %vm1951, %vm1952
        %v1954 = vsel %vm1953, %v1946, %v1950
        %v1955 = vand.u32 2147483647, %v1944
        %vm1956 = vcmp.eq.f32.partialorder %v1955, 8.507059e+37
        %v1957 = vand.u32 %v1944, 2147483648
        %v1958 = vor.u32 1.1754944e-38, %v1957
        %v1959 = vsel %vm1956, %v1958, %v1954
        %v1960 = vmul.f32 1.0, %v1959
        %v1961 = vrcp.pop %v1945
        %v1962 = vmul.f32 %v1945, %v1961
        %v1963 = vsub.f32 1.0, %v1962
        %v1964 = vmul.f32 %v1961, %v1963
        %v1965 = vadd.f32 %v1961, %v1964
        %vm1966 = vweird.f32 %v1945
        %vm1967 = vweird.f32 %v1961
        %vm1968 = vmor %vm1966, %vm1967
        %v1969 = vsel %vm1968, %v1961, %v1965
        %v1970 = vand.u32 2147483647, %v1945
        %vm1971 = vcmp.eq.f32.partialorder %v1970, 8.507059e+37
        %v1972 = vand.u32 %v1945, 2147483648
        %v1973 = vor.u32 1.1754944e-38, %v1972
        %v1974 = vsel %vm1971, %v1973, %v1969
        %v1975 = vmul.f32 1.0, %v1974
        %v1976 = vmul.f32 %v1912, %v1756
        %v1977 = vmul.f32 %v1927, %v1757
        %v1978 = vmul.f32 %v1868, %v1932
        %v1979 = vmul.f32 %v1883, %v1933
        %v1980 = vadd.f32 %v1976, %v1978
        %v1981 = vadd.f32 %v1977, %v1979
        %v1982 = vtanh.pop %v1980
        %v1983 = vtanh.pop %v1981
        %v1984 = vmul.f32 %v1960, %v1982
        %v1985 = vmul.f32 %v1975, %v1983
        %s1986 = scalar_lea.vmem %s201, 7 [#allocation5]
        %v1987 = vld [vmem:[%s1986] ss:$8 sm:$0xf]
        %s1988 = scalar_lea.vmem %s201, 39 [#allocation5]
        %v1989 = vld [vmem:[%s1988] ss:$8 sm:$0xf]
        %v1990 = vpack.c.bf16 %v1984, %v1984
        %v1991 = vpack.c.bf16 %v1985, %v1985
        %v1994 = vunpack.c.l.b16 %v1990
        %v1995 = vunpack.c.l.b16 %v1991
        %v1996 = vrot.slane %v1995, 7
        %v1997 = vsel %vm488, %v1996, %v1994
        %v1998 = vpack.c.b16 %v1997, %v1997
        %2000 = vmatpush.bf16.msra.mxu0 %v387
        %2001 = vmatpush.bf16.msra.mxu0 %v383
        %2002 = vmatpush.bf16.msra.mxu0 %v379
        %2003 = vmatpush.bf16.msra.mxu0 %v375
        %2004 = vmatpush.bf16.msra.mxu0 %v371
        %2005 = vmatpush.bf16.msra.mxu0 %v367
        %2006 = vmatpush.bf16.msra.mxu0 %v363
        %2007 = vmatpush.bf16.msra.mxu0 %v359
        %2008 = vmatmul.bf16.gmra.mxu0 %v1998
        %v2009 = vpop.f32.mrf.mxu0
        %v2010 = vadd.f32 0.0, %v2009
        %v2011 = vpop.f32.mrf.mxu0
        %2012 = vdwg.mxu0
        %2013 = vmatpush.bf16.msra.mxu0 %v388
        %2014 = vmatpush.bf16.msra.mxu0 %v384
        %2015 = vmatpush.bf16.msra.mxu0 %v380
        %2016 = vmatpush.bf16.msra.mxu0 %v376
        %2017 = vmatpush.bf16.msra.mxu0 %v372
        %2018 = vmatpush.bf16.msra.mxu0 %v368
        %2019 = vmatpush.bf16.msra.mxu0 %v364
        %2020 = vmatpush.bf16.msra.mxu0 %v360
        %2021 = vmatmul.bf16.gmra.mxu0 %v1998
        %v2022 = vpop.f32.mrf.mxu0
        %v2023 = vadd.f32 0.0, %v2022
        %v2024 = vpop.f32.mrf.mxu0
        %2025 = vdwg.mxu0
        %2026 = vmatpush.bf16.msra.mxu0 %v389
        %2027 = vmatpush.bf16.msra.mxu0 %v385
        %2028 = vmatpush.bf16.msra.mxu0 %v381
        %2029 = vmatpush.bf16.msra.mxu0 %v377
        %2030 = vmatpush.bf16.msra.mxu0 %v373
        %2031 = vmatpush.bf16.msra.mxu0 %v369
        %2032 = vmatpush.bf16.msra.mxu0 %v365
        %2033 = vmatpush.bf16.msra.mxu0 %v361
        %2034 = vmatmul.bf16.gmra.mxu0 %v1998
        %v2035 = vpop.f32.mrf.mxu0
        %v2036 = vadd.f32 0.0, %v2035
        %v2037 = vpop.f32.mrf.mxu0
        %2038 = vdwg.mxu0
        %2039 = vmatpush.bf16.msra.mxu0 %v390
        %2040 = vmatpush.bf16.msra.mxu0 %v386
        %2041 = vmatpush.bf16.msra.mxu0 %v382
        %2042 = vmatpush.bf16.msra.mxu0 %v378
        %2043 = vmatpush.bf16.msra.mxu0 %v374
        %2044 = vmatpush.bf16.msra.mxu0 %v370
        %2045 = vmatpush.bf16.msra.mxu0 %v366
        %2046 = vmatpush.bf16.msra.mxu0 %v362
        %2047 = vmatmul.bf16.gmra.mxu0 %v1998
        %v2048 = vpop.f32.mrf.mxu0
        %v2049 = vadd.f32 0.0, %v2048
        %v2050 = vpop.f32.mrf.mxu0
        %2051 = vdwg.mxu0
        %v2056 = vrot.slane %v2023, 7
        %v2057 = vrot.slane %v2036, 6
        %v2058 = vrot.slane %v2049, 5
        %v2059 = vsel %vm482, %v2010, %v2056
        %v2060 = vsel %vm484, %v2057, %v2058
        %v2061 = vsel %vm486, %v2059, %v2060
        %v2062 = vsel %vm488, %v2010, %v2056
        %v2063 = vsel %vm490, %v2057, %v2058
        %v2064 = vsel %vm492, %v2062, %v2063
        %v2065 = vrot.slane %v2064, 1
        %v2068 = vadd.f32 %v1987, %v2061
        %v2069 = vadd.f32 %v1989, %v2065
        %v2070 = vxor.u32 %v2068, 2147483648
        %v2071 = vxor.u32 %v2069, 2147483648
        %v2072 = vmul.f32 %v2070, 1.442695
        %v2073 = vpow.pop %v2072
        %v2074 = vmul.f32 %v2071, 1.442695
        %v2075 = vpow.pop %v2074
        %v2076 = vadd.f32 %v2073, 1.0
        %v2077 = vadd.f32 %v2075, 1.0
        %v2078 = vrcp.pop %v2076
        %v2079 = vmul.f32 %v2076, %v2078
        %v2080 = vsub.f32 1.0, %v2079
        %v2081 = vmul.f32 %v2078, %v2080
        %v2082 = vadd.f32 %v2078, %v2081
        %vm2083 = vweird.f32 %v2076
        %vm2084 = vweird.f32 %v2078
        %vm2085 = vmor %vm2083, %vm2084
        %v2086 = vsel %vm2085, %v2078, %v2082
        %v2087 = vand.u32 2147483647, %v2076
        %vm2088 = vcmp.eq.f32.partialorder %v2087, 8.507059e+37
        %v2089 = vand.u32 %v2076, 2147483648
        %v2090 = vor.u32 1.1754944e-38, %v2089
        %v2091 = vsel %vm2088, %v2090, %v2086
        %v2092 = vmul.f32 1.0, %v2091
        %v2093 = vrcp.pop %v2077
        %v2094 = vmul.f32 %v2077, %v2093
        %v2095 = vsub.f32 1.0, %v2094
        %v2096 = vmul.f32 %v2093, %v2095
        %v2097 = vadd.f32 %v2093, %v2096
        %vm2098 = vweird.f32 %v2077
        %vm2099 = vweird.f32 %v2093
        %vm2100 = vmor %vm2098, %vm2099
        %v2101 = vsel %vm2100, %v2093, %v2097
        %v2102 = vand.u32 2147483647, %v2077
        %vm2103 = vcmp.eq.f32.partialorder %v2102, 8.507059e+37
        %v2104 = vand.u32 %v2077, 2147483648
        %v2105 = vor.u32 1.1754944e-38, %v2104
        %v2106 = vsel %vm2103, %v2105, %v2101
        %v2107 = vmul.f32 1.0, %v2106
        %v2110 = vrot.slane %v2068, 1
        %v2111 = vrot.slane %v2069, 1
        %v2114 = vxor.u32 %v2110, 2147483648
        %v2115 = vxor.u32 %v2111, 2147483648
        %v2116 = vmul.f32 %v2114, 1.442695
        %v2117 = vpow.pop %v2116
        %v2118 = vmul.f32 %v2115, 1.442695
        %v2119 = vpow.pop %v2118
        %v2120 = vadd.f32 %v2117, 1.0
        %v2121 = vadd.f32 %v2119, 1.0
        %v2122 = vrcp.pop %v2120
        %v2123 = vmul.f32 %v2120, %v2122
        %v2124 = vsub.f32 1.0, %v2123
        %v2125 = vmul.f32 %v2122, %v2124
        %v2126 = vadd.f32 %v2122, %v2125
        %vm2127 = vweird.f32 %v2120
        %vm2128 = vweird.f32 %v2122
        %vm2129 = vmor %vm2127, %vm2128
        %v2130 = vsel %vm2129, %v2122, %v2126
        %v2131 = vand.u32 2147483647, %v2120
        %vm2132 = vcmp.eq.f32.partialorder %v2131, 8.507059e+37
        %v2133 = vand.u32 %v2120, 2147483648
        %v2134 = vor.u32 1.1754944e-38, %v2133
        %v2135 = vsel %vm2132, %v2134, %v2130
        %v2136 = vmul.f32 1.0, %v2135
        %v2137 = vrcp.pop %v2121
        %v2138 = vmul.f32 %v2121, %v2137
        %v2139 = vsub.f32 1.0, %v2138
        %v2140 = vmul.f32 %v2137, %v2139
        %v2141 = vadd.f32 %v2137, %v2140
        %vm2142 = vweird.f32 %v2121
        %vm2143 = vweird.f32 %v2137
        %vm2144 = vmor %vm2142, %vm2143
        %v2145 = vsel %vm2144, %v2137, %v2141
        %v2146 = vand.u32 2147483647, %v2121
        %vm2147 = vcmp.eq.f32.partialorder %v2146, 8.507059e+37
        %v2148 = vand.u32 %v2121, 2147483648
        %v2149 = vor.u32 1.1754944e-38, %v2148
        %v2150 = vsel %vm2147, %v2149, %v2145
        %v2151 = vmul.f32 1.0, %v2150
        %v2152 = vrot.slane %v2068, 2
        %v2153 = vrot.slane %v2069, 2
        %v2156 = vtanh.pop %v2152
        %v2157 = vtanh.pop %v2153
        %v2158 = vrot.slane %v2068, 3
        %v2159 = vrot.slane %v2069, 3
        %v2162 = vxor.u32 %v2158, 2147483648
        %v2163 = vxor.u32 %v2159, 2147483648
        %v2164 = vmul.f32 %v2162, 1.442695
        %v2165 = vpow.pop %v2164
        %v2166 = vmul.f32 %v2163, 1.442695
        %v2167 = vpow.pop %v2166
        %v2168 = vadd.f32 %v2165, 1.0
        %v2169 = vadd.f32 %v2167, 1.0
        %v2170 = vrcp.pop %v2168
        %v2171 = vmul.f32 %v2168, %v2170
        %v2172 = vsub.f32 1.0, %v2171
        %v2173 = vmul.f32 %v2170, %v2172
        %v2174 = vadd.f32 %v2170, %v2173
        %vm2175 = vweird.f32 %v2168
        %vm2176 = vweird.f32 %v2170
        %vm2177 = vmor %vm2175, %vm2176
        %v2178 = vsel %vm2177, %v2170, %v2174
        %v2179 = vand.u32 2147483647, %v2168
        %vm2180 = vcmp.eq.f32.partialorder %v2179, 8.507059e+37
        %v2181 = vand.u32 %v2168, 2147483648
        %v2182 = vor.u32 1.1754944e-38, %v2181
        %v2183 = vsel %vm2180, %v2182, %v2178
        %v2184 = vmul.f32 1.0, %v2183
        %v2185 = vrcp.pop %v2169
        %v2186 = vmul.f32 %v2169, %v2185
        %v2187 = vsub.f32 1.0, %v2186
        %v2188 = vmul.f32 %v2185, %v2187
        %v2189 = vadd.f32 %v2185, %v2188
        %vm2190 = vweird.f32 %v2169
        %vm2191 = vweird.f32 %v2185
        %vm2192 = vmor %vm2190, %vm2191
        %v2193 = vsel %vm2192, %v2185, %v2189
        %v2194 = vand.u32 2147483647, %v2169
        %vm2195 = vcmp.eq.f32.partialorder %v2194, 8.507059e+37
        %v2196 = vand.u32 %v2169, 2147483648
        %v2197 = vor.u32 1.1754944e-38, %v2196
        %v2198 = vsel %vm2195, %v2197, %v2193
        %v2199 = vmul.f32 1.0, %v2198
        %v2200 = vmul.f32 %v2136, %v1980
        %v2201 = vmul.f32 %v2151, %v1981
        %v2202 = vmul.f32 %v2092, %v2156
        %v2203 = vmul.f32 %v2107, %v2157
        %v2204 = vadd.f32 %v2200, %v2202
        %v2205 = vadd.f32 %v2201, %v2203
        %v2206 = vtanh.pop %v2204
        %v2207 = vtanh.pop %v2205
        %v2208 = vmul.f32 %v2184, %v2206
        %v2209 = vmul.f32 %v2199, %v2207
        %2212 = vst [vmem:[#allocation1] ss:$9 sm:$0xff] %v2208
        %s2213 = scalar_lea.vmem [#allocation1], 1
        %2214 = vst [vmem:[%s2213] ss:$9 sm:$0xff] %v2209
        %v2215 = vld [vmem:[#allocation1] sm:$0xff]
        %2217 = vst [vmem:[#allocation2] sm:$0x3] %v2215
        %2220 = vst [vmem:[#allocation1] ss:$9 sm:$0xff] %v2204
        %s2221 = scalar_lea.vmem [#allocation1], 1
        %2222 = vst [vmem:[%s2221] ss:$9 sm:$0xff] %v2205
        %v2223 = vld [vmem:[#allocation1] sm:$0xff]
        %2225 = vst [vmem:[#allocation3] sm:$0x3] %v2223
        %p2226 = scmp.eq.s32.totalorder %s17, 1
        // Predicated region
        $region64: #{_lambda_.3} parent=54 // pred_check
          %p2227 = pneg %p2226
        $region65: #{_lambda_.3} parent=54 // pred_check_branch
          %2229 = sbr.rel (%p2227) target = $region67
        $region66: #{_lambda_.3} parent=54 // pred_region
          %v2230 = vpack.c.bf16 %v2208, %v2208
          %v2231 = vpack.c.bf16 %v2209, %v2209
          %v2232 = vld [vmem:[%s2] sm:$0xf]
          %v2233 = vld [vmem:[%s2 + $0x4] sm:$0xf]
          %v2234 = vld [vmem:[%s2 + $0x8] sm:$0xf]
          %v2235 = vld [vmem:[%s2 + $0xc] sm:$0xf]
          %v2236 = vld [vmem:[%s2 + $0x10] sm:$0xf]
          %v2237 = vld [vmem:[%s2 + $0x14] sm:$0xf]
          %v2238 = vld [vmem:[%s2 + $0x18] sm:$0xf]
          %v2239 = vld [vmem:[%s2 + $0x1c] sm:$0xf]
          %v2240 = vld [vmem:[%s2 + $0x20] sm:$0xf]
          %v2241 = vld [vmem:[%s2 + $0x24] sm:$0xf]
          %v2242 = vld [vmem:[%s2 + $0x28] sm:$0xf]
          %v2243 = vld [vmem:[%s2 + $0x2c] sm:$0xf]
          %v2244 = vld [vmem:[%s2 + $0x30] sm:$0xf]
          %v2245 = vld [vmem:[%s2 + $0x34] sm:$0xf]
          %v2246 = vld [vmem:[%s2 + $0x38] sm:$0xf]
          %v2247 = vld [vmem:[%s2 + $0x3c] sm:$0xf]
          %v2248 = vld [vmem:[#allocation4] sm:$0x1]
          %v2250 = vperm.slane %v2248, 0
          %v2254 = vunpack.c.l.b16 %v2230
          %v2255 = vunpack.c.l.b16 %v2231
          %v2256 = vrot.slane %v2255, 7
          %v2257 = vsel %vm488, %v2256, %v2254
          %v2258 = vpack.c.b16 %v2257, %v2257
          %v2276 = vunpack.c.l.b16 %v2232
          %v2277 = vunpack.c.l.b16 %v2233
          %v2278 = vunpack.c.l.b16 %v2234
          %v2279 = vunpack.c.l.b16 %v2235
          %v2280 = vunpack.c.l.b16 %v2236
          %v2281 = vunpack.c.l.b16 %v2237
          %v2282 = vunpack.c.l.b16 %v2238
          %v2283 = vunpack.c.l.b16 %v2239
          %v2284 = vunpack.c.l.b16 %v2240
          %v2285 = vunpack.c.l.b16 %v2241
          %v2286 = vunpack.c.l.b16 %v2242
          %v2287 = vunpack.c.l.b16 %v2243
          %v2288 = vunpack.c.l.b16 %v2244
          %v2289 = vunpack.c.l.b16 %v2245
          %v2290 = vunpack.c.l.b16 %v2246
          %v2291 = vunpack.c.l.b16 %v2247
          %v2292 = vpack.c.b16 %v2277, %v2276
          %v2293 = vpack.c.b16 %v2279, %v2278
          %v2294 = vpack.c.b16 %v2281, %v2280
          %v2295 = vpack.c.b16 %v2283, %v2282
          %v2296 = vpack.c.b16 %v2285, %v2284
          %v2297 = vpack.c.b16 %v2287, %v2286
          %v2298 = vpack.c.b16 %v2289, %v2288
          %v2299 = vpack.c.b16 %v2291, %v2290
          %2308 = vmatpush.bf16.msra.mxu0 %v2299
          %2309 = vmatpush.bf16.msra.mxu0 %v2298
          %2310 = vmatpush.bf16.msra.mxu0 %v2297
          %2311 = vmatpush.bf16.msra.mxu0 %v2296
          %2312 = vmatpush.bf16.msra.mxu0 %v2295
          %2313 = vmatpush.bf16.msra.mxu0 %v2294
          %2314 = vmatpush.bf16.msra.mxu0 %v2293
          %2315 = vmatpush.bf16.msra.mxu0 %v2292
          %2316 = vmatmul.bf16.gmra.mxu0 %v2258
          %v2317 = vpop.f32.mrf.mxu0
          %v2318 = vadd.f32 %v2250, %v2317
          %v2319 = vpop.f32.mrf.mxu0
          %2320 = vdwg.mxu0
          %vm2321 = vcmask 1024
          %2322 = vst.msk [vmem:[%s4] sm:$0x3] %vm2321, %v2318
        $region67: #{_lambda_.3} parent=54 // pred_fallthru
          _
        // Predicated region
        $region68: #{_lambda_.3} parent=54 // pred_check
          %p2323 = pneg %p119
        $region69: #{_lambda_.3} parent=54 // pred_check_branch
          %2325 = sbr.rel (%p2323) target = $region71
        $region70: #{_lambda_.3} parent=54 // pred_region
          _
        $region71: #{_lambda_.3} parent=54 // pred_fallthru
          _
        // Predicated region
        $region72: #{_lambda_.3} parent=54 // pred_check
          %p2326 = pneg %p119
        $region73: #{_lambda_.3} parent=54 // pred_check_branch
          %2328 = sbr.rel (%p2326) target = $region75
        $region74: #{_lambda_.3} parent=54 // pred_region
          _
        $region75: #{_lambda_.3} parent=54 // pred_fallthru
          _
      $region55: #{_lambda_.3} parent=5 // pred_fallthru
        _
      %p2329 = scmp.le.s32.totalorder 2, %s12
      // Predicated region
      $region76: #{_lambda_.3} parent=5 // pred_check
        %p2330 = pneg %p2329
      $region77: #{_lambda_.3} parent=5 // pred_check_branch
        %2332 = sbr.rel (%p2330) target = $region79
      $region78: #{_lambda_.3} parent=5 // pred_region
        %s2333 = ssub.s32 %s12, 2
      $region79: #{_lambda_.3} parent=5 // pred_fallthru
        _
    $region6: #{_lambda_.3} parent=1 // loop_footer
      %s16 = sadd.s32 1, %s12
    $region7: #{_lambda_.3} parent=1 // loop_footer_branch
      %11 = sbr.rel target = $region3
    $region8: #{_lambda_.3} parent=1 // loop_exit
      _

// kernel: _lambda_.2
$region0: #{_lambda_.2}
  #allocation0 [shape = 'u32[]', space=smem, size = 0x4, offset = 0x4, fixed_abs, tag = 'smem constant byte address 0x4 - core index']
  #allocation1 [shape = 'u32[72,128]{1,0:T(1,128)}', space=vmem, size = 0x9000, scoped, tag = 'internal scratch']
  %s0 = inlined_call_operand.vmem [shape: f32[32,4], index: 0, kind: input, shape index: {}]
  %s1 = inlined_call_operand.vmem [shape: bf16[4,128], index: 1, kind: input, shape index: {}]
  %s2 = inlined_call_operand.vmem [shape: bf16[4,128], index: 2, kind: input, shape index: {}]
  %s3 = inlined_call_operand.vmem [shape: f32[1,128], index: 3, kind: input, shape index: {}]
  %s4 = inlined_call_operand.hbm [shape: bf16[3,128,256], index: 4, kind: input, shape index: {}]
  %s5 = inlined_call_operand.hbm [shape: bf16[3,128,256], index: 5, kind: input, shape index: {}]
  %s6 = inlined_call_operand.vmem [shape: f32[3,1,256], index: 6, kind: input, shape index: {}]
  %s7 = inlined_call_operand.hbm [shape: bf16[3,128,128], index: 7, kind: input, shape index: {}]
  %s8 = inlined_call_operand.vmem [shape: f32[3,1,128], index: 8, kind: input, shape index: {}]
  %s9 = inlined_call_operand.hbm [shape: bf16[3,128,128], index: 9, kind: input, shape index: {}]
  %s10 = inlined_call_operand.vmem [shape: f32[3,1,128], index: 10, kind: input, shape index: {}]
  %s11 = inlined_call_operand.hbm [shape: bf16[128,512], index: 11, kind: input, shape index: {}]
  %s12 = inlined_call_operand.vmem [shape: f32[1,512], index: 12, kind: input, shape index: {}]
  %s13 = inlined_call_operand.vmem [shape: f32[32,512], index: 13, kind: output, shape index: {}]
  %s14 = sld [smem:[#allocation0]]
  $region82: #{_lambda_.2} parent=0
    _
  %s16 = ssub.s32 1, %s14
  %s17 = scalar_select 0, %s16, %s14
  $region1: #{_lambda_.2} parent=0
    #allocation2 [shape = 'u8[196608]{0}', space=vmem, size = 0x30000, scoped, tag = 'input window, operand 4, single buffered']
    #allocation3 [shape = 's32[1]{0}', space=sflag, size = 0x4, scoped, tag = 'scoped memory for _lambda_.2']
    #allocation4 [shape = 'u8[196608]{0}', space=vmem, size = 0x30000, scoped, tag = 'input window, operand 5, single buffered']
    #allocation5 [shape = 's32[1]{0}', space=sflag, size = 0x4, scoped, tag = 'scoped memory for _lambda_.2']
    #allocation6 [shape = 'u8[98304]{0}', space=vmem, size = 0x18000, scoped, tag = 'input window, operand 7, single buffered']
    #allocation7 [shape = 'u8[98304]{0}', space=vmem, size = 0x18000, scoped, tag = 'input window, operand 9, single buffered']
    #allocation8 [shape = 's32[1]{0}', space=sflag, size = 0x4, scoped, tag = 'scoped memory for _lambda_.2']
    #allocation9 [shape = 'u8[131072]{0}', space=vmem, size = 0x20000, scoped, tag = 'input window, operand 11, single buffered']
    %18 = vsyncpa [#allocation3], 0
    %19 = vsyncpa [#allocation5], 0
    %20 = vsyncpa [#allocation8], 0
    // Predicated region
    $region2: #{_lambda_.2} parent=1 // pred_check
      _
    $region3: #{_lambda_.2} parent=1 // pred_check_branch
      %22 = sbr.rel (0) target = $region5
    $region4: #{_lambda_.2} parent=1 // pred_region
      _
    $region5: #{_lambda_.2} parent=1 // pred_fallthru
      _
    // Predicated region
    $region6: #{_lambda_.2} parent=1 // pred_check
      _
    $region7: #{_lambda_.2} parent=1 // pred_check_branch
      %24 = sbr.rel (0) target = $region9
    $region8: #{_lambda_.2} parent=1 // pred_region
      _
    $region9: #{_lambda_.2} parent=1 // pred_fallthru
      _
    // Predicated region
    $region10: #{_lambda_.2} parent=1 // pred_check
      _
    $region11: #{_lambda_.2} parent=1 // pred_check_branch
      %26 = sbr.rel (0) target = $region13
    $region12: #{_lambda_.2} parent=1 // pred_region
      _
    $region13: #{_lambda_.2} parent=1 // pred_fallthru
      _
    // Predicated region
    $region14: #{_lambda_.2} parent=1 // pred_check
      _
    $region15: #{_lambda_.2} parent=1 // pred_check_branch
      %28 = sbr.rel (0) target = $region17
    $region16: #{_lambda_.2} parent=1 // pred_region
      _
    $region17: #{_lambda_.2} parent=1 // pred_fallthru
      _
    // Predicated region
    $region18: #{_lambda_.2} parent=1 // pred_check
      _
    $region19: #{_lambda_.2} parent=1 // pred_check_branch
      %30 = sbr.rel (0) target = $region21
    $region20: #{_lambda_.2} parent=1 // pred_region
      %32 = vsyncadd [#allocation3], 0
      %s33 = sshll.u32 %s4, 4
      %s34 = int_to_ptr.hbm [resolvable:$true] %s33
      %s35 = sshll.u32 [#allocation2], 4
      %s36 = int_to_ptr.vmem [resolvable:$true] %s35
      %41 = dma.hbm_to_vmem [thread:$0]  %s34, 6144, %s36, [#allocation3], 128, 128, 8
    $region21: #{_lambda_.2} parent=1 // pred_fallthru
      _
    // Predicated region
    $region22: #{_lambda_.2} parent=1 // pred_check
      _
    $region23: #{_lambda_.2} parent=1 // pred_check_branch
      %43 = sbr.rel (0) target = $region25
    $region24: #{_lambda_.2} parent=1 // pred_region
      %45 = vsyncadd [#allocation5], 0
      %s46 = sshll.u32 %s5, 4
      %s47 = int_to_ptr.hbm [resolvable:$true] %s46
      %s48 = sshll.u32 [#allocation4], 4
      %s49 = int_to_ptr.vmem [resolvable:$true] %s48
      %54 = dma.hbm_to_vmem [thread:$0]  %s47, 6144, %s49, [#allocation5], 128, 128, 8
    $region25: #{_lambda_.2} parent=1 // pred_fallthru
      _
    // Predicated region
    $region26: #{_lambda_.2} parent=1 // pred_check
      _
    $region27: #{_lambda_.2} parent=1 // pred_check_branch
      %56 = sbr.rel (0) target = $region29
    $region28: #{_lambda_.2} parent=1 // pred_region
      _
    $region29: #{_lambda_.2} parent=1 // pred_fallthru
      _
    // Predicated region
    $region30: #{_lambda_.2} parent=1 // pred_check
      _
    $region31: #{_lambda_.2} parent=1 // pred_check_branch
      %58 = sbr.rel (0) target = $region33
    $region32: #{_lambda_.2} parent=1 // pred_region
      %60 = vsyncadd [#allocation5], 0
      %s61 = sshll.u32 %s7, 4
      %s62 = int_to_ptr.hbm [resolvable:$true] %s61
      %s63 = sshll.u32 [#allocation6], 4
      %s64 = int_to_ptr.vmem [resolvable:$true] %s63
      %69 = dma.hbm_to_vmem [thread:$0]  %s62, 3072, %s64, [#allocation5], 64, 64, 4
    $region33: #{_lambda_.2} parent=1 // pred_fallthru
      _
    // Predicated region
    $region34: #{_lambda_.2} parent=1 // pred_check
      _
    $region35: #{_lambda_.2} parent=1 // pred_check_branch
      %71 = sbr.rel (0) target = $region37
    $region36: #{_lambda_.2} parent=1 // pred_region
      _
    $region37: #{_lambda_.2} parent=1 // pred_fallthru
      _
    // Predicated region
    $region38: #{_lambda_.2} parent=1 // pred_check
      _
    $region39: #{_lambda_.2} parent=1 // pred_check_branch
      %73 = sbr.rel (0) target = $region41
    $region40: #{_lambda_.2} parent=1 // pred_region
      %75 = vsyncadd [#allocation8], 0
      %s76 = sshll.u32 %s9, 4
      %s77 = int_to_ptr.hbm [resolvable:$true] %s76
      %s78 = sshll.u32 [#allocation7], 4
      %s79 = int_to_ptr.vmem [resolvable:$true] %s78
      %84 = dma.hbm_to_vmem [thread:$0]  %s77, 3072, %s79, [#allocation8], 64, 64, 4
    $region41: #{_lambda_.2} parent=1 // pred_fallthru
      _
    // Predicated region
    $region42: #{_lambda_.2} parent=1 // pred_check
      _
    $region43: #{_lambda_.2} parent=1 // pred_check_branch
      %86 = sbr.rel (0) target = $region45
    $region44: #{_lambda_.2} parent=1 // pred_region
      _
    $region45: #{_lambda_.2} parent=1 // pred_fallthru
      _
    // Predicated region
    $region46: #{_lambda_.2} parent=1 // pred_check
      _
    $region47: #{_lambda_.2} parent=1 // pred_check_branch
      %88 = sbr.rel (0) target = $region49
    $region48: #{_lambda_.2} parent=1 // pred_region
      %90 = vsyncadd [#allocation8], 0
      %s91 = sshll.u32 %s11, 4
      %s92 = int_to_ptr.hbm [resolvable:$true] %s91
      %s93 = sshll.u32 [#allocation9], 4
      %s94 = int_to_ptr.vmem [resolvable:$true] %s93
      %99 = dma.hbm_to_vmem [thread:$0]  %s92, 4096, %s94, [#allocation8], 256, 256, 16
    $region49: #{_lambda_.2} parent=1 // pred_fallthru
      _
    // Predicated region
    $region50: #{_lambda_.2} parent=1 // pred_check
      _
    $region51: #{_lambda_.2} parent=1 // pred_check_branch
      %101 = sbr.rel (0) target = $region53
    $region52: #{_lambda_.2} parent=1 // pred_region
      _
    $region53: #{_lambda_.2} parent=1 // pred_fallthru
      _
    // Predicated region
    $region54: #{_lambda_.2} parent=1 // pred_check
      _
    $region55: #{_lambda_.2} parent=1 // pred_check_branch
      %103 = sbr.rel (0) target = $region57
    $region56: #{_lambda_.2} parent=1 // pred_region
      %105 = dma.done [#allocation3], 6144
    $region57: #{_lambda_.2} parent=1 // pred_fallthru
      _
    // Predicated region
    $region58: #{_lambda_.2} parent=1 // pred_check
      _
    $region59: #{_lambda_.2} parent=1 // pred_check_branch
      %107 = sbr.rel (0) target = $region61
    $region60: #{_lambda_.2} parent=1 // pred_region
      %109 = dma.done [#allocation5], 6144
    $region61: #{_lambda_.2} parent=1 // pred_fallthru
      _
    // Predicated region
    $region62: #{_lambda_.2} parent=1 // pred_check
      _
    $region63: #{_lambda_.2} parent=1 // pred_check_branch
      %111 = sbr.rel (0) target = $region65
    $region64: #{_lambda_.2} parent=1 // pred_region
      %113 = dma.done [#allocation5], 3072
    $region65: #{_lambda_.2} parent=1 // pred_fallthru
      _
    // Predicated region
    $region66: #{_lambda_.2} parent=1 // pred_check
      _
    $region67: #{_lambda_.2} parent=1 // pred_check_branch
      %115 = sbr.rel (0) target = $region69
    $region68: #{_lambda_.2} parent=1 // pred_region
      %117 = dma.done [#allocation8], 3072
    $region69: #{_lambda_.2} parent=1 // pred_fallthru
      _
    // Predicated region
    $region70: #{_lambda_.2} parent=1 // pred_check
      _
    $region71: #{_lambda_.2} parent=1 // pred_check_branch
      %119 = sbr.rel (0) target = $region73
    $region72: #{_lambda_.2} parent=1 // pred_region
      %121 = dma.done [#allocation8], 4096
    $region73: #{_lambda_.2} parent=1 // pred_fallthru
      _
    %v123 = vlaneseq
    %v124 = vshrl.u32 %v123, 7
    %v125 = vadd.s32 %v124, 8
    %v126 = vld [vmem:[%s0] sm:$0xff]
    %v127 = vld [vmem:[%s0 + $0x8] sm:$0xff]
    %v128 = vld [vmem:[%s0 + $0x10] sm:$0xff]
    %v129 = vld [vmem:[%s0 + $0x18] sm:$0xff]
    %v130 = vpack.c.bf16 %v127, %v126
    %v131 = vpack.c.bf16 %v129, %v128
    %v132 = vld [vmem:[%s1] sm:$0x3]
    %vm133 = vcmask 31744
    %v135 = vsel %vm133, %v130, 0
    %v138 = vsel %vm133, %v131, 0
    %vm140 = vcmask 1041408
    %v142 = vsel %vm140, %v132, 0
    %144 = vmatpush.bf16.msra.mxu0 0
    %145 = vmatpush.bf16.msra.mxu0 0
    %146 = vmatpush.bf16.msra.mxu0 0
    %147 = vmatpush.bf16.msra.mxu0 0
    %148 = vmatpush.bf16.msra.mxu0 0
    %149 = vmatpush.bf16.msra.mxu0 0
    %150 = vmatpush.bf16.msra.mxu0 0
    %151 = vmatpush.bf16.msra.mxu0 %v142
    %152 = vmatmul.bf16.gmra.mxu0 %v135
    %v153 = vpop.f32.mrf.mxu0
    %v154 = vadd.f32 0.0, %v153
    %v155 = vpop.f32.mrf.mxu0
    %v156 = vadd.f32 0.0, %v155
    %157 = vmatmul.bf16.gmra.mxu0 %v138
    %v158 = vpop.f32.mrf.mxu0
    %v159 = vadd.f32 0.0, %v158
    %v160 = vpop.f32.mrf.mxu0
    %v161 = vadd.f32 0.0, %v160
    %162 = vdwg.mxu0
    %vm163 = vcmp.lt.s32.totalorder %v124, 1
    %vm164 = vcmp.lt.s32.totalorder %v125, 1
    %v165 = vrot.slane %v154, 7
    %v166 = vrot.slane %v156, 7
    %v167 = vrot.slane %v159, 7
    %v168 = vrot.slane %v161, 7
    %v169 = vsel %vm163, %v167, %v168
    %v170 = vsel %vm163, %v166, %v167
    %v171 = vsel %vm163, %v165, %v166
    %v172 = vsel %vm163, %v168, %v165
    %v173 = vsel %vm163, 0.0, %v172
    %v174 = vsel %vm164, 0.0, %v171
    %v175 = vsel %vm163, 0.0, %v170
    %v176 = vsel %vm164, 0.0, %v169
    %v177 = vld [vmem:[%s2] sm:$0x3]
    %v179 = vsel %vm140, %v177, 0
    %181 = vmatpush.bf16.msra.mxu0 0
    %182 = vmatpush.bf16.msra.mxu0 0
    %183 = vmatpush.bf16.msra.mxu0 0
    %184 = vmatpush.bf16.msra.mxu0 0
    %185 = vmatpush.bf16.msra.mxu0 0
    %186 = vmatpush.bf16.msra.mxu0 0
    %187 = vmatpush.bf16.msra.mxu0 0
    %188 = vmatpush.bf16.msra.mxu0 %v179
    %189 = vmatmul.bf16.gmra.mxu0 %v135
    %v190 = vpop.f32.mrf.mxu0
    %v191 = vadd.f32 0.0, %v190
    %v192 = vpop.f32.mrf.mxu0
    %v193 = vadd.f32 0.0, %v192
    %194 = vmatmul.bf16.gmra.mxu0 %v138
    %v195 = vpop.f32.mrf.mxu0
    %v196 = vadd.f32 0.0, %v195
    %v197 = vpop.f32.mrf.mxu0
    %v198 = vadd.f32 0.0, %v197
    %199 = vdwg.mxu0
    %v200 = vadd.f32 %v173, %v191
    %v201 = vadd.f32 %v174, %v193
    %v202 = vadd.f32 %v175, %v196
    %v203 = vadd.f32 %v176, %v198
    %v204 = vld [vmem:[%s3] sm:$0x1]
    %v206 = vperm.slane %v204, 0
    %v208 = vadd.f32 %v200, %v206
    %v209 = vadd.f32 %v201, %v206
    %v210 = vadd.f32 %v202, %v206
    %v211 = vadd.f32 %v203, %v206
    %v212 = vpack.c.bf16 %v209, %v208
    %v213 = vpack.c.bf16 %v211, %v210
    %v214 = vrot.slane %v208, 7
    %v215 = vrot.slane %v209, 7
    %v216 = vrot.slane %v210, 7
    %v217 = vrot.slane %v211, 7
    %v218 = vsel %vm163, %v216, %v217
    %v219 = vsel %vm163, %v215, %v216
    %v220 = vsel %vm163, %v214, %v215
    %v221 = vsel %vm163, %v217, %v214
    %v222 = vsel %vm163, 0.0, %v221
    %v223 = vsel %vm164, 0.0, %v220
    %v224 = vsel %vm163, 0.0, %v219
    %v225 = vsel %vm164, 0.0, %v218
    %v226 = vpack.c.bf16 %v223, %v222
    %v227 = vpack.c.bf16 %v225, %v224
    %v228 = vld [vmem:[#allocation2] sm:$0xff]
    %v229 = vld [vmem:[#allocation2 + $0x8] sm:$0xff]
    %v230 = vld [vmem:[#allocation2 + $0x10] sm:$0xff]
    %v231 = vld [vmem:[#allocation2 + $0x18] sm:$0xff]
    %v232 = vld [vmem:[#allocation2 + $0x20] sm:$0xff]
    %v233 = vld [vmem:[#allocation2 + $0x28] sm:$0xff]
    %v234 = vld [vmem:[#allocation2 + $0x30] sm:$0xff]
    %v235 = vld [vmem:[#allocation2 + $0x38] sm:$0xff]
    %v236 = vld [vmem:[#allocation2 + $0x40] sm:$0xff]
    %v237 = vld [vmem:[#allocation2 + $0x48] sm:$0xff]
    %v238 = vld [vmem:[#allocation2 + $0x50] sm:$0xff]
    %v239 = vld [vmem:[#allocation2 + $0x58] sm:$0xff]
    %v240 = vld [vmem:[#allocation2 + $0x60] sm:$0xff]
    %v241 = vld [vmem:[#allocation2 + $0x68] sm:$0xff]
    %v242 = vld [vmem:[#allocation2 + $0x70] sm:$0xff]
    %v243 = vld [vmem:[#allocation2 + $0x78] sm:$0xff]
    %v244 = vld [vmem:[#allocation4] sm:$0xff]
    %v245 = vld [vmem:[#allocation4 + $0x8] sm:$0xff]
    %v246 = vld [vmem:[#allocation4 + $0x10] sm:$0xff]
    %v247 = vld [vmem:[#allocation4 + $0x18] sm:$0xff]
    %v248 = vld [vmem:[#allocation4 + $0x20] sm:$0xff]
    %v249 = vld [vmem:[#allocation4 + $0x28] sm:$0xff]
    %v250 = vld [vmem:[#allocation4 + $0x30] sm:$0xff]
    %v251 = vld [vmem:[#allocation4 + $0x38] sm:$0xff]
    %v252 = vld [vmem:[#allocation4 + $0x40] sm:$0xff]
    %v253 = vld [vmem:[#allocation4 + $0x48] sm:$0xff]
    %v254 = vld [vmem:[#allocation4 + $0x50] sm:$0xff]
    %v255 = vld [vmem:[#allocation4 + $0x58] sm:$0xff]
    %v256 = vld [vmem:[#allocation4 + $0x60] sm:$0xff]
    %v257 = vld [vmem:[#allocation4 + $0x68] sm:$0xff]
    %v258 = vld [vmem:[#allocation4 + $0x70] sm:$0xff]
    %v259 = vld [vmem:[#allocation4 + $0x78] sm:$0xff]
    %v276 = vunpack.c.l.b16 %v244
    %v277 = vunpack.c.h.b16 %v244
    %v278 = vunpack.c.l.b16 %v245
    %v279 = vunpack.c.h.b16 %v245
    %v280 = vunpack.c.l.b16 %v246
    %v281 = vunpack.c.h.b16 %v246
    %v282 = vunpack.c.l.b16 %v247
    %v283 = vunpack.c.h.b16 %v247
    %v284 = vunpack.c.l.b16 %v248
    %v285 = vunpack.c.h.b16 %v248
    %v286 = vunpack.c.l.b16 %v249
    %v287 = vunpack.c.h.b16 %v249
    %v288 = vunpack.c.l.b16 %v250
    %v289 = vunpack.c.h.b16 %v250
    %v290 = vunpack.c.l.b16 %v251
    %v291 = vunpack.c.h.b16 %v251
    %v292 = vunpack.c.l.b16 %v252
    %v293 = vunpack.c.h.b16 %v252
    %v294 = vunpack.c.l.b16 %v253
    %v295 = vunpack.c.h.b16 %v253
    %v296 = vunpack.c.l.b16 %v254
    %v297 = vunpack.c.h.b16 %v254
    %v298 = vunpack.c.l.b16 %v255
    %v299 = vunpack.c.h.b16 %v255
    %v300 = vunpack.c.l.b16 %v256
    %v301 = vunpack.c.h.b16 %v256
    %v302 = vunpack.c.l.b16 %v257
    %v303 = vunpack.c.h.b16 %v257
    %v304 = vunpack.c.l.b16 %v258
    %v305 = vunpack.c.h.b16 %v258
    %v306 = vunpack.c.l.b16 %v259
    %v307 = vunpack.c.h.b16 %v259
    %v308 = vpack.c.b16 %v278, %v276
    %v309 = vpack.c.b16 %v279, %v277
    %v310 = vpack.c.b16 %v282, %v280
    %v311 = vpack.c.b16 %v283, %v281
    %v312 = vpack.c.b16 %v286, %v284
    %v313 = vpack.c.b16 %v287, %v285
    %v314 = vpack.c.b16 %v290, %v288
    %v315 = vpack.c.b16 %v291, %v289
    %v316 = vpack.c.b16 %v294, %v292
    %v317 = vpack.c.b16 %v295, %v293
    %v318 = vpack.c.b16 %v298, %v296
    %v319 = vpack.c.b16 %v299, %v297
    %v320 = vpack.c.b16 %v302, %v300
    %v321 = vpack.c.b16 %v303, %v301
    %v322 = vpack.c.b16 %v306, %v304
    %v323 = vpack.c.b16 %v307, %v305
    %340 = vmatpush.bf16.msra.mxu0 %v322
    %341 = vmatpush.bf16.msra.mxu0 %v320
    %342 = vmatpush.bf16.msra.mxu0 %v318
    %343 = vmatpush.bf16.msra.mxu0 %v316
    %344 = vmatpush.bf16.msra.mxu0 %v314
    %345 = vmatpush.bf16.msra.mxu0 %v312
    %346 = vmatpush.bf16.msra.mxu0 %v310
    %347 = vmatpush.bf16.msra.mxu0 %v308
    %348 = vmatmul.bf16.gmra.mxu0 %v212
    %v349 = vpop.f32.mrf.mxu0
    %v350 = vadd.f32 0.0, %v349
    %v351 = vpop.f32.mrf.mxu0
    %v352 = vadd.f32 0.0, %v351
    %353 = vmatmul.bf16.gmra.mxu0 %v213
    %v354 = vpop.f32.mrf.mxu0
    %v355 = vadd.f32 0.0, %v354
    %v356 = vpop.f32.mrf.mxu0
    %v357 = vadd.f32 0.0, %v356
    %358 = vdwg.mxu0
    %359 = vmatpush.bf16.msra.mxu0 %v323
    %360 = vmatpush.bf16.msra.mxu0 %v321
    %361 = vmatpush.bf16.msra.mxu0 %v319
    %362 = vmatpush.bf16.msra.mxu0 %v317
    %363 = vmatpush.bf16.msra.mxu0 %v315
    %364 = vmatpush.bf16.msra.mxu0 %v313
    %365 = vmatpush.bf16.msra.mxu0 %v311
    %366 = vmatpush.bf16.msra.mxu0 %v309
    %367 = vmatmul.bf16.gmra.mxu0 %v212
    %v368 = vpop.f32.mrf.mxu0
    %v369 = vadd.f32 0.0, %v368
    %v370 = vpop.f32.mrf.mxu0
    %v371 = vadd.f32 0.0, %v370
    %372 = vmatmul.bf16.gmra.mxu0 %v213
    %v373 = vpop.f32.mrf.mxu0
    %v374 = vadd.f32 0.0, %v373
    %v375 = vpop.f32.mrf.mxu0
    %v376 = vadd.f32 0.0, %v375
    %377 = vdwg.mxu0
    %v394 = vunpack.c.l.b16 %v228
    %v395 = vunpack.c.h.b16 %v228
    %v396 = vunpack.c.l.b16 %v229
    %v397 = vunpack.c.h.b16 %v229
    %v398 = vunpack.c.l.b16 %v230
    %v399 = vunpack.c.h.b16 %v230
    %v400 = vunpack.c.l.b16 %v231
    %v401 = vunpack.c.h.b16 %v231
    %v402 = vunpack.c.l.b16 %v232
    %v403 = vunpack.c.h.b16 %v232
    %v404 = vunpack.c.l.b16 %v233
    %v405 = vunpack.c.h.b16 %v233
    %v406 = vunpack.c.l.b16 %v234
    %v407 = vunpack.c.h.b16 %v234
    %v408 = vunpack.c.l.b16 %v235
    %v409 = vunpack.c.h.b16 %v235
    %v410 = vunpack.c.l.b16 %v236
    %v411 = vunpack.c.h.b16 %v236
    %v412 = vunpack.c.l.b16 %v237
    %v413 = vunpack.c.h.b16 %v237
    %v414 = vunpack.c.l.b16 %v238
    %v415 = vunpack.c.h.b16 %v238
    %v416 = vunpack.c.l.b16 %v239
    %v417 = vunpack.c.h.b16 %v239
    %v418 = vunpack.c.l.b16 %v240
    %v419 = vunpack.c.h.b16 %v240
    %v420 = vunpack.c.l.b16 %v241
    %v421 = vunpack.c.h.b16 %v241
    %v422 = vunpack.c.l.b16 %v242
    %v423 = vunpack.c.h.b16 %v242
    %v424 = vunpack.c.l.b16 %v243
    %v425 = vunpack.c.h.b16 %v243
    %v426 = vpack.c.b16 %v396, %v394
    %v427 = vpack.c.b16 %v397, %v395
    %v428 = vpack.c.b16 %v400, %v398
    %v429 = vpack.c.b16 %v401, %v399
    %v430 = vpack.c.b16 %v404, %v402
    %v431 = vpack.c.b16 %v405, %v403
    %v432 = vpack.c.b16 %v408, %v406
    %v433 = vpack.c.b16 %v409, %v407
    %v434 = vpack.c.b16 %v412, %v410
    %v435 = vpack.c.b16 %v413, %v411
    %v436 = vpack.c.b16 %v416, %v414
    %v437 = vpack.c.b16 %v417, %v415
    %v438 = vpack.c.b16 %v420, %v418
    %v439 = vpack.c.b16 %v421, %v419
    %v440 = vpack.c.b16 %v424, %v422
    %v441 = vpack.c.b16 %v425, %v423
    %458 = vmatpush.bf16.msra.mxu0 %v440
    %459 = vmatpush.bf16.msra.mxu0 %v438
    %460 = vmatpush.bf16.msra.mxu0 %v436
    %461 = vmatpush.bf16.msra.mxu0 %v434
    %462 = vmatpush.bf16.msra.mxu0 %v432
    %463 = vmatpush.bf16.msra.mxu0 %v430
    %464 = vmatpush.bf16.msra.mxu0 %v428
    %465 = vmatpush.bf16.msra.mxu0 %v426
    %466 = vmatmul.bf16.gmra.mxu0 %v226
    %v467 = vpop.f32.mrf.mxu0
    %v468 = vadd.f32 %v350, %v467
    %v469 = vpop.f32.mrf.mxu0
    %v470 = vadd.f32 %v352, %v469
    %471 = vmatmul.bf16.gmra.mxu0 %v227
    %v472 = vpop.f32.mrf.mxu0
    %v473 = vadd.f32 %v355, %v472
    %v474 = vpop.f32.mrf.mxu0
    %v475 = vadd.f32 %v357, %v474
    %476 = vdwg.mxu0
    %477 = vmatpush.bf16.msra.mxu0 %v441
    %478 = vmatpush.bf16.msra.mxu0 %v439
    %479 = vmatpush.bf16.msra.mxu0 %v437
    %480 = vmatpush.bf16.msra.mxu0 %v435
    %481 = vmatpush.bf16.msra.mxu0 %v433
    %482 = vmatpush.bf16.msra.mxu0 %v431
    %483 = vmatpush.bf16.msra.mxu0 %v429
    %484 = vmatpush.bf16.msra.mxu0 %v427
    %485 = vmatmul.bf16.gmra.mxu0 %v226
    %v486 = vpop.f32.mrf.mxu0
    %v487 = vadd.f32 %v369, %v486
    %v488 = vpop.f32.mrf.mxu0
    %v489 = vadd.f32 %v371, %v488
    %490 = vmatmul.bf16.gmra.mxu0 %v227
    %v491 = vpop.f32.mrf.mxu0
    %v492 = vadd.f32 %v374, %v491
    %v493 = vpop.f32.mrf.mxu0
    %v494 = vadd.f32 %v376, %v493
    %495 = vdwg.mxu0
    %v496 = vld [vmem:[%s6] sm:$0x3]
    %v498 = vperm.slane %v496, 0
    %v499 = vperm.slane %v496, 1
    %v502 = vadd.f32 %v468, %v498
    %v503 = vadd.f32 %v487, %v499
    %v504 = vadd.f32 %v470, %v498
    %v505 = vadd.f32 %v489, %v499
    %v506 = vadd.f32 %v473, %v498
    %v507 = vadd.f32 %v492, %v499
    %v508 = vadd.f32 %v475, %v498
    %v509 = vadd.f32 %v494, %v499
    %v510 = vtanh.pop %v502
    %v511 = vtanh.pop %v504
    %v512 = vtanh.pop %v506
    %v513 = vtanh.pop %v508
    %v514 = vxor.u32 %v503, 2147483648
    %v515 = vxor.u32 %v505, 2147483648
    %v516 = vxor.u32 %v507, 2147483648
    %v517 = vxor.u32 %v509, 2147483648
    %v518 = vmul.f32 %v514, 1.442695
    %v519 = vpow.pop %v518
    %v520 = vmul.f32 %v515, 1.442695
    %v521 = vpow.pop %v520
    %v522 = vmul.f32 %v516, 1.442695
    %v523 = vpow.pop %v522
    %v524 = vmul.f32 %v517, 1.442695
    %v525 = vpow.pop %v524
    %v526 = vadd.f32 %v519, 1.0
    %v527 = vadd.f32 %v521, 1.0
    %v528 = vadd.f32 %v523, 1.0
    %v529 = vadd.f32 %v525, 1.0
    %v530 = vrcp.pop %v526
    %v531 = vmul.f32 %v526, %v530
    %v532 = vsub.f32 1.0, %v531
    %v533 = vmul.f32 %v530, %v532
    %v534 = vadd.f32 %v530, %v533
    %vm535 = vweird.f32 %v526
    %vm536 = vweird.f32 %v530
    %vm537 = vmor %vm535, %vm536
    %v538 = vsel %vm537, %v530, %v534
    %v539 = vand.u32 2147483647, %v526
    %vm540 = vcmp.eq.f32.partialorder %v539, 8.507059e+37
    %v541 = vand.u32 %v526, 2147483648
    %v542 = vor.u32 1.1754944e-38, %v541
    %v543 = vsel %vm540, %v542, %v538
    %v544 = vmul.f32 1.0, %v543
    %v545 = vrcp.pop %v527
    %v546 = vmul.f32 %v527, %v545
    %v547 = vsub.f32 1.0, %v546
    %v548 = vmul.f32 %v545, %v547
    %v549 = vadd.f32 %v545, %v548
    %vm550 = vweird.f32 %v527
    %vm551 = vweird.f32 %v545
    %vm552 = vmor %vm550, %vm551
    %v553 = vsel %vm552, %v545, %v549
    %v554 = vand.u32 2147483647, %v527
    %vm555 = vcmp.eq.f32.partialorder %v554, 8.507059e+37
    %v556 = vand.u32 %v527, 2147483648
    %v557 = vor.u32 1.1754944e-38, %v556
    %v558 = vsel %vm555, %v557, %v553
    %v559 = vmul.f32 1.0, %v558
    %v560 = vrcp.pop %v528
    %v561 = vmul.f32 %v528, %v560
    %v562 = vsub.f32 1.0, %v561
    %v563 = vmul.f32 %v560, %v562
    %v564 = vadd.f32 %v560, %v563
    %vm565 = vweird.f32 %v528
    %vm566 = vweird.f32 %v560
    %vm567 = vmor %vm565, %vm566
    %v568 = vsel %vm567, %v560, %v564
    %v569 = vand.u32 2147483647, %v528
    %vm570 = vcmp.eq.f32.partialorder %v569, 8.507059e+37
    %v571 = vand.u32 %v528, 2147483648
    %v572 = vor.u32 1.1754944e-38, %v571
    %v573 = vsel %vm570, %v572, %v568
    %v574 = vmul.f32 1.0, %v573
    %v575 = vrcp.pop %v529
    %v576 = vmul.f32 %v529, %v575
    %v577 = vsub.f32 1.0, %v576
    %v578 = vmul.f32 %v575, %v577
    %v579 = vadd.f32 %v575, %v578
    %vm580 = vweird.f32 %v529
    %vm581 = vweird.f32 %v575
    %vm582 = vmor %vm580, %vm581
    %v583 = vsel %vm582, %v575, %v579
    %v584 = vand.u32 2147483647, %v529
    %vm585 = vcmp.eq.f32.partialorder %v584, 8.507059e+37
    %v586 = vand.u32 %v529, 2147483648
    %v587 = vor.u32 1.1754944e-38, %v586
    %v588 = vsel %vm585, %v587, %v583
    %v589 = vmul.f32 1.0, %v588
    %v590 = vmul.f32 %v510, %v544
    %v591 = vmul.f32 %v511, %v559
    %v592 = vmul.f32 %v512, %v574
    %v593 = vmul.f32 %v513, %v589
    %v594 = vpack.c.bf16 %v591, %v590
    %v595 = vpack.c.bf16 %v593, %v592
    %v596 = vld [vmem:[#allocation6] sm:$0xf]
    %v597 = vld [vmem:[#allocation6 + $0x4] sm:$0xf]
    %v598 = vld [vmem:[#allocation6 + $0x8] sm:$0xf]
    %v599 = vld [vmem:[#allocation6 + $0xc] sm:$0xf]
    %v600 = vld [vmem:[#allocation6 + $0x10] sm:$0xf]
    %v601 = vld [vmem:[#allocation6 + $0x14] sm:$0xf]
    %v602 = vld [vmem:[#allocation6 + $0x18] sm:$0xf]
    %v603 = vld [vmem:[#allocation6 + $0x1c] sm:$0xf]
    %v604 = vld [vmem:[#allocation6 + $0x20] sm:$0xf]
    %v605 = vld [vmem:[#allocation6 + $0x24] sm:$0xf]
    %v606 = vld [vmem:[#allocation6 + $0x28] sm:$0xf]
    %v607 = vld [vmem:[#allocation6 + $0x2c] sm:$0xf]
    %v608 = vld [vmem:[#allocation6 + $0x30] sm:$0xf]
    %v609 = vld [vmem:[#allocation6 + $0x34] sm:$0xf]
    %v610 = vld [vmem:[#allocation6 + $0x38] sm:$0xf]
    %v611 = vld [vmem:[#allocation6 + $0x3c] sm:$0xf]
    %v612 = vld [vmem:[%s8] sm:$0x1]
    %v614 = vperm.slane %v612, 0
    %v632 = vunpack.c.l.b16 %v596
    %v633 = vunpack.c.l.b16 %v597
    %v634 = vunpack.c.l.b16 %v598
    %v635 = vunpack.c.l.b16 %v599
    %v636 = vunpack.c.l.b16 %v600
    %v637 = vunpack.c.l.b16 %v601
    %v638 = vunpack.c.l.b16 %v602
    %v639 = vunpack.c.l.b16 %v603
    %v640 = vunpack.c.l.b16 %v604
    %v641 = vunpack.c.l.b16 %v605
    %v642 = vunpack.c.l.b16 %v606
    %v643 = vunpack.c.l.b16 %v607
    %v644 = vunpack.c.l.b16 %v608
    %v645 = vunpack.c.l.b16 %v609
    %v646 = vunpack.c.l.b16 %v610
    %v647 = vunpack.c.l.b16 %v611
    %v648 = vpack.c.b16 %v633, %v632
    %v649 = vpack.c.b16 %v635, %v634
    %v650 = vpack.c.b16 %v637, %v636
    %v651 = vpack.c.b16 %v639, %v638
    %v652 = vpack.c.b16 %v641, %v640
    %v653 = vpack.c.b16 %v643, %v642
    %v654 = vpack.c.b16 %v645, %v644
    %v655 = vpack.c.b16 %v647, %v646
    %664 = vmatpush.bf16.msra.mxu0 %v655
    %665 = vmatpush.bf16.msra.mxu0 %v654
    %666 = vmatpush.bf16.msra.mxu0 %v653
    %667 = vmatpush.bf16.msra.mxu0 %v652
    %668 = vmatpush.bf16.msra.mxu0 %v651
    %669 = vmatpush.bf16.msra.mxu0 %v650
    %670 = vmatpush.bf16.msra.mxu0 %v649
    %671 = vmatpush.bf16.msra.mxu0 %v648
    %672 = vmatmul.bf16.gmra.mxu0 %v594
    %v673 = vpop.f32.mrf.mxu0
    %v674 = vadd.f32 %v614, %v673
    %v675 = vpop.f32.mrf.mxu0
    %v676 = vadd.f32 %v614, %v675
    %677 = vmatmul.bf16.gmra.mxu0 %v595
    %v678 = vpop.f32.mrf.mxu0
    %v679 = vadd.f32 %v614, %v678
    %v680 = vpop.f32.mrf.mxu0
    %v681 = vadd.f32 %v614, %v680
    %682 = vdwg.mxu0
    %v683 = vpack.c.bf16 %v676, %v674
    %v684 = vpack.c.bf16 %v681, %v679
    %v685 = vld [vmem:[#allocation7] sm:$0xf]
    %v686 = vld [vmem:[#allocation7 + $0x4] sm:$0xf]
    %v687 = vld [vmem:[#allocation7 + $0x8] sm:$0xf]
    %v688 = vld [vmem:[#allocation7 + $0xc] sm:$0xf]
    %v689 = vld [vmem:[#allocation7 + $0x10] sm:$0xf]
    %v690 = vld [vmem:[#allocation7 + $0x14] sm:$0xf]
    %v691 = vld [vmem:[#allocation7 + $0x18] sm:$0xf]
    %v692 = vld [vmem:[#allocation7 + $0x1c] sm:$0xf]
    %v693 = vld [vmem:[#allocation7 + $0x20] sm:$0xf]
    %v694 = vld [vmem:[#allocation7 + $0x24] sm:$0xf]
    %v695 = vld [vmem:[#allocation7 + $0x28] sm:$0xf]
    %v696 = vld [vmem:[#allocation7 + $0x2c] sm:$0xf]
    %v697 = vld [vmem:[#allocation7 + $0x30] sm:$0xf]
    %v698 = vld [vmem:[#allocation7 + $0x34] sm:$0xf]
    %v699 = vld [vmem:[#allocation7 + $0x38] sm:$0xf]
    %v700 = vld [vmem:[#allocation7 + $0x3c] sm:$0xf]
    %v701 = vld [vmem:[%s10] sm:$0x1]
    %v703 = vperm.slane %v701, 0
    %v721 = vunpack.c.l.b16 %v685
    %v722 = vunpack.c.l.b16 %v686
    %v723 = vunpack.c.l.b16 %v687
    %v724 = vunpack.c.l.b16 %v688
    %v725 = vunpack.c.l.b16 %v689
    %v726 = vunpack.c.l.b16 %v690
    %v727 = vunpack.c.l.b16 %v691
    %v728 = vunpack.c.l.b16 %v692
    %v729 = vunpack.c.l.b16 %v693
    %v730 = vunpack.c.l.b16 %v694
    %v731 = vunpack.c.l.b16 %v695
    %v732 = vunpack.c.l.b16 %v696
    %v733 = vunpack.c.l.b16 %v697
    %v734 = vunpack.c.l.b16 %v698
    %v735 = vunpack.c.l.b16 %v699
    %v736 = vunpack.c.l.b16 %v700
    %v737 = vpack.c.b16 %v722, %v721
    %v738 = vpack.c.b16 %v724, %v723
    %v739 = vpack.c.b16 %v726, %v725
    %v740 = vpack.c.b16 %v728, %v727
    %v741 = vpack.c.b16 %v730, %v729
    %v742 = vpack.c.b16 %v732, %v731
    %v743 = vpack.c.b16 %v734, %v733
    %v744 = vpack.c.b16 %v736, %v735
    %753 = vmatpush.bf16.msra.mxu0 %v744
    %754 = vmatpush.bf16.msra.mxu0 %v743
    %755 = vmatpush.bf16.msra.mxu0 %v742
    %756 = vmatpush.bf16.msra.mxu0 %v741
    %757 = vmatpush.bf16.msra.mxu0 %v740
    %758 = vmatpush.bf16.msra.mxu0 %v739
    %759 = vmatpush.bf16.msra.mxu0 %v738
    %760 = vmatpush.bf16.msra.mxu0 %v737
    %761 = vmatmul.bf16.gmra.mxu0 %v683
    %v762 = vpop.f32.mrf.mxu0
    %v763 = vadd.f32 %v703, %v762
    %v764 = vpop.f32.mrf.mxu0
    %v765 = vadd.f32 %v703, %v764
    %766 = vmatmul.bf16.gmra.mxu0 %v684
    %v767 = vpop.f32.mrf.mxu0
    %v768 = vadd.f32 %v703, %v767
    %v769 = vpop.f32.mrf.mxu0
    %v770 = vadd.f32 %v703, %v769
    %771 = vdwg.mxu0
    %v772 = vadd.f32 %v674, %v208
    %v773 = vadd.f32 %v676, %v209
    %v774 = vadd.f32 %v679, %v210
    %v775 = vadd.f32 %v681, %v211
    %v776 = vpack.c.bf16 %v773, %v772
    %v777 = vpack.c.bf16 %v775, %v774
    %vm778 = vcmp.lt.s32.totalorder %v124, 2
    %vm779 = vcmp.lt.s32.totalorder %v125, 2
    %v780 = vrot.slane %v772, 6
    %v781 = vrot.slane %v773, 6
    %v782 = vrot.slane %v774, 6
    %v783 = vrot.slane %v775, 6
    %v784 = vsel %vm778, %v782, %v783
    %v785 = vsel %vm778, %v781, %v782
    %v786 = vsel %vm778, %v780, %v781
    %v787 = vsel %vm778, %v783, %v780
    %v788 = vsel %vm778, 0.0, %v787
    %v789 = vsel %vm779, 0.0, %v786
    %v790 = vsel %vm778, 0.0, %v785
    %v791 = vsel %vm779, 0.0, %v784
    %v792 = vpack.c.bf16 %v789, %v788
    %v793 = vpack.c.bf16 %v791, %v790
    %s794 = scalar_lea.vmem [#allocation2], 128
    %v795 = vld [vmem:[%s794] sm:$0xff]
    %v796 = vld [vmem:[%s794 + $0x8] sm:$0xff]
    %v797 = vld [vmem:[%s794 + $0x10] sm:$0xff]
    %v798 = vld [vmem:[%s794 + $0x18] sm:$0xff]
    %v799 = vld [vmem:[%s794 + $0x20] sm:$0xff]
    %v800 = vld [vmem:[%s794 + $0x28] sm:$0xff]
    %v801 = vld [vmem:[%s794 + $0x30] sm:$0xff]
    %v802 = vld [vmem:[%s794 + $0x38] sm:$0xff]
    %v803 = vld [vmem:[%s794 + $0x40] sm:$0xff]
    %v804 = vld [vmem:[%s794 + $0x48] sm:$0xff]
    %v805 = vld [vmem:[%s794 + $0x50] sm:$0xff]
    %v806 = vld [vmem:[%s794 + $0x58] sm:$0xff]
    %v807 = vld [vmem:[%s794 + $0x60] sm:$0xff]
    %v808 = vld [vmem:[%s794 + $0x68] sm:$0xff]
    %v809 = vld [vmem:[%s794 + $0x70] sm:$0xff]
    %v810 = vld [vmem:[%s794 + $0x78] sm:$0xff]
    %s811 = scalar_lea.vmem [#allocation4], 128
    %v812 = vld [vmem:[%s811] sm:$0xff]
    %v813 = vld [vmem:[%s811 + $0x8] sm:$0xff]
    %v814 = vld [vmem:[%s811 + $0x10] sm:$0xff]
    %v815 = vld [vmem:[%s811 + $0x18] sm:$0xff]
    %v816 = vld [vmem:[%s811 + $0x20] sm:$0xff]
    %v817 = vld [vmem:[%s811 + $0x28] sm:$0xff]
    %v818 = vld [vmem:[%s811 + $0x30] sm:$0xff]
    %v819 = vld [vmem:[%s811 + $0x38] sm:$0xff]
    %v820 = vld [vmem:[%s811 + $0x40] sm:$0xff]
    %v821 = vld [vmem:[%s811 + $0x48] sm:$0xff]
    %v822 = vld [vmem:[%s811 + $0x50] sm:$0xff]
    %v823 = vld [vmem:[%s811 + $0x58] sm:$0xff]
    %v824 = vld [vmem:[%s811 + $0x60] sm:$0xff]
    %v825 = vld [vmem:[%s811 + $0x68] sm:$0xff]
    %v826 = vld [vmem:[%s811 + $0x70] sm:$0xff]
    %v827 = vld [vmem:[%s811 + $0x78] sm:$0xff]
    %v844 = vunpack.c.l.b16 %v812
    %v845 = vunpack.c.h.b16 %v812
    %v846 = vunpack.c.l.b16 %v813
    %v847 = vunpack.c.h.b16 %v813
    %v848 = vunpack.c.l.b16 %v814
    %v849 = vunpack.c.h.b16 %v814
    %v850 = vunpack.c.l.b16 %v815
    %v851 = vunpack.c.h.b16 %v815
    %v852 = vunpack.c.l.b16 %v816
    %v853 = vunpack.c.h.b16 %v816
    %v854 = vunpack.c.l.b16 %v817
    %v855 = vunpack.c.h.b16 %v817
    %v856 = vunpack.c.l.b16 %v818
    %v857 = vunpack.c.h.b16 %v818
    %v858 = vunpack.c.l.b16 %v819
    %v859 = vunpack.c.h.b16 %v819
    %v860 = vunpack.c.l.b16 %v820
    %v861 = vunpack.c.h.b16 %v820
    %v862 = vunpack.c.l.b16 %v821
    %v863 = vunpack.c.h.b16 %v821
    %v864 = vunpack.c.l.b16 %v822
    %v865 = vunpack.c.h.b16 %v822
    %v866 = vunpack.c.l.b16 %v823
    %v867 = vunpack.c.h.b16 %v823
    %v868 = vunpack.c.l.b16 %v824
    %v869 = vunpack.c.h.b16 %v824
    %v870 = vunpack.c.l.b16 %v825
    %v871 = vunpack.c.h.b16 %v825
    %v872 = vunpack.c.l.b16 %v826
    %v873 = vunpack.c.h.b16 %v826
    %v874 = vunpack.c.l.b16 %v827
    %v875 = vunpack.c.h.b16 %v827
    %v876 = vpack.c.b16 %v846, %v844
    %v877 = vpack.c.b16 %v847, %v845
    %v878 = vpack.c.b16 %v850, %v848
    %v879 = vpack.c.b16 %v851, %v849
    %v880 = vpack.c.b16 %v854, %v852
    %v881 = vpack.c.b16 %v855, %v853
    %v882 = vpack.c.b16 %v858, %v856
    %v883 = vpack.c.b16 %v859, %v857
    %v884 = vpack.c.b16 %v862, %v860
    %v885 = vpack.c.b16 %v863, %v861
    %v886 = vpack.c.b16 %v866, %v864
    %v887 = vpack.c.b16 %v867, %v865
    %v888 = vpack.c.b16 %v870, %v868
    %v889 = vpack.c.b16 %v871, %v869
    %v890 = vpack.c.b16 %v874, %v872
    %v891 = vpack.c.b16 %v875, %v873
    %908 = vmatpush.bf16.msra.mxu0 %v890
    %909 = vmatpush.bf16.msra.mxu0 %v888
    %910 = vmatpush.bf16.msra.mxu0 %v886
    %911 = vmatpush.bf16.msra.mxu0 %v884
    %912 = vmatpush.bf16.msra.mxu0 %v882
    %913 = vmatpush.bf16.msra.mxu0 %v880
    %914 = vmatpush.bf16.msra.mxu0 %v878
    %915 = vmatpush.bf16.msra.mxu0 %v876
    %916 = vmatmul.bf16.gmra.mxu0 %v776
    %v917 = vpop.f32.mrf.mxu0
    %v918 = vadd.f32 0.0, %v917
    %v919 = vpop.f32.mrf.mxu0
    %v920 = vadd.f32 0.0, %v919
    %921 = vmatmul.bf16.gmra.mxu0 %v777
    %v922 = vpop.f32.mrf.mxu0
    %v923 = vadd.f32 0.0, %v922
    %v924 = vpop.f32.mrf.mxu0
    %v925 = vadd.f32 0.0, %v924
    %926 = vdwg.mxu0
    %927 = vmatpush.bf16.msra.mxu0 %v891
    %928 = vmatpush.bf16.msra.mxu0 %v889
    %929 = vmatpush.bf16.msra.mxu0 %v887
    %930 = vmatpush.bf16.msra.mxu0 %v885
    %931 = vmatpush.bf16.msra.mxu0 %v883
    %932 = vmatpush.bf16.msra.mxu0 %v881
    %933 = vmatpush.bf16.msra.mxu0 %v879
    %934 = vmatpush.bf16.msra.mxu0 %v877
    %935 = vmatmul.bf16.gmra.mxu0 %v776
    %v936 = vpop.f32.mrf.mxu0
    %v937 = vadd.f32 0.0, %v936
    %v938 = vpop.f32.mrf.mxu0
    %v939 = vadd.f32 0.0, %v938
    %940 = vmatmul.bf16.gmra.mxu0 %v777
    %v941 = vpop.f32.mrf.mxu0
    %v942 = vadd.f32 0.0, %v941
    %v943 = vpop.f32.mrf.mxu0
    %v944 = vadd.f32 0.0, %v943
    %945 = vdwg.mxu0
    %v962 = vunpack.c.l.b16 %v795
    %v963 = vunpack.c.h.b16 %v795
    %v964 = vunpack.c.l.b16 %v796
    %v965 = vunpack.c.h.b16 %v796
    %v966 = vunpack.c.l.b16 %v797
    %v967 = vunpack.c.h.b16 %v797
    %v968 = vunpack.c.l.b16 %v798
    %v969 = vunpack.c.h.b16 %v798
    %v970 = vunpack.c.l.b16 %v799
    %v971 = vunpack.c.h.b16 %v799
    %v972 = vunpack.c.l.b16 %v800
    %v973 = vunpack.c.h.b16 %v800
    %v974 = vunpack.c.l.b16 %v801
    %v975 = vunpack.c.h.b16 %v801
    %v976 = vunpack.c.l.b16 %v802
    %v977 = vunpack.c.h.b16 %v802
    %v978 = vunpack.c.l.b16 %v803
    %v979 = vunpack.c.h.b16 %v803
    %v980 = vunpack.c.l.b16 %v804
    %v981 = vunpack.c.h.b16 %v804
    %v982 = vunpack.c.l.b16 %v805
    %v983 = vunpack.c.h.b16 %v805
    %v984 = vunpack.c.l.b16 %v806
    %v985 = vunpack.c.h.b16 %v806
    %v986 = vunpack.c.l.b16 %v807
    %v987 = vunpack.c.h.b16 %v807
    %v988 = vunpack.c.l.b16 %v808
    %v989 = vunpack.c.h.b16 %v808
    %v990 = vunpack.c.l.b16 %v809
    %v991 = vunpack.c.h.b16 %v809
    %v992 = vunpack.c.l.b16 %v810
    %v993 = vunpack.c.h.b16 %v810
    %v994 = vpack.c.b16 %v964, %v962
    %v995 = vpack.c.b16 %v965, %v963
    %v996 = vpack.c.b16 %v968, %v966
    %v997 = vpack.c.b16 %v969, %v967
    %v998 = vpack.c.b16 %v972, %v970
    %v999 = vpack.c.b16 %v973, %v971
    %v1000 = vpack.c.b16 %v976, %v974
    %v1001 = vpack.c.b16 %v977, %v975
    %v1002 = vpack.c.b16 %v980, %v978
    %v1003 = vpack.c.b16 %v981, %v979
    %v1004 = vpack.c.b16 %v984, %v982
    %v1005 = vpack.c.b16 %v985, %v983
    %v1006 = vpack.c.b16 %v988, %v986
    %v1007 = vpack.c.b16 %v989, %v987
    %v1008 = vpack.c.b16 %v992, %v990
    %v1009 = vpack.c.b16 %v993, %v991
    %1026 = vmatpush.bf16.msra.mxu0 %v1008
    %1027 = vmatpush.bf16.msra.mxu0 %v1006
    %1028 = vmatpush.bf16.msra.mxu0 %v1004
    %1029 = vmatpush.bf16.msra.mxu0 %v1002
    %1030 = vmatpush.bf16.msra.mxu0 %v1000
    %1031 = vmatpush.bf16.msra.mxu0 %v998
    %1032 = vmatpush.bf16.msra.mxu0 %v996
    %1033 = vmatpush.bf16.msra.mxu0 %v994
    %1034 = vmatmul.bf16.gmra.mxu0 %v792
    %v1035 = vpop.f32.mrf.mxu0
    %v1036 = vadd.f32 %v918, %v1035
    %v1037 = vpop.f32.mrf.mxu0
    %v1038 = vadd.f32 %v920, %v1037
    %1039 = vmatmul.bf16.gmra.mxu0 %v793
    %v1040 = vpop.f32.mrf.mxu0
    %v1041 = vadd.f32 %v923, %v1040
    %v1042 = vpop.f32.mrf.mxu0
    %v1043 = vadd.f32 %v925, %v1042
    %1044 = vdwg.mxu0
    %1045 = vmatpush.bf16.msra.mxu0 %v1009
    %1046 = vmatpush.bf16.msra.mxu0 %v1007
    %1047 = vmatpush.bf16.msra.mxu0 %v1005
    %1048 = vmatpush.bf16.msra.mxu0 %v1003
    %1049 = vmatpush.bf16.msra.mxu0 %v1001
    %1050 = vmatpush.bf16.msra.mxu0 %v999
    %1051 = vmatpush.bf16.msra.mxu0 %v997
    %1052 = vmatpush.bf16.msra.mxu0 %v995
    %1053 = vmatmul.bf16.gmra.mxu0 %v792
    %v1054 = vpop.f32.mrf.mxu0
    %v1055 = vadd.f32 %v937, %v1054
    %v1056 = vpop.f32.mrf.mxu0
    %v1057 = vadd.f32 %v939, %v1056
    %1058 = vmatmul.bf16.gmra.mxu0 %v793
    %v1059 = vpop.f32.mrf.mxu0
    %v1060 = vadd.f32 %v942, %v1059
    %v1061 = vpop.f32.mrf.mxu0
    %v1062 = vadd.f32 %v944, %v1061
    %1063 = vdwg.mxu0
    %s1064 = scalar_lea.vmem %s6, 2
    %v1065 = vld [vmem:[%s1064] sm:$0x3]
    %v1067 = vperm.slane %v1065, 0
    %v1068 = vperm.slane %v1065, 1
    %v1071 = vadd.f32 %v1036, %v1067
    %v1072 = vadd.f32 %v1055, %v1068
    %v1073 = vadd.f32 %v1038, %v1067
    %v1074 = vadd.f32 %v1057, %v1068
    %v1075 = vadd.f32 %v1041, %v1067
    %v1076 = vadd.f32 %v1060, %v1068
    %v1077 = vadd.f32 %v1043, %v1067
    %v1078 = vadd.f32 %v1062, %v1068
    %v1079 = vtanh.pop %v1071
    %v1080 = vtanh.pop %v1073
    %v1081 = vtanh.pop %v1075
    %v1082 = vtanh.pop %v1077
    %v1083 = vxor.u32 %v1072, 2147483648
    %v1084 = vxor.u32 %v1074, 2147483648
    %v1085 = vxor.u32 %v1076, 2147483648
    %v1086 = vxor.u32 %v1078, 2147483648
    %v1087 = vmul.f32 %v1083, 1.442695
    %v1088 = vpow.pop %v1087
    %v1089 = vmul.f32 %v1084, 1.442695
    %v1090 = vpow.pop %v1089
    %v1091 = vmul.f32 %v1085, 1.442695
    %v1092 = vpow.pop %v1091
    %v1093 = vmul.f32 %v1086, 1.442695
    %v1094 = vpow.pop %v1093
    %v1095 = vadd.f32 %v1088, 1.0
    %v1096 = vadd.f32 %v1090, 1.0
    %v1097 = vadd.f32 %v1092, 1.0
    %v1098 = vadd.f32 %v1094, 1.0
    %v1099 = vrcp.pop %v1095
    %v1100 = vmul.f32 %v1095, %v1099
    %v1101 = vsub.f32 1.0, %v1100
    %v1102 = vmul.f32 %v1099, %v1101
    %v1103 = vadd.f32 %v1099, %v1102
    %vm1104 = vweird.f32 %v1095
    %vm1105 = vweird.f32 %v1099
    %vm1106 = vmor %vm1104, %vm1105
    %v1107 = vsel %vm1106, %v1099, %v1103
    %v1108 = vand.u32 2147483647, %v1095
    %vm1109 = vcmp.eq.f32.partialorder %v1108, 8.507059e+37
    %v1110 = vand.u32 %v1095, 2147483648
    %v1111 = vor.u32 1.1754944e-38, %v1110
    %v1112 = vsel %vm1109, %v1111, %v1107
    %v1113 = vmul.f32 1.0, %v1112
    %v1114 = vrcp.pop %v1096
    %v1115 = vmul.f32 %v1096, %v1114
    %v1116 = vsub.f32 1.0, %v1115
    %v1117 = vmul.f32 %v1114, %v1116
    %v1118 = vadd.f32 %v1114, %v1117
    %vm1119 = vweird.f32 %v1096
    %vm1120 = vweird.f32 %v1114
    %vm1121 = vmor %vm1119, %vm1120
    %v1122 = vsel %vm1121, %v1114, %v1118
    %v1123 = vand.u32 2147483647, %v1096
    %vm1124 = vcmp.eq.f32.partialorder %v1123, 8.507059e+37
    %v1125 = vand.u32 %v1096, 2147483648
    %v1126 = vor.u32 1.1754944e-38, %v1125
    %v1127 = vsel %vm1124, %v1126, %v1122
    %v1128 = vmul.f32 1.0, %v1127
    %v1129 = vrcp.pop %v1097
    %v1130 = vmul.f32 %v1097, %v1129
    %v1131 = vsub.f32 1.0, %v1130
    %v1132 = vmul.f32 %v1129, %v1131
    %v1133 = vadd.f32 %v1129, %v1132
    %vm1134 = vweird.f32 %v1097
    %vm1135 = vweird.f32 %v1129
    %vm1136 = vmor %vm1134, %vm1135
    %v1137 = vsel %vm1136, %v1129, %v1133
    %v1138 = vand.u32 2147483647, %v1097
    %vm1139 = vcmp.eq.f32.partialorder %v1138, 8.507059e+37
    %v1140 = vand.u32 %v1097, 2147483648
    %v1141 = vor.u32 1.1754944e-38, %v1140
    %v1142 = vsel %vm1139, %v1141, %v1137
    %v1143 = vmul.f32 1.0, %v1142
    %v1144 = vrcp.pop %v1098
    %v1145 = vmul.f32 %v1098, %v1144
    %v1146 = vsub.f32 1.0, %v1145
    %v1147 = vmul.f32 %v1144, %v1146
    %v1148 = vadd.f32 %v1144, %v1147
    %vm1149 = vweird.f32 %v1098
    %vm1150 = vweird.f32 %v1144
    %vm1151 = vmor %vm1149, %vm1150
    %v1152 = vsel %vm1151, %v1144, %v1148
    %v1153 = vand.u32 2147483647, %v1098
    %vm1154 = vcmp.eq.f32.partialorder %v1153, 8.507059e+37
    %v1155 = vand.u32 %v1098, 2147483648
    %v1156 = vor.u32 1.1754944e-38, %v1155
    %v1157 = vsel %vm1154, %v1156, %v1152
    %v1158 = vmul.f32 1.0, %v1157
    %v1159 = vmul.f32 %v1079, %v1113
    %v1160 = vmul.f32 %v1080, %v1128
    %v1161 = vmul.f32 %v1081, %v1143
    %v1162 = vmul.f32 %v1082, %v1158
    %v1163 = vpack.c.bf16 %v1160, %v1159
    %v1164 = vpack.c.bf16 %v1162, %v1161
    %s1165 = scalar_lea.vmem [#allocation6], 64
    %v1166 = vld [vmem:[%s1165] sm:$0xf]
    %v1167 = vld [vmem:[%s1165 + $0x4] sm:$0xf]
    %v1168 = vld [vmem:[%s1165 + $0x8] sm:$0xf]
    %v1169 = vld [vmem:[%s1165 + $0xc] sm:$0xf]
    %v1170 = vld [vmem:[%s1165 + $0x10] sm:$0xf]
    %v1171 = vld [vmem:[%s1165 + $0x14] sm:$0xf]
    %v1172 = vld [vmem:[%s1165 + $0x18] sm:$0xf]
    %v1173 = vld [vmem:[%s1165 + $0x1c] sm:$0xf]
    %v1174 = vld [vmem:[%s1165 + $0x20] sm:$0xf]
    %v1175 = vld [vmem:[%s1165 + $0x24] sm:$0xf]
    %v1176 = vld [vmem:[%s1165 + $0x28] sm:$0xf]
    %v1177 = vld [vmem:[%s1165 + $0x2c] sm:$0xf]
    %v1178 = vld [vmem:[%s1165 + $0x30] sm:$0xf]
    %v1179 = vld [vmem:[%s1165 + $0x34] sm:$0xf]
    %v1180 = vld [vmem:[%s1165 + $0x38] sm:$0xf]
    %v1181 = vld [vmem:[%s1165 + $0x3c] sm:$0xf]
    %s1182 = scalar_lea.vmem %s8, 1
    %v1183 = vld [vmem:[%s1182] sm:$0x1]
    %v1185 = vperm.slane %v1183, 0
    %v1203 = vunpack.c.l.b16 %v1166
    %v1204 = vunpack.c.l.b16 %v1167
    %v1205 = vunpack.c.l.b16 %v1168
    %v1206 = vunpack.c.l.b16 %v1169
    %v1207 = vunpack.c.l.b16 %v1170
    %v1208 = vunpack.c.l.b16 %v1171
    %v1209 = vunpack.c.l.b16 %v1172
    %v1210 = vunpack.c.l.b16 %v1173
    %v1211 = vunpack.c.l.b16 %v1174
    %v1212 = vunpack.c.l.b16 %v1175
    %v1213 = vunpack.c.l.b16 %v1176
    %v1214 = vunpack.c.l.b16 %v1177
    %v1215 = vunpack.c.l.b16 %v1178
    %v1216 = vunpack.c.l.b16 %v1179
    %v1217 = vunpack.c.l.b16 %v1180
    %v1218 = vunpack.c.l.b16 %v1181
    %v1219 = vpack.c.b16 %v1204, %v1203
    %v1220 = vpack.c.b16 %v1206, %v1205
    %v1221 = vpack.c.b16 %v1208, %v1207
    %v1222 = vpack.c.b16 %v1210, %v1209
    %v1223 = vpack.c.b16 %v1212, %v1211
    %v1224 = vpack.c.b16 %v1214, %v1213
    %v1225 = vpack.c.b16 %v1216, %v1215
    %v1226 = vpack.c.b16 %v1218, %v1217
    %1235 = vmatpush.bf16.msra.mxu0 %v1226
    %1236 = vmatpush.bf16.msra.mxu0 %v1225
    %1237 = vmatpush.bf16.msra.mxu0 %v1224
    %1238 = vmatpush.bf16.msra.mxu0 %v1223
    %1239 = vmatpush.bf16.msra.mxu0 %v1222
    %1240 = vmatpush.bf16.msra.mxu0 %v1221
    %1241 = vmatpush.bf16.msra.mxu0 %v1220
    %1242 = vmatpush.bf16.msra.mxu0 %v1219
    %1243 = vmatmul.bf16.gmra.mxu0 %v1163
    %v1244 = vpop.f32.mrf.mxu0
    %v1245 = vadd.f32 %v1185, %v1244
    %v1246 = vpop.f32.mrf.mxu0
    %v1247 = vadd.f32 %v1185, %v1246
    %1248 = vmatmul.bf16.gmra.mxu0 %v1164
    %v1249 = vpop.f32.mrf.mxu0
    %v1250 = vadd.f32 %v1185, %v1249
    %v1251 = vpop.f32.mrf.mxu0
    %v1252 = vadd.f32 %v1185, %v1251
    %1253 = vdwg.mxu0
    %v1254 = vpack.c.bf16 %v1247, %v1245
    %v1255 = vpack.c.bf16 %v1252, %v1250
    %s1256 = scalar_lea.vmem [#allocation7], 64
    %v1257 = vld [vmem:[%s1256] sm:$0xf]
    %v1258 = vld [vmem:[%s1256 + $0x4] sm:$0xf]
    %v1259 = vld [vmem:[%s1256 + $0x8] sm:$0xf]
    %v1260 = vld [vmem:[%s1256 + $0xc] sm:$0xf]
    %v1261 = vld [vmem:[%s1256 + $0x10] sm:$0xf]
    %v1262 = vld [vmem:[%s1256 + $0x14] sm:$0xf]
    %v1263 = vld [vmem:[%s1256 + $0x18] sm:$0xf]
    %v1264 = vld [vmem:[%s1256 + $0x1c] sm:$0xf]
    %v1265 = vld [vmem:[%s1256 + $0x20] sm:$0xf]
    %v1266 = vld [vmem:[%s1256 + $0x24] sm:$0xf]
    %v1267 = vld [vmem:[%s1256 + $0x28] sm:$0xf]
    %v1268 = vld [vmem:[%s1256 + $0x2c] sm:$0xf]
    %v1269 = vld [vmem:[%s1256 + $0x30] sm:$0xf]
    %v1270 = vld [vmem:[%s1256 + $0x34] sm:$0xf]
    %v1271 = vld [vmem:[%s1256 + $0x38] sm:$0xf]
    %v1272 = vld [vmem:[%s1256 + $0x3c] sm:$0xf]
    %v1289 = vunpack.c.l.b16 %v1257
    %v1290 = vunpack.c.l.b16 %v1258
    %v1291 = vunpack.c.l.b16 %v1259
    %v1292 = vunpack.c.l.b16 %v1260
    %v1293 = vunpack.c.l.b16 %v1261
    %v1294 = vunpack.c.l.b16 %v1262
    %v1295 = vunpack.c.l.b16 %v1263
    %v1296 = vunpack.c.l.b16 %v1264
    %v1297 = vunpack.c.l.b16 %v1265
    %v1298 = vunpack.c.l.b16 %v1266
    %v1299 = vunpack.c.l.b16 %v1267
    %v1300 = vunpack.c.l.b16 %v1268
    %v1301 = vunpack.c.l.b16 %v1269
    %v1302 = vunpack.c.l.b16 %v1270
    %v1303 = vunpack.c.l.b16 %v1271
    %v1304 = vunpack.c.l.b16 %v1272
    %v1305 = vpack.c.b16 %v1290, %v1289
    %v1306 = vpack.c.b16 %v1292, %v1291
    %v1307 = vpack.c.b16 %v1294, %v1293
    %v1308 = vpack.c.b16 %v1296, %v1295
    %v1309 = vpack.c.b16 %v1298, %v1297
    %v1310 = vpack.c.b16 %v1300, %v1299
    %v1311 = vpack.c.b16 %v1302, %v1301
    %v1312 = vpack.c.b16 %v1304, %v1303
    %1321 = vmatpush.bf16.msra.mxu0 %v1312
    %1322 = vmatpush.bf16.msra.mxu0 %v1311
    %1323 = vmatpush.bf16.msra.mxu0 %v1310
    %1324 = vmatpush.bf16.msra.mxu0 %v1309
    %1325 = vmatpush.bf16.msra.mxu0 %v1308
    %1326 = vmatpush.bf16.msra.mxu0 %v1307
    %1327 = vmatpush.bf16.msra.mxu0 %v1306
    %1328 = vmatpush.bf16.msra.mxu0 %v1305
    %1329 = vmatmul.bf16.gmra.mxu0 %v1254
    %v1330 = vpop.f32.mrf.mxu0
    %v1331 = vadd.f32 0.0, %v1330
    %v1332 = vpop.f32.mrf.mxu0
    %v1333 = vadd.f32 0.0, %v1332
    %1334 = vmatmul.bf16.gmra.mxu0 %v1255
    %v1335 = vpop.f32.mrf.mxu0
    %v1336 = vadd.f32 0.0, %v1335
    %v1337 = vpop.f32.mrf.mxu0
    %v1338 = vadd.f32 0.0, %v1337
    %1339 = vdwg.mxu0
    %v1340 = vadd.f32 %v763, %v1331
    %v1341 = vadd.f32 %v765, %v1333
    %v1342 = vadd.f32 %v768, %v1336
    %v1343 = vadd.f32 %v770, %v1338
    %s1344 = scalar_lea.vmem %s10, 1
    %v1345 = vld [vmem:[%s1344] sm:$0x1]
    %v1347 = vperm.slane %v1345, 0
    %v1349 = vadd.f32 %v1340, %v1347
    %v1350 = vadd.f32 %v1341, %v1347
    %v1351 = vadd.f32 %v1342, %v1347
    %v1352 = vadd.f32 %v1343, %v1347
    %v1353 = vadd.f32 %v1245, %v772
    %v1354 = vadd.f32 %v1247, %v773
    %v1355 = vadd.f32 %v1250, %v774
    %v1356 = vadd.f32 %v1252, %v775
    %v1357 = vpack.c.bf16 %v1354, %v1353
    %v1358 = vpack.c.bf16 %v1356, %v1355
    %vm1359 = vcmp.lt.s32.totalorder %v124, 4
    %vm1360 = vcmp.lt.s32.totalorder %v125, 4
    %v1361 = vrot.slane %v1353, 4
    %v1362 = vrot.slane %v1354, 4
    %v1363 = vrot.slane %v1355, 4
    %v1364 = vrot.slane %v1356, 4
    %v1365 = vsel %vm1359, %v1363, %v1364
    %v1366 = vsel %vm1359, %v1362, %v1363
    %v1367 = vsel %vm1359, %v1361, %v1362
    %v1368 = vsel %vm1359, %v1364, %v1361
    %v1369 = vsel %vm1359, 0.0, %v1368
    %v1370 = vsel %vm1360, 0.0, %v1367
    %v1371 = vsel %vm1359, 0.0, %v1366
    %v1372 = vsel %vm1360, 0.0, %v1365
    %v1373 = vpack.c.bf16 %v1370, %v1369
    %v1374 = vpack.c.bf16 %v1372, %v1371
    %s1375 = scalar_lea.vmem [#allocation2], 256
    %v1376 = vld [vmem:[%s1375] sm:$0xff]
    %v1377 = vld [vmem:[%s1375 + $0x8] sm:$0xff]
    %v1378 = vld [vmem:[%s1375 + $0x10] sm:$0xff]
    %v1379 = vld [vmem:[%s1375 + $0x18] sm:$0xff]
    %v1380 = vld [vmem:[%s1375 + $0x20] sm:$0xff]
    %v1381 = vld [vmem:[%s1375 + $0x28] sm:$0xff]
    %v1382 = vld [vmem:[%s1375 + $0x30] sm:$0xff]
    %v1383 = vld [vmem:[%s1375 + $0x38] sm:$0xff]
    %v1384 = vld [vmem:[%s1375 + $0x40] sm:$0xff]
    %v1385 = vld [vmem:[%s1375 + $0x48] sm:$0xff]
    %v1386 = vld [vmem:[%s1375 + $0x50] sm:$0xff]
    %v1387 = vld [vmem:[%s1375 + $0x58] sm:$0xff]
    %v1388 = vld [vmem:[%s1375 + $0x60] sm:$0xff]
    %v1389 = vld [vmem:[%s1375 + $0x68] sm:$0xff]
    %v1390 = vld [vmem:[%s1375 + $0x70] sm:$0xff]
    %v1391 = vld [vmem:[%s1375 + $0x78] sm:$0xff]
    %s1392 = scalar_lea.vmem [#allocation4], 256
    %v1393 = vld [vmem:[%s1392] sm:$0xff]
    %v1394 = vld [vmem:[%s1392 + $0x8] sm:$0xff]
    %v1395 = vld [vmem:[%s1392 + $0x10] sm:$0xff]
    %v1396 = vld [vmem:[%s1392 + $0x18] sm:$0xff]
    %v1397 = vld [vmem:[%s1392 + $0x20] sm:$0xff]
    %v1398 = vld [vmem:[%s1392 + $0x28] sm:$0xff]
    %v1399 = vld [vmem:[%s1392 + $0x30] sm:$0xff]
    %v1400 = vld [vmem:[%s1392 + $0x38] sm:$0xff]
    %v1401 = vld [vmem:[%s1392 + $0x40] sm:$0xff]
    %v1402 = vld [vmem:[%s1392 + $0x48] sm:$0xff]
    %v1403 = vld [vmem:[%s1392 + $0x50] sm:$0xff]
    %v1404 = vld [vmem:[%s1392 + $0x58] sm:$0xff]
    %v1405 = vld [vmem:[%s1392 + $0x60] sm:$0xff]
    %v1406 = vld [vmem:[%s1392 + $0x68] sm:$0xff]
    %v1407 = vld [vmem:[%s1392 + $0x70] sm:$0xff]
    %v1408 = vld [vmem:[%s1392 + $0x78] sm:$0xff]
    %v1425 = vunpack.c.l.b16 %v1393
    %v1426 = vunpack.c.h.b16 %v1393
    %v1427 = vunpack.c.l.b16 %v1394
    %v1428 = vunpack.c.h.b16 %v1394
    %v1429 = vunpack.c.l.b16 %v1395
    %v1430 = vunpack.c.h.b16 %v1395
    %v1431 = vunpack.c.l.b16 %v1396
    %v1432 = vunpack.c.h.b16 %v1396
    %v1433 = vunpack.c.l.b16 %v1397
    %v1434 = vunpack.c.h.b16 %v1397
    %v1435 = vunpack.c.l.b16 %v1398
    %v1436 = vunpack.c.h.b16 %v1398
    %v1437 = vunpack.c.l.b16 %v1399
    %v1438 = vunpack.c.h.b16 %v1399
    %v1439 = vunpack.c.l.b16 %v1400
    %v1440 = vunpack.c.h.b16 %v1400
    %v1441 = vunpack.c.l.b16 %v1401
    %v1442 = vunpack.c.h.b16 %v1401
    %v1443 = vunpack.c.l.b16 %v1402
    %v1444 = vunpack.c.h.b16 %v1402
    %v1445 = vunpack.c.l.b16 %v1403
    %v1446 = vunpack.c.h.b16 %v1403
    %v1447 = vunpack.c.l.b16 %v1404
    %v1448 = vunpack.c.h.b16 %v1404
    %v1449 = vunpack.c.l.b16 %v1405
    %v1450 = vunpack.c.h.b16 %v1405
    %v1451 = vunpack.c.l.b16 %v1406
    %v1452 = vunpack.c.h.b16 %v1406
    %v1453 = vunpack.c.l.b16 %v1407
    %v1454 = vunpack.c.h.b16 %v1407
    %v1455 = vunpack.c.l.b16 %v1408
    %v1456 = vunpack.c.h.b16 %v1408
    %v1457 = vpack.c.b16 %v1427, %v1425
    %v1458 = vpack.c.b16 %v1428, %v1426
    %v1459 = vpack.c.b16 %v1431, %v1429
    %v1460 = vpack.c.b16 %v1432, %v1430
    %v1461 = vpack.c.b16 %v1435, %v1433
    %v1462 = vpack.c.b16 %v1436, %v1434
    %v1463 = vpack.c.b16 %v1439, %v1437
    %v1464 = vpack.c.b16 %v1440, %v1438
    %v1465 = vpack.c.b16 %v1443, %v1441
    %v1466 = vpack.c.b16 %v1444, %v1442
    %v1467 = vpack.c.b16 %v1447, %v1445
    %v1468 = vpack.c.b16 %v1448, %v1446
    %v1469 = vpack.c.b16 %v1451, %v1449
    %v1470 = vpack.c.b16 %v1452, %v1450
    %v1471 = vpack.c.b16 %v1455, %v1453
    %v1472 = vpack.c.b16 %v1456, %v1454
    %1489 = vmatpush.bf16.msra.mxu0 %v1471
    %1490 = vmatpush.bf16.msra.mxu0 %v1469
    %1491 = vmatpush.bf16.msra.mxu0 %v1467
    %1492 = vmatpush.bf16.msra.mxu0 %v1465
    %1493 = vmatpush.bf16.msra.mxu0 %v1463
    %1494 = vmatpush.bf16.msra.mxu0 %v1461
    %1495 = vmatpush.bf16.msra.mxu0 %v1459
    %1496 = vmatpush.bf16.msra.mxu0 %v1457
    %1497 = vmatmul.bf16.gmra.mxu0 %v1357
    %v1498 = vpop.f32.mrf.mxu0
    %v1499 = vadd.f32 0.0, %v1498
    %v1500 = vpop.f32.mrf.mxu0
    %v1501 = vadd.f32 0.0, %v1500
    %1502 = vmatmul.bf16.gmra.mxu0 %v1358
    %v1503 = vpop.f32.mrf.mxu0
    %v1504 = vadd.f32 0.0, %v1503
    %v1505 = vpop.f32.mrf.mxu0
    %v1506 = vadd.f32 0.0, %v1505
    %1507 = vdwg.mxu0
    %1508 = vmatpush.bf16.msra.mxu0 %v1472
    %1509 = vmatpush.bf16.msra.mxu0 %v1470
    %1510 = vmatpush.bf16.msra.mxu0 %v1468
    %1511 = vmatpush.bf16.msra.mxu0 %v1466
    %1512 = vmatpush.bf16.msra.mxu0 %v1464
    %1513 = vmatpush.bf16.msra.mxu0 %v1462
    %1514 = vmatpush.bf16.msra.mxu0 %v1460
    %1515 = vmatpush.bf16.msra.mxu0 %v1458
    %1516 = vmatmul.bf16.gmra.mxu0 %v1357
    %v1517 = vpop.f32.mrf.mxu0
    %v1518 = vadd.f32 0.0, %v1517
    %v1519 = vpop.f32.mrf.mxu0
    %v1520 = vadd.f32 0.0, %v1519
    %1521 = vmatmul.bf16.gmra.mxu0 %v1358
    %v1522 = vpop.f32.mrf.mxu0
    %v1523 = vadd.f32 0.0, %v1522
    %v1524 = vpop.f32.mrf.mxu0
    %v1525 = vadd.f32 0.0, %v1524
    %1526 = vdwg.mxu0
    %v1543 = vunpack.c.l.b16 %v1376
    %v1544 = vunpack.c.h.b16 %v1376
    %v1545 = vunpack.c.l.b16 %v1377
    %v1546 = vunpack.c.h.b16 %v1377
    %v1547 = vunpack.c.l.b16 %v1378
    %v1548 = vunpack.c.h.b16 %v1378
    %v1549 = vunpack.c.l.b16 %v1379
    %v1550 = vunpack.c.h.b16 %v1379
    %v1551 = vunpack.c.l.b16 %v1380
    %v1552 = vunpack.c.h.b16 %v1380
    %v1553 = vunpack.c.l.b16 %v1381
    %v1554 = vunpack.c.h.b16 %v1381
    %v1555 = vunpack.c.l.b16 %v1382
    %v1556 = vunpack.c.h.b16 %v1382
    %v1557 = vunpack.c.l.b16 %v1383
    %v1558 = vunpack.c.h.b16 %v1383
    %v1559 = vunpack.c.l.b16 %v1384
    %v1560 = vunpack.c.h.b16 %v1384
    %v1561 = vunpack.c.l.b16 %v1385
    %v1562 = vunpack.c.h.b16 %v1385
    %v1563 = vunpack.c.l.b16 %v1386
    %v1564 = vunpack.c.h.b16 %v1386
    %v1565 = vunpack.c.l.b16 %v1387
    %v1566 = vunpack.c.h.b16 %v1387
    %v1567 = vunpack.c.l.b16 %v1388
    %v1568 = vunpack.c.h.b16 %v1388
    %v1569 = vunpack.c.l.b16 %v1389
    %v1570 = vunpack.c.h.b16 %v1389
    %v1571 = vunpack.c.l.b16 %v1390
    %v1572 = vunpack.c.h.b16 %v1390
    %v1573 = vunpack.c.l.b16 %v1391
    %v1574 = vunpack.c.h.b16 %v1391
    %v1575 = vpack.c.b16 %v1545, %v1543
    %v1576 = vpack.c.b16 %v1546, %v1544
    %v1577 = vpack.c.b16 %v1549, %v1547
    %v1578 = vpack.c.b16 %v1550, %v1548
    %v1579 = vpack.c.b16 %v1553, %v1551
    %v1580 = vpack.c.b16 %v1554, %v1552
    %v1581 = vpack.c.b16 %v1557, %v1555
    %v1582 = vpack.c.b16 %v1558, %v1556
    %v1583 = vpack.c.b16 %v1561, %v1559
    %v1584 = vpack.c.b16 %v1562, %v1560
    %v1585 = vpack.c.b16 %v1565, %v1563
    %v1586 = vpack.c.b16 %v1566, %v1564
    %v1587 = vpack.c.b16 %v1569, %v1567
    %v1588 = vpack.c.b16 %v1570, %v1568
    %v1589 = vpack.c.b16 %v1573, %v1571
    %v1590 = vpack.c.b16 %v1574, %v1572
    %1607 = vmatpush.bf16.msra.mxu0 %v1589
    %1608 = vmatpush.bf16.msra.mxu0 %v1587
    %1609 = vmatpush.bf16.msra.mxu0 %v1585
    %1610 = vmatpush.bf16.msra.mxu0 %v1583
    %1611 = vmatpush.bf16.msra.mxu0 %v1581
    %1612 = vmatpush.bf16.msra.mxu0 %v1579
    %1613 = vmatpush.bf16.msra.mxu0 %v1577
    %1614 = vmatpush.bf16.msra.mxu0 %v1575
    %1615 = vmatmul.bf16.gmra.mxu0 %v1373
    %v1616 = vpop.f32.mrf.mxu0
    %v1617 = vadd.f32 %v1499, %v1616
    %v1618 = vpop.f32.mrf.mxu0
    %v1619 = vadd.f32 %v1501, %v1618
    %1620 = vmatmul.bf16.gmra.mxu0 %v1374
    %v1621 = vpop.f32.mrf.mxu0
    %v1622 = vadd.f32 %v1504, %v1621
    %v1623 = vpop.f32.mrf.mxu0
    %v1624 = vadd.f32 %v1506, %v1623
    %1625 = vdwg.mxu0
    %1626 = vmatpush.bf16.msra.mxu0 %v1590
    %1627 = vmatpush.bf16.msra.mxu0 %v1588
    %1628 = vmatpush.bf16.msra.mxu0 %v1586
    %1629 = vmatpush.bf16.msra.mxu0 %v1584
    %1630 = vmatpush.bf16.msra.mxu0 %v1582
    %1631 = vmatpush.bf16.msra.mxu0 %v1580
    %1632 = vmatpush.bf16.msra.mxu0 %v1578
    %1633 = vmatpush.bf16.msra.mxu0 %v1576
    %1634 = vmatmul.bf16.gmra.mxu0 %v1373
    %v1635 = vpop.f32.mrf.mxu0
    %v1636 = vadd.f32 %v1518, %v1635
    %v1637 = vpop.f32.mrf.mxu0
    %v1638 = vadd.f32 %v1520, %v1637
    %1639 = vmatmul.bf16.gmra.mxu0 %v1374
    %v1640 = vpop.f32.mrf.mxu0
    %v1641 = vadd.f32 %v1523, %v1640
    %v1642 = vpop.f32.mrf.mxu0
    %v1643 = vadd.f32 %v1525, %v1642
    %1644 = vdwg.mxu0
    %s1645 = scalar_lea.vmem %s6, 4
    %v1646 = vld [vmem:[%s1645] sm:$0x3]
    %v1648 = vperm.slane %v1646, 0
    %v1649 = vperm.slane %v1646, 1
    %v1652 = vadd.f32 %v1617, %v1648
    %v1653 = vadd.f32 %v1636, %v1649
    %v1654 = vadd.f32 %v1619, %v1648
    %v1655 = vadd.f32 %v1638, %v1649
    %v1656 = vadd.f32 %v1622, %v1648
    %v1657 = vadd.f32 %v1641, %v1649
    %v1658 = vadd.f32 %v1624, %v1648
    %v1659 = vadd.f32 %v1643, %v1649
    %v1660 = vtanh.pop %v1652
    %v1661 = vtanh.pop %v1654
    %v1662 = vtanh.pop %v1656
    %v1663 = vtanh.pop %v1658
    %v1664 = vxor.u32 %v1653, 2147483648
    %v1665 = vxor.u32 %v1655, 2147483648
    %v1666 = vxor.u32 %v1657, 2147483648
    %v1667 = vxor.u32 %v1659, 2147483648
    %v1668 = vmul.f32 %v1664, 1.442695
    %v1669 = vpow.pop %v1668
    %v1670 = vmul.f32 %v1665, 1.442695
    %v1671 = vpow.pop %v1670
    %v1672 = vmul.f32 %v1666, 1.442695
    %v1673 = vpow.pop %v1672
    %v1674 = vmul.f32 %v1667, 1.442695
    %v1675 = vpow.pop %v1674
    %v1676 = vadd.f32 %v1669, 1.0
    %v1677 = vadd.f32 %v1671, 1.0
    %v1678 = vadd.f32 %v1673, 1.0
    %v1679 = vadd.f32 %v1675, 1.0
    %v1680 = vrcp.pop %v1676
    %v1681 = vmul.f32 %v1676, %v1680
    %v1682 = vsub.f32 1.0, %v1681
    %v1683 = vmul.f32 %v1680, %v1682
    %v1684 = vadd.f32 %v1680, %v1683
    %vm1685 = vweird.f32 %v1676
    %vm1686 = vweird.f32 %v1680
    %vm1687 = vmor %vm1685, %vm1686
    %v1688 = vsel %vm1687, %v1680, %v1684
    %v1689 = vand.u32 2147483647, %v1676
    %vm1690 = vcmp.eq.f32.partialorder %v1689, 8.507059e+37
    %v1691 = vand.u32 %v1676, 2147483648
    %v1692 = vor.u32 1.1754944e-38, %v1691
    %v1693 = vsel %vm1690, %v1692, %v1688
    %v1694 = vmul.f32 1.0, %v1693
    %v1695 = vrcp.pop %v1677
    %v1696 = vmul.f32 %v1677, %v1695
    %v1697 = vsub.f32 1.0, %v1696
    %v1698 = vmul.f32 %v1695, %v1697
    %v1699 = vadd.f32 %v1695, %v1698
    %vm1700 = vweird.f32 %v1677
    %vm1701 = vweird.f32 %v1695
    %vm1702 = vmor %vm1700, %vm1701
    %v1703 = vsel %vm1702, %v1695, %v1699
    %v1704 = vand.u32 2147483647, %v1677
    %vm1705 = vcmp.eq.f32.partialorder %v1704, 8.507059e+37
    %v1706 = vand.u32 %v1677, 2147483648
    %v1707 = vor.u32 1.1754944e-38, %v1706
    %v1708 = vsel %vm1705, %v1707, %v1703
    %v1709 = vmul.f32 1.0, %v1708
    %v1710 = vrcp.pop %v1678
    %v1711 = vmul.f32 %v1678, %v1710
    %v1712 = vsub.f32 1.0, %v1711
    %v1713 = vmul.f32 %v1710, %v1712
    %v1714 = vadd.f32 %v1710, %v1713
    %vm1715 = vweird.f32 %v1678
    %vm1716 = vweird.f32 %v1710
    %vm1717 = vmor %vm1715, %vm1716
    %v1718 = vsel %vm1717, %v1710, %v1714
    %v1719 = vand.u32 2147483647, %v1678
    %vm1720 = vcmp.eq.f32.partialorder %v1719, 8.507059e+37
    %v1721 = vand.u32 %v1678, 2147483648
    %v1722 = vor.u32 1.1754944e-38, %v1721
    %v1723 = vsel %vm1720, %v1722, %v1718
    %v1724 = vmul.f32 1.0, %v1723
    %v1725 = vrcp.pop %v1679
    %v1726 = vmul.f32 %v1679, %v1725
    %v1727 = vsub.f32 1.0, %v1726
    %v1728 = vmul.f32 %v1725, %v1727
    %v1729 = vadd.f32 %v1725, %v1728
    %vm1730 = vweird.f32 %v1679
    %vm1731 = vweird.f32 %v1725
    %vm1732 = vmor %vm1730, %vm1731
    %v1733 = vsel %vm1732, %v1725, %v1729
    %v1734 = vand.u32 2147483647, %v1679
    %vm1735 = vcmp.eq.f32.partialorder %v1734, 8.507059e+37
    %v1736 = vand.u32 %v1679, 2147483648
    %v1737 = vor.u32 1.1754944e-38, %v1736
    %v1738 = vsel %vm1735, %v1737, %v1733
    %v1739 = vmul.f32 1.0, %v1738
    %v1740 = vmul.f32 %v1660, %v1694
    %v1741 = vmul.f32 %v1661, %v1709
    %v1742 = vmul.f32 %v1662, %v1724
    %v1743 = vmul.f32 %v1663, %v1739
    %v1744 = vpack.c.bf16 %v1741, %v1740
    %v1745 = vpack.c.bf16 %v1743, %v1742
    %s1746 = scalar_lea.vmem [#allocation6], 128
    %v1747 = vld [vmem:[%s1746] sm:$0xf]
    %v1748 = vld [vmem:[%s1746 + $0x4] sm:$0xf]
    %v1749 = vld [vmem:[%s1746 + $0x8] sm:$0xf]
    %v1750 = vld [vmem:[%s1746 + $0xc] sm:$0xf]
    %v1751 = vld [vmem:[%s1746 + $0x10] sm:$0xf]
    %v1752 = vld [vmem:[%s1746 + $0x14] sm:$0xf]
    %v1753 = vld [vmem:[%s1746 + $0x18] sm:$0xf]
    %v1754 = vld [vmem:[%s1746 + $0x1c] sm:$0xf]
    %v1755 = vld [vmem:[%s1746 + $0x20] sm:$0xf]
    %v1756 = vld [vmem:[%s1746 + $0x24] sm:$0xf]
    %v1757 = vld [vmem:[%s1746 + $0x28] sm:$0xf]
    %v1758 = vld [vmem:[%s1746 + $0x2c] sm:$0xf]
    %v1759 = vld [vmem:[%s1746 + $0x30] sm:$0xf]
    %v1760 = vld [vmem:[%s1746 + $0x34] sm:$0xf]
    %v1761 = vld [vmem:[%s1746 + $0x38] sm:$0xf]
    %v1762 = vld [vmem:[%s1746 + $0x3c] sm:$0xf]
    %s1763 = scalar_lea.vmem %s8, 2
    %v1764 = vld [vmem:[%s1763] sm:$0x1]
    %v1766 = vperm.slane %v1764, 0
    %v1784 = vunpack.c.l.b16 %v1747
    %v1785 = vunpack.c.l.b16 %v1748
    %v1786 = vunpack.c.l.b16 %v1749
    %v1787 = vunpack.c.l.b16 %v1750
    %v1788 = vunpack.c.l.b16 %v1751
    %v1789 = vunpack.c.l.b16 %v1752
    %v1790 = vunpack.c.l.b16 %v1753
    %v1791 = vunpack.c.l.b16 %v1754
    %v1792 = vunpack.c.l.b16 %v1755
    %v1793 = vunpack.c.l.b16 %v1756
    %v1794 = vunpack.c.l.b16 %v1757
    %v1795 = vunpack.c.l.b16 %v1758
    %v1796 = vunpack.c.l.b16 %v1759
    %v1797 = vunpack.c.l.b16 %v1760
    %v1798 = vunpack.c.l.b16 %v1761
    %v1799 = vunpack.c.l.b16 %v1762
    %v1800 = vpack.c.b16 %v1785, %v1784
    %v1801 = vpack.c.b16 %v1787, %v1786
    %v1802 = vpack.c.b16 %v1789, %v1788
    %v1803 = vpack.c.b16 %v1791, %v1790
    %v1804 = vpack.c.b16 %v1793, %v1792
    %v1805 = vpack.c.b16 %v1795, %v1794
    %v1806 = vpack.c.b16 %v1797, %v1796
    %v1807 = vpack.c.b16 %v1799, %v1798
    %1816 = vmatpush.bf16.msra.mxu0 %v1807
    %1817 = vmatpush.bf16.msra.mxu0 %v1806
    %1818 = vmatpush.bf16.msra.mxu0 %v1805
    %1819 = vmatpush.bf16.msra.mxu0 %v1804
    %1820 = vmatpush.bf16.msra.mxu0 %v1803
    %1821 = vmatpush.bf16.msra.mxu0 %v1802
    %1822 = vmatpush.bf16.msra.mxu0 %v1801
    %1823 = vmatpush.bf16.msra.mxu0 %v1800
    %1824 = vmatmul.bf16.gmra.mxu0 %v1744
    %v1825 = vpop.f32.mrf.mxu0
    %v1826 = vadd.f32 %v1766, %v1825
    %v1827 = vpop.f32.mrf.mxu0
    %v1828 = vadd.f32 %v1766, %v1827
    %1829 = vmatmul.bf16.gmra.mxu0 %v1745
    %v1830 = vpop.f32.mrf.mxu0
    %v1831 = vadd.f32 %v1766, %v1830
    %v1832 = vpop.f32.mrf.mxu0
    %v1833 = vadd.f32 %v1766, %v1832
    %1834 = vdwg.mxu0
    %v1835 = vpack.c.bf16 %v1828, %v1826
    %v1836 = vpack.c.bf16 %v1833, %v1831
    %s1837 = scalar_lea.vmem [#allocation7], 128
    %v1838 = vld [vmem:[%s1837] sm:$0xf]
    %v1839 = vld [vmem:[%s1837 + $0x4] sm:$0xf]
    %v1840 = vld [vmem:[%s1837 + $0x8] sm:$0xf]
    %v1841 = vld [vmem:[%s1837 + $0xc] sm:$0xf]
    %v1842 = vld [vmem:[%s1837 + $0x10] sm:$0xf]
    %v1843 = vld [vmem:[%s1837 + $0x14] sm:$0xf]
    %v1844 = vld [vmem:[%s1837 + $0x18] sm:$0xf]
    %v1845 = vld [vmem:[%s1837 + $0x1c] sm:$0xf]
    %v1846 = vld [vmem:[%s1837 + $0x20] sm:$0xf]
    %v1847 = vld [vmem:[%s1837 + $0x24] sm:$0xf]
    %v1848 = vld [vmem:[%s1837 + $0x28] sm:$0xf]
    %v1849 = vld [vmem:[%s1837 + $0x2c] sm:$0xf]
    %v1850 = vld [vmem:[%s1837 + $0x30] sm:$0xf]
    %v1851 = vld [vmem:[%s1837 + $0x34] sm:$0xf]
    %v1852 = vld [vmem:[%s1837 + $0x38] sm:$0xf]
    %v1853 = vld [vmem:[%s1837 + $0x3c] sm:$0xf]
    %v1870 = vunpack.c.l.b16 %v1838
    %v1871 = vunpack.c.l.b16 %v1839
    %v1872 = vunpack.c.l.b16 %v1840
    %v1873 = vunpack.c.l.b16 %v1841
    %v1874 = vunpack.c.l.b16 %v1842
    %v1875 = vunpack.c.l.b16 %v1843
    %v1876 = vunpack.c.l.b16 %v1844
    %v1877 = vunpack.c.l.b16 %v1845
    %v1878 = vunpack.c.l.b16 %v1846
    %v1879 = vunpack.c.l.b16 %v1847
    %v1880 = vunpack.c.l.b16 %v1848
    %v1881 = vunpack.c.l.b16 %v1849
    %v1882 = vunpack.c.l.b16 %v1850
    %v1883 = vunpack.c.l.b16 %v1851
    %v1884 = vunpack.c.l.b16 %v1852
    %v1885 = vunpack.c.l.b16 %v1853
    %v1886 = vpack.c.b16 %v1871, %v1870
    %v1887 = vpack.c.b16 %v1873, %v1872
    %v1888 = vpack.c.b16 %v1875, %v1874
    %v1889 = vpack.c.b16 %v1877, %v1876
    %v1890 = vpack.c.b16 %v1879, %v1878
    %v1891 = vpack.c.b16 %v1881, %v1880
    %v1892 = vpack.c.b16 %v1883, %v1882
    %v1893 = vpack.c.b16 %v1885, %v1884
    %1902 = vmatpush.bf16.msra.mxu0 %v1893
    %1903 = vmatpush.bf16.msra.mxu0 %v1892
    %1904 = vmatpush.bf16.msra.mxu0 %v1891
    %1905 = vmatpush.bf16.msra.mxu0 %v1890
    %1906 = vmatpush.bf16.msra.mxu0 %v1889
    %1907 = vmatpush.bf16.msra.mxu0 %v1888
    %1908 = vmatpush.bf16.msra.mxu0 %v1887
    %1909 = vmatpush.bf16.msra.mxu0 %v1886
    %1910 = vmatmul.bf16.gmra.mxu0 %v1835
    %v1911 = vpop.f32.mrf.mxu0
    %v1912 = vadd.f32 0.0, %v1911
    %v1913 = vpop.f32.mrf.mxu0
    %v1914 = vadd.f32 0.0, %v1913
    %1915 = vmatmul.bf16.gmra.mxu0 %v1836
    %v1916 = vpop.f32.mrf.mxu0
    %v1917 = vadd.f32 0.0, %v1916
    %v1918 = vpop.f32.mrf.mxu0
    %v1919 = vadd.f32 0.0, %v1918
    %1920 = vdwg.mxu0
    %v1921 = vadd.f32 %v1349, %v1912
    %v1922 = vadd.f32 %v1350, %v1914
    %v1923 = vadd.f32 %v1351, %v1917
    %v1924 = vadd.f32 %v1352, %v1919
    %s1925 = scalar_lea.vmem %s10, 2
    %v1926 = vld [vmem:[%s1925] sm:$0x1]
    %v1928 = vperm.slane %v1926, 0
    %v1930 = vadd.f32 %v1921, %v1928
    %v1931 = vadd.f32 %v1922, %v1928
    %v1932 = vadd.f32 %v1923, %v1928
    %v1933 = vadd.f32 %v1924, %v1928
    %v1934 = vpack.c.bf16 %v1931, %v1930
    %v1935 = vpack.c.bf16 %v1933, %v1932
    %v1936 = vld [vmem:[#allocation9] sm:$0xff]
    %v1937 = vld [vmem:[#allocation9 + $0x8] sm:$0xff]
    %v1938 = vld [vmem:[#allocation9 + $0x10] sm:$0xff]
    %v1939 = vld [vmem:[#allocation9 + $0x18] sm:$0xff]
    %v1940 = vld [vmem:[#allocation9 + $0x20] sm:$0xff]
    %v1941 = vld [vmem:[#allocation9 + $0x28] sm:$0xff]
    %v1942 = vld [vmem:[#allocation9 + $0x30] sm:$0xff]
    %v1943 = vld [vmem:[#allocation9 + $0x38] sm:$0xff]
    %v1944 = vld [vmem:[#allocation9 + $0x40] sm:$0xff]
    %v1945 = vld [vmem:[#allocation9 + $0x48] sm:$0xff]
    %v1946 = vld [vmem:[#allocation9 + $0x50] sm:$0xff]
    %v1947 = vld [vmem:[#allocation9 + $0x58] sm:$0xff]
    %v1948 = vld [vmem:[#allocation9 + $0x60] sm:$0xff]
    %v1949 = vld [vmem:[#allocation9 + $0x68] sm:$0xff]
    %v1950 = vld [vmem:[#allocation9 + $0x70] sm:$0xff]
    %v1951 = vld [vmem:[#allocation9 + $0x78] sm:$0xff]
    %v1952 = vld [vmem:[#allocation9 + $0x80] sm:$0xff]
    %v1953 = vld [vmem:[#allocation9 + $0x88] sm:$0xff]
    %v1954 = vld [vmem:[#allocation9 + $0x90] sm:$0xff]
    %v1955 = vld [vmem:[#allocation9 + $0x98] sm:$0xff]
    %v1956 = vld [vmem:[#allocation9 + $0xa0] sm:$0xff]
    %v1957 = vld [vmem:[#allocation9 + $0xa8] sm:$0xff]
    %v1958 = vld [vmem:[#allocation9 + $0xb0] sm:$0xff]
    %v1959 = vld [vmem:[#allocation9 + $0xb8] sm:$0xff]
    %v1960 = vld [vmem:[#allocation9 + $0xc0] sm:$0xff]
    %v1961 = vld [vmem:[#allocation9 + $0xc8] sm:$0xff]
    %v1962 = vld [vmem:[#allocation9 + $0xd0] sm:$0xff]
    %v1963 = vld [vmem:[#allocation9 + $0xd8] sm:$0xff]
    %v1964 = vld [vmem:[#allocation9 + $0xe0] sm:$0xff]
    %v1965 = vld [vmem:[#allocation9 + $0xe8] sm:$0xff]
    %v1966 = vld [vmem:[#allocation9 + $0xf0] sm:$0xff]
    %v1967 = vld [vmem:[#allocation9 + $0xf8] sm:$0xff]
    %v1968 = vld [vmem:[%s12] sm:$0xf]
    %v1970 = vperm.slane %v1968, 0
    %v1971 = vperm.slane %v1968, 1
    %v1972 = vperm.slane %v1968, 2
    %v1973 = vperm.slane %v1968, 3
    %v2010 = vunpack.c.l.b16 %v1936
    %v2011 = vunpack.c.h.b16 %v1936
    %v2012 = vunpack.c.l.b16 %v1937
    %v2013 = vunpack.c.h.b16 %v1937
    %v2014 = vunpack.c.l.b16 %v1938
    %v2015 = vunpack.c.h.b16 %v1938
    %v2016 = vunpack.c.l.b16 %v1939
    %v2017 = vunpack.c.h.b16 %v1939
    %v2018 = vunpack.c.l.b16 %v1940
    %v2019 = vunpack.c.h.b16 %v1940
    %v2020 = vunpack.c.l.b16 %v1941
    %v2021 = vunpack.c.h.b16 %v1941
    %v2022 = vunpack.c.l.b16 %v1942
    %v2023 = vunpack.c.h.b16 %v1942
    %v2024 = vunpack.c.l.b16 %v1943
    %v2025 = vunpack.c.h.b16 %v1943
    %v2026 = vunpack.c.l.b16 %v1944
    %v2027 = vunpack.c.h.b16 %v1944
    %v2028 = vunpack.c.l.b16 %v1945
    %v2029 = vunpack.c.h.b16 %v1945
    %v2030 = vunpack.c.l.b16 %v1946
    %v2031 = vunpack.c.h.b16 %v1946
    %v2032 = vunpack.c.l.b16 %v1947
    %v2033 = vunpack.c.h.b16 %v1947
    %v2034 = vunpack.c.l.b16 %v1948
    %v2035 = vunpack.c.h.b16 %v1948
    %v2036 = vunpack.c.l.b16 %v1949
    %v2037 = vunpack.c.h.b16 %v1949
    %v2038 = vunpack.c.l.b16 %v1950
    %v2039 = vunpack.c.h.b16 %v1950
    %v2040 = vunpack.c.l.b16 %v1951
    %v2041 = vunpack.c.h.b16 %v1951
    %v2042 = vunpack.c.l.b16 %v1952
    %v2043 = vunpack.c.h.b16 %v1952
    %v2044 = vunpack.c.l.b16 %v1953
    %v2045 = vunpack.c.h.b16 %v1953
    %v2046 = vunpack.c.l.b16 %v1954
    %v2047 = vunpack.c.h.b16 %v1954
    %v2048 = vunpack.c.l.b16 %v1955
    %v2049 = vunpack.c.h.b16 %v1955
    %v2050 = vunpack.c.l.b16 %v1956
    %v2051 = vunpack.c.h.b16 %v1956
    %v2052 = vunpack.c.l.b16 %v1957
    %v2053 = vunpack.c.h.b16 %v1957
    %v2054 = vunpack.c.l.b16 %v1958
    %v2055 = vunpack.c.h.b16 %v1958
    %v2056 = vunpack.c.l.b16 %v1959
    %v2057 = vunpack.c.h.b16 %v1959
    %v2058 = vunpack.c.l.b16 %v1960
    %v2059 = vunpack.c.h.b16 %v1960
    %v2060 = vunpack.c.l.b16 %v1961
    %v2061 = vunpack.c.h.b16 %v1961
    %v2062 = vunpack.c.l.b16 %v1962
    %v2063 = vunpack.c.h.b16 %v1962
    %v2064 = vunpack.c.l.b16 %v1963
    %v2065 = vunpack.c.h.b16 %v1963
    %v2066 = vunpack.c.l.b16 %v1964
    %v2067 = vunpack.c.h.b16 %v1964
    %v2068 = vunpack.c.l.b16 %v1965
    %v2069 = vunpack.c.h.b16 %v1965
    %v2070 = vunpack.c.l.b16 %v1966
    %v2071 = vunpack.c.h.b16 %v1966
    %v2072 = vunpack.c.l.b16 %v1967
    %v2073 = vunpack.c.h.b16 %v1967
    %v2074 = vpack.c.b16 %v2014, %v2010
    %v2075 = vpack.c.b16 %v2015, %v2011
    %v2076 = vpack.c.b16 %v2016, %v2012
    %v2077 = vpack.c.b16 %v2017, %v2013
    %v2078 = vpack.c.b16 %v2022, %v2018
    %v2079 = vpack.c.b16 %v2023, %v2019
    %v2080 = vpack.c.b16 %v2024, %v2020
    %v2081 = vpack.c.b16 %v2025, %v2021
    %v2082 = vpack.c.b16 %v2030, %v2026
    %v2083 = vpack.c.b16 %v2031, %v2027
    %v2084 = vpack.c.b16 %v2032, %v2028
    %v2085 = vpack.c.b16 %v2033, %v2029
    %v2086 = vpack.c.b16 %v2038, %v2034
    %v2087 = vpack.c.b16 %v2039, %v2035
    %v2088 = vpack.c.b16 %v2040, %v2036
    %v2089 = vpack.c.b16 %v2041, %v2037
    %v2090 = vpack.c.b16 %v2046, %v2042
    %v2091 = vpack.c.b16 %v2047, %v2043
    %v2092 = vpack.c.b16 %v2048, %v2044
    %v2093 = vpack.c.b16 %v2049, %v2045
    %v2094 = vpack.c.b16 %v2054, %v2050
    %v2095 = vpack.c.b16 %v2055, %v2051
    %v2096 = vpack.c.b16 %v2056, %v2052
    %v2097 = vpack.c.b16 %v2057, %v2053
    %v2098 = vpack.c.b16 %v2062, %v2058
    %v2099 = vpack.c.b16 %v2063, %v2059
    %v2100 = vpack.c.b16 %v2064, %v2060
    %v2101 = vpack.c.b16 %v2065, %v2061
    %v2102 = vpack.c.b16 %v2070, %v2066
    %v2103 = vpack.c.b16 %v2071, %v2067
    %v2104 = vpack.c.b16 %v2072, %v2068
    %v2105 = vpack.c.b16 %v2073, %v2069
    %2138 = vmatpush.bf16.msra.mxu0 %v2102
    %2139 = vmatpush.bf16.msra.mxu0 %v2098
    %2140 = vmatpush.bf16.msra.mxu0 %v2094
    %2141 = vmatpush.bf16.msra.mxu0 %v2090
    %2142 = vmatpush.bf16.msra.mxu0 %v2086
    %2143 = vmatpush.bf16.msra.mxu0 %v2082
    %2144 = vmatpush.bf16.msra.mxu0 %v2078
    %2145 = vmatpush.bf16.msra.mxu0 %v2074
    %2146 = vmatmul.bf16.gmra.mxu0 %v1934
    %v2147 = vpop.f32.mrf.mxu0
    %v2148 = vadd.f32 %v1970, %v2147
    %v2149 = vpop.f32.mrf.mxu0
    %v2150 = vadd.f32 %v1970, %v2149
    %2151 = vmatmul.bf16.gmra.mxu0 %v1935
    %v2152 = vpop.f32.mrf.mxu0
    %v2153 = vadd.f32 %v1970, %v2152
    %v2154 = vpop.f32.mrf.mxu0
    %v2155 = vadd.f32 %v1970, %v2154
    %2156 = vdwg.mxu0
    %2157 = vmatpush.bf16.msra.mxu0 %v2103
    %2158 = vmatpush.bf16.msra.mxu0 %v2099
    %2159 = vmatpush.bf16.msra.mxu0 %v2095
    %2160 = vmatpush.bf16.msra.mxu0 %v2091
    %2161 = vmatpush.bf16.msra.mxu0 %v2087
    %2162 = vmatpush.bf16.msra.mxu0 %v2083
    %2163 = vmatpush.bf16.msra.mxu0 %v2079
    %2164 = vmatpush.bf16.msra.mxu0 %v2075
    %2165 = vmatmul.bf16.gmra.mxu0 %v1934
    %v2166 = vpop.f32.mrf.mxu0
    %v2167 = vadd.f32 %v1971, %v2166
    %v2168 = vpop.f32.mrf.mxu0
    %v2169 = vadd.f32 %v1971, %v2168
    %2170 = vmatmul.bf16.gmra.mxu0 %v1935
    %v2171 = vpop.f32.mrf.mxu0
    %v2172 = vadd.f32 %v1971, %v2171
    %v2173 = vpop.f32.mrf.mxu0
    %v2174 = vadd.f32 %v1971, %v2173
    %2175 = vdwg.mxu0
    %2176 = vmatpush.bf16.msra.mxu0 %v2104
    %2177 = vmatpush.bf16.msra.mxu0 %v2100
    %2178 = vmatpush.bf16.msra.mxu0 %v2096
    %2179 = vmatpush.bf16.msra.mxu0 %v2092
    %2180 = vmatpush.bf16.msra.mxu0 %v2088
    %2181 = vmatpush.bf16.msra.mxu0 %v2084
    %2182 = vmatpush.bf16.msra.mxu0 %v2080
    %2183 = vmatpush.bf16.msra.mxu0 %v2076
    %2184 = vmatmul.bf16.gmra.mxu0 %v1934
    %v2185 = vpop.f32.mrf.mxu0
    %v2186 = vadd.f32 %v1972, %v2185
    %v2187 = vpop.f32.mrf.mxu0
    %v2188 = vadd.f32 %v1972, %v2187
    %2189 = vmatmul.bf16.gmra.mxu0 %v1935
    %v2190 = vpop.f32.mrf.mxu0
    %v2191 = vadd.f32 %v1972, %v2190
    %v2192 = vpop.f32.mrf.mxu0
    %v2193 = vadd.f32 %v1972, %v2192
    %2194 = vdwg.mxu0
    %2195 = vmatpush.bf16.msra.mxu0 %v2105
    %2196 = vmatpush.bf16.msra.mxu0 %v2101
    %2197 = vmatpush.bf16.msra.mxu0 %v2097
    %2198 = vmatpush.bf16.msra.mxu0 %v2093
    %2199 = vmatpush.bf16.msra.mxu0 %v2089
    %2200 = vmatpush.bf16.msra.mxu0 %v2085
    %2201 = vmatpush.bf16.msra.mxu0 %v2081
    %2202 = vmatpush.bf16.msra.mxu0 %v2077
    %2203 = vmatmul.bf16.gmra.mxu0 %v1934
    %v2204 = vpop.f32.mrf.mxu0
    %v2205 = vadd.f32 %v1973, %v2204
    %v2206 = vpop.f32.mrf.mxu0
    %v2207 = vadd.f32 %v1973, %v2206
    %2208 = vmatmul.bf16.gmra.mxu0 %v1935
    %v2209 = vpop.f32.mrf.mxu0
    %v2210 = vadd.f32 %v1973, %v2209
    %v2211 = vpop.f32.mrf.mxu0
    %v2212 = vadd.f32 %v1973, %v2211
    %2213 = vdwg.mxu0
    %2214 = vst [vmem:[%s13] sm:$0xff] %v2148
    %2215 = vst [vmem:[%s13 + $0x8] sm:$0xff] %v2167
    %2216 = vst [vmem:[%s13 + $0x10] sm:$0xff] %v2186
    %2217 = vst [vmem:[%s13 + $0x18] sm:$0xff] %v2205
    %2218 = vst [vmem:[%s13 + $0x20] sm:$0xff] %v2150
    %2219 = vst [vmem:[%s13 + $0x28] sm:$0xff] %v2169
    %2220 = vst [vmem:[%s13 + $0x30] sm:$0xff] %v2188
    %2221 = vst [vmem:[%s13 + $0x38] sm:$0xff] %v2207
    %2222 = vst [vmem:[%s13 + $0x40] sm:$0xff] %v2153
    %2223 = vst [vmem:[%s13 + $0x48] sm:$0xff] %v2172
    %2224 = vst [vmem:[%s13 + $0x50] sm:$0xff] %v2191
    %2225 = vst [vmem:[%s13 + $0x58] sm:$0xff] %v2210
    %2226 = vst [vmem:[%s13 + $0x60] sm:$0xff] %v2155
    %2227 = vst [vmem:[%s13 + $0x68] sm:$0xff] %v2174
    %2228 = vst [vmem:[%s13 + $0x70] sm:$0xff] %v2193
    %2229 = vst [vmem:[%s13 + $0x78] sm:$0xff] %v2212
    // Predicated region
    $region74: #{_lambda_.2} parent=1 // pred_check
      _
    $region75: #{_lambda_.2} parent=1 // pred_check_branch
      %2231 = sbr.rel (0) target = $region77
    $region76: #{_lambda_.2} parent=1 // pred_region
      _
    $region77: #{_lambda_.2} parent=1 // pred_fallthru
      _
    // Predicated region
    $region78: #{_lambda_.2} parent=1 // pred_check
      _
    $region79: #{_lambda_.2} parent=1 // pred_check_branch
      %2233 = sbr.rel (0) target = $region81
    $region80: #{_lambda_.2} parent=1 // pred_region
      _
    $region81: #{_lambda_.2} parent=1 // pred_fallthru
      _
    %2234 = vsyncpa [#allocation3], 1
    %2235 = vsyncpa [#allocation5], 1
    %2236 = vsyncpa [#allocation8], 1

</llo_original>
